<compile_context>
chip_gen: v5e
topology: v5e:2x2
jax: 0.10.0
libtpu: 0.0.40
codegen_flags: <defaults>
</compile_context>

<pallas_src>
import math
from functools import partial

import jax
import jax.numpy as jnp
from jax.experimental import pallas as pl
from jax.experimental.pallas import tpu as pltpu


def _round_up(x, m):
    return ((x + m - 1) // m) * m


# ---------------------------------------------------------------------------
# Pallas kernel: tiled MXU matmul with fused epilogue
#   y = relu( (A @ B) * scale + bias + residual )     (each piece optional)
# ---------------------------------------------------------------------------

def _mm_fused_kernel(*refs, relu, has_affine, has_residual, single_k):
    it = iter(refs)
    a_ref = next(it)
    b_ref = next(it)
    s_ref = c_ref = r_ref = None
    if has_affine:
        s_ref = next(it)
        c_ref = next(it)
    if has_residual:
        r_ref = next(it)
    o_ref = next(it)

    def epilogue(y):
        if has_affine:
            y = y * s_ref[...] + c_ref[...]
        if has_residual:
            y = y + r_ref[...]
        if relu:
            y = jnp.maximum(y, 0.0)
        return y

    if single_k:
        # Single K tile: no init, no accumulation, exactly one store.
        acc = jnp.dot(a_ref[...], b_ref[...], preferred_element_type=jnp.float32)
        o_ref[...] = epilogue(acc)
    else:
        # Multi K tile: accumulate directly into the resident f32 output block.
        @pl.when(pl.program_id(2) == 0)
        def _():
            o_ref[...] = jnp.zeros_like(o_ref)

        o_ref[...] += jnp.dot(a_ref[...], b_ref[...],
                              preferred_element_type=jnp.float32)

        @pl.when(pl.program_id(2) == pl.num_programs(2) - 1)
        def _():
            o_ref[...] = epilogue(o_ref[...])


def matmul_fused(a, b, scale=None, bias=None, residual=None, relu=False,
                 tm_max=256, tk_max=2048):
    """A (M,K) bf16 @ B (K,N) bf16 -> f32, with fused affine/residual/ReLU.

    tm_max / tk_max are per-target knobs: raise them (e.g. 256/512+) for
    realistic shapes on v6e/v7x to fill the 256-wide MXU; at these toy shapes
    the tiles already cover the whole problem.
    """
    M, K = a.shape
    Kb, N = b.shape
    assert K == Kb
    has_affine = scale is not None
    has_residual = residual is not None

    # --- tile selection (no dead padding, lane-width = full Cout) ----------
    tm = min(_round_up(M, 8), tm_max)
    Mp = _round_up(M, tm)
    tn = N                                  # full-width block: no N pad / slice
    Kp = _round_up(K, 16)                   # bf16 sublane packing
    if Kp <= tk_max:
        tk = Kp                             # single K tile (no K grid axis work)
    else:
        tk = tk_max                         # tk_max must be a multiple of 128
        Kp = _round_up(K, tk)
    n_k = Kp // tk
    single_k = (n_k == 1)

    a_p = a if (Mp == M and Kp == K) else jnp.pad(a, ((0, Mp - M), (0, Kp - K)))
    b_p = b if Kp == K else jnp.pad(b, ((0, Kp - K), (0, 0)))

    inputs = [a_p, b_p]
    in_specs = [pl.BlockSpec((tm, tk), lambda i, j, k: (i, k)),
                pl.BlockSpec((tk, tn), lambda i, j, k: (k, j))]
    if has_affine:
        inputs += [scale.reshape(1, N).astype(jnp.float32),
                   bias.reshape(1, N).astype(jnp.float32)]
        in_specs += [pl.BlockSpec((1, tn), lambda i, j, k: (0, j)),
                     pl.BlockSpec((1, tn), lambda i, j, k: (0, j))]
    if has_residual:
        r_p = residual if Mp == M else jnp.pad(residual, ((0, Mp - M), (0, 0)))
        inputs.append(r_p.astype(jnp.float32))
        in_specs.append(pl.BlockSpec((tm, tn), lambda i, j, k: (i, j)))

    # --- explicit VMEM budget (2x double-buffered inputs + resident output) --
    vmem_bytes = 2 * (tm * tk * 2 + tk * tn * 2) + 2 * tm * tn * 4
    if has_affine:
        vmem_bytes += 2 * 2 * tn * 4
    if has_residual:
        vmem_bytes += 2 * tm * tn * 4
    vmem_limit = min(max(4 * vmem_bytes, 16 * 1024 * 1024), 32 * 1024 * 1024)

    kernel = partial(_mm_fused_kernel, relu=relu, has_affine=has_affine,
                     has_residual=has_residual, single_k=single_k)

    out = pl.pallas_call(
        kernel,
        out_shape=jax.ShapeDtypeStruct((Mp, N), jnp.float32),
        grid_spec=pltpu.PrefetchScalarGridSpec(
            num_scalar_prefetch=0,
            grid=(Mp // tm, N // tn, n_k),
            in_specs=in_specs,
            out_specs=pl.BlockSpec((tm, tn), lambda i, j, k: (i, j))),
        compiler_params=pltpu.CompilerParams(
            dimension_semantics=("parallel", "parallel", "arbitrary"),
            vmem_limit_bytes=vmem_limit),
    )(*inputs)
    return out if Mp == M else out[:M]


# ---------------------------------------------------------------------------
# NN building blocks (thin glue in JAX, hot path = fused Pallas matmul)
# ---------------------------------------------------------------------------

def conv2d_fused(x, w_mat, ksize, stride, pad,
                 scale=None, bias=None, residual=None, relu=False):
    """x: (N,H,W,Cin) NHWC f32; w_mat: (KH*KW*Cin, Cout) bf16 (pre-folded).

    BN affine / residual add / ReLU are fused into the matmul epilogue.
    """
    N, H, W, Cin = x.shape
    K, Cout = w_mat.shape
    KH = KW = ksize
    Ho = (H + 2 * pad - KH) // stride + 1
    Wo = (W + 2 * pad - KW) // stride + 1
    if pad:
        x = jnp.pad(x, ((0, 0), (pad, pad), (pad, pad), (0, 0)))

    if KH == 1 and KW == 1:
        patches = x[:, :stride * Ho:stride, :stride * Wo:stride, :]
    else:
        # TODO(synk): fold these (kh,kw) taps into the matmul K grid axis
        # (shifted views via BlockSpec / manual DMA) instead of materializing
        # the im2col patch tensor, as suggested in the perf review.
        taps = [x[:, kh:kh + stride * Ho:stride, kw:kw + stride * Wo:stride, :]
                for kh in range(KH) for kw in range(KW)]
        patches = jnp.concatenate(taps, axis=-1)            # (N,Ho,Wo,KH*KW*Cin)

    A = patches.reshape(N * Ho * Wo, K).astype(jnp.bfloat16)
    res2d = None if residual is None else residual.reshape(N * Ho * Wo, Cout)
    out = matmul_fused(A, w_mat, scale=scale, bias=bias,
                       residual=res2d, relu=relu)
    return out.reshape(N, Ho, Wo, Cout)


def stem_bn_relu_maxpool(x, scale, bias):
    """BN(inference) + ReLU + 3x3/s2/p1 maxpool, fused as one XLA expression.

    Per the perf review: no (9, M, C) window tensor is materialized or DMA'd
    into a kernel — a running 9-way maximum over strided views is fused by XLA
    into a single read of the feature map.
    """
    N, H, W, C = x.shape
    y = jnp.maximum(x * scale.reshape(1, 1, 1, C) + bias.reshape(1, 1, 1, C), 0.0)
    k, s, p = 3, 2, 1
    Ho = (H + 2 * p - k) // s + 1
    Wo = (W + 2 * p - k) // s + 1
    y_p = jnp.pad(y, ((0, 0), (p, p), (p, p), (0, 0)),
                  constant_values=-jnp.inf)
    out = None
    for kh in range(k):
        for kw in range(k):
            win = y_p[:, kh:kh + s * Ho:s, kw:kw + s * Wo:s, :]
            out = win if out is None else jnp.maximum(out, win)
    return out


def basic_block(x, p, stride):
    """torchvision BasicBlock with BN/ReLU/residual fused into the conv kernels."""
    if "dw" in p:
        identity = conv2d_fused(x, p["dw"], 1, stride, 0,
                                scale=p["dscale"], bias=p["dbias"], relu=False)
    else:
        identity = x
    out = conv2d_fused(x, p["w1"], 3, stride, 1,
                       scale=p["s1"], bias=p["b1"], relu=True)
    out = conv2d_fused(out, p["w2"], 3, 1, 1,
                       scale=p["s2"], bias=p["b2"],
                       residual=identity, relu=True)
    return out


# ---------------------------------------------------------------------------
# Parameter init (PyTorch conventions) + one-time fold to kernel-ready form
# ---------------------------------------------------------------------------

def init_params(key):
    keys = iter(jax.random.split(key, 128))

    def conv_w(cout, cin, kh, kw):
        fan_in = cin * kh * kw
        return jax.random.normal(next(keys), (cout, cin, kh, kw),
                                 jnp.float32) / math.sqrt(fan_in)

    def bn(c):
        return {
            "gamma": 1.0 + 0.1 * jax.random.normal(next(keys), (c,), jnp.float32),
            "beta": 0.1 * jax.random.normal(next(keys), (c,), jnp.float32),
            "mean": 0.1 * jax.random.normal(next(keys), (c,), jnp.float32),
            "var": 1.0 + 0.1 * jnp.abs(jax.random.normal(next(keys), (c,), jnp.float32)),
        }

    def block(cin, cout, downsample):
        p = {"conv1_w": conv_w(cout, cin, 3, 3), "bn1": bn(cout),
             "conv2_w": conv_w(cout, cout, 3, 3), "bn2": bn(cout)}
        if downsample:
            p["down_w"] = conv_w(cout, cin, 1, 1)
            p["down_bn"] = bn(cout)
        return p

    return {
        "conv1_w": conv_w(64, 3, 7, 7),
        "bn1": bn(64),
        "l1b1": block(64, 64, downsample=False),
        "l1b2": block(64, 64, downsample=False),
        "l2b1": block(64, 128, downsample=True),
        "l2b2": block(128, 128, downsample=False),
    }


def fold_params(params):
    """One-time static prep: OIHW -> (KH*KW*Cin, Cout) bf16, BN -> scale/bias."""
    def conv_mat(w_oihw):
        cout, cin, kh, kw = w_oihw.shape
        return (jnp.transpose(w_oihw, (2, 3, 1, 0))
                .reshape(kh * kw * cin, cout).astype(jnp.bfloat16))

    def bn_affine(bn):
        scale = bn["gamma"] * jax.lax.rsqrt(bn["var"] + 1e-5)
        bias = bn["beta"] - bn["mean"] * scale
        return scale.astype(jnp.float32), bias.astype(jnp.float32)

    def block(p):
        out = {"w1": conv_mat(p["conv1_w"]), "w2": conv_mat(p["conv2_w"])}
        out["s1"], out["b1"] = bn_affine(p["bn1"])
        out["s2"], out["b2"] = bn_affine(p["bn2"])
        if "down_w" in p:
            out["dw"] = conv_mat(p["down_w"])
            out["dscale"], out["dbias"] = bn_affine(p["down_bn"])
        return out

    s1, b1 = bn_affine(params["bn1"])
    return {"conv1_w": conv_mat(params["conv1_w"]),
            "bn1_scale": s1, "bn1_bias": b1,
            "l1b1": block(params["l1b1"]), "l1b2": block(params["l1b2"]),
            "l2b1": block(params["l2b1"]), "l2b2": block(params["l2b2"])}


# ---------------------------------------------------------------------------
# Forward (matches Resnet.forward: returns out_0..out_3, all NCHW)
# ---------------------------------------------------------------------------

@jax.jit
def resnet_forward(x_nchw, fp):
    x = jnp.transpose(x_nchw, (0, 2, 3, 1))                    # NCHW -> NHWC
    # layer0: raw conv1 output (pre-BN) is itself a returned feature map.
    out0 = conv2d_fused(x, fp["conv1_w"], 7, 2, 3)
    # layer1: bn + relu + maxpool (fused XLA strided-window max).
    out1 = stem_bn_relu_maxpool(out0, fp["bn1_scale"], fp["bn1_bias"])
    # layer2 (resnet layer1): two BasicBlocks, 64ch, stride 1.
    out2 = basic_block(out1, fp["l1b1"], 1)
    out2 = basic_block(out2, fp["l1b2"], 1)
    # layer3 (resnet layer2): two BasicBlocks, 128ch, first stride 2.
    out3 = basic_block(out2, fp["l2b1"], 2)
    out3 = basic_block(out3, fp["l2b2"], 1)
    to_nchw = lambda t: jnp.transpose(t, (0, 3, 1, 2))          # NHWC -> NCHW
    return to_nchw(out0), to_nchw(out1), to_nchw(out2), to_nchw(out3)


if __name__ == "__main__":
    key = jax.random.PRNGKey(0)
    k_params, k_x = jax.random.split(key)
    params = init_params(k_params)
    fparams = fold_params(params)          # one-time weight/BN folding (eager)

    # small RGB image batch, NCHW like PyTorch
    x = jax.random.normal(k_x, (2, 3, 32, 32), jnp.float32)

    outs = resnet_forward(x, fparams)
    outs = jax.block_until_ready(outs)

    expected = [(2, 64, 16, 16), (2, 64, 8, 8), (2, 64, 8, 8), (2, 128, 4, 4)]
    assert [tuple(o.shape) for o in outs] == expected, \
        [tuple(o.shape) for o in outs]
    assert all(bool(jnp.isfinite(o).all()) for o in outs)
    print("KERNEL_OK")
</pallas_src>

<mosaic_0001>
module attributes {stable_mosaic.version = 11 : i64} {
  func.func @_mm_fused_kernel(%arg0: i32, %arg1: i32, %arg2: i32, %arg3: memref<256x160xbf16, #tpu.memory_space<vmem>>, %arg4: memref<160x64xbf16, #tpu.memory_space<vmem>>, %arg5: memref<256x64xf32, #tpu.memory_space<vmem>>) attributes {dimension_semantics = [#tpu.dimension_semantics<parallel>, #tpu.dimension_semantics<parallel>, #tpu.dimension_semantics<arbitrary>], iteration_bounds = array<i64: 2, 1, 1>, scalar_prefetch = 0 : i64, scratch_operands = 0 : i64, tpu.core_type = #tpu.core_type<tc>, window_params = [{transform_indices = @transform_0, window_bounds = array<i64: 256, 160>}, {transform_indices = @transform_1, window_bounds = array<i64: 160, 64>}, {transform_indices = @transform_2, window_bounds = array<i64: 256, 64>}]} {
    %c0 = arith.constant 0 : index
    %c0_0 = arith.constant 0 : index
    %0 = vector.load %arg3[%c0, %c0_0] : memref<256x160xbf16, #tpu.memory_space<vmem>>, vector<256x160xbf16>
    %c0_1 = arith.constant 0 : index
    %c0_2 = arith.constant 0 : index
    %1 = vector.load %arg4[%c0_1, %c0_2] : memref<160x64xbf16, #tpu.memory_space<vmem>>, vector<160x64xbf16>
    %cst = arith.constant dense<0.000000e+00> : vector<256x64xf32>
    %2 = tpu.matmul %0, %1, %cst {dimension_numbers = #tpu.dot_dimension_numbers<[1], [0], [0], [1], [0, 0, 1, 1], [], []>} : vector<256x160xbf16>, vector<160x64xbf16>, vector<256x64xf32> -> vector<256x64xf32>
    %c0_3 = arith.constant 0 : index
    %c0_4 = arith.constant 0 : index
    %3 = vector.load %arg5[%c0_3, %c0_4] : memref<256x64xf32, #tpu.memory_space<vmem>>, vector<256x64xf32>
    tpu.vector_store %arg5[%c0_3, %c0_4], %2 {strides = array<i32>} : memref<256x64xf32, #tpu.memory_space<vmem>>, vector<256x64xf32>,
    return
  }
  func.func @transform_0(%arg0: i32, %arg1: i32, %arg2: i32) -> (i32, i32) {
    %c0_i32 = arith.constant 0 : i32
    return %arg0, %arg2 : i32, i32
  }
  func.func @transform_1(%arg0: i32, %arg1: i32, %arg2: i32) -> (i32, i32) {
    %c0_i32 = arith.constant 0 : i32
    return %arg2, %arg1 : i32, i32
  }
  func.func @transform_2(%arg0: i32, %arg1: i32, %arg2: i32) -> (i32, i32) {
    %c0_i32 = arith.constant 0 : i32
    return %arg0, %arg1 : i32, i32
  }
}

module attributes {stable_mosaic.version = 11 : i64} {
  func.func @_mm_fused_kernel(%arg0: i32, %arg1: i32, %arg2: i32, %arg3: memref<128x576xbf16, #tpu.memory_space<vmem>>, %arg4: memref<576x64xbf16, #tpu.memory_space<vmem>>, %arg5: memref<1x64xf32, #tpu.memory_space<vmem>>, %arg6: memref<1x64xf32, #tpu.memory_space<vmem>>, %arg7: memref<128x64xf32, #tpu.memory_space<vmem>>) attributes {dimension_semantics = [#tpu.dimension_semantics<parallel>, #tpu.dimension_semantics<parallel>, #tpu.dimension_semantics<arbitrary>], iteration_bounds = array<i64: 1, 1, 1>, scalar_prefetch = 0 : i64, scratch_operands = 0 : i64, tpu.core_type = #tpu.core_type<tc>, window_params = [{transform_indices = @transform_0, window_bounds = array<i64: 128, 576>}, {transform_indices = @transform_1, window_bounds = array<i64: 576, 64>}, {transform_indices = @transform_2, window_bounds = array<i64: 1, 64>}, {transform_indices = @transform_3, window_bounds = array<i64: 1, 64>}, {transform_indices = @transform_4, window_bounds = array<i64: 128, 64>}]} {
    %c0 = arith.constant 0 : index
    %c0_0 = arith.constant 0 : index
    %0 = vector.load %arg3[%c0, %c0_0] : memref<128x576xbf16, #tpu.memory_space<vmem>>, vector<128x576xbf16>
    %c0_1 = arith.constant 0 : index
    %c0_2 = arith.constant 0 : index
    %1 = vector.load %arg4[%c0_1, %c0_2] : memref<576x64xbf16, #tpu.memory_space<vmem>>, vector<576x64xbf16>
    %cst = arith.constant dense<0.000000e+00> : vector<128x64xf32>
    %2 = tpu.matmul %0, %1, %cst {dimension_numbers = #tpu.dot_dimension_numbers<[1], [0], [0], [1], [0, 0, 1, 1], [], []>} : vector<128x576xbf16>, vector<576x64xbf16>, vector<128x64xf32> -> vector<128x64xf32>
    %c0_3 = arith.constant 0 : index
    %c0_4 = arith.constant 0 : index
    %3 = vector.load %arg5[%c0_3, %c0_4] : memref<1x64xf32, #tpu.memory_space<vmem>>, vector<1x64xf32>
    %4 = vector.broadcast %3 : vector<1x64xf32> to vector<128x64xf32>
    %5 = arith.mulf %2, %4 : vector<128x64xf32>
    %c0_5 = arith.constant 0 : index
    %c0_6 = arith.constant 0 : index
    %6 = vector.load %arg6[%c0_5, %c0_6] : memref<1x64xf32, #tpu.memory_space<vmem>>, vector<1x64xf32>
    %7 = vector.broadcast %6 : vector<1x64xf32> to vector<128x64xf32>
    %8 = arith.addf %5, %7 : vector<128x64xf32>
    %cst_7 = arith.constant 0.000000e+00 : f32
    %9 = vector.broadcast %cst_7 : f32 to vector<128x64xf32>
    %10 = arith.maximumf %8, %9 : vector<128x64xf32>
    %c0_8 = arith.constant 0 : index
    %c0_9 = arith.constant 0 : index
    %11 = vector.load %arg7[%c0_8, %c0_9] : memref<128x64xf32, #tpu.memory_space<vmem>>, vector<128x64xf32>
    tpu.vector_store %arg7[%c0_8, %c0_9], %10 {strides = array<i32>} : memref<128x64xf32, #tpu.memory_space<vmem>>, vector<128x64xf32>,
    return
  }
  func.func @transform_0(%arg0: i32, %arg1: i32, %arg2: i32) -> (i32, i32) {
    %c0_i32 = arith.constant 0 : i32
    return %arg0, %arg2 : i32, i32
  }
  func.func @transform_1(%arg0: i32, %arg1: i32, %arg2: i32) -> (i32, i32) {
    %c0_i32 = arith.constant 0 : i32
    return %arg2, %arg1 : i32, i32
  }
  func.func @transform_2(%arg0: i32, %arg1: i32, %arg2: i32) -> (i32, i32) {
    %c0_i32 = arith.constant 0 : i32
    %c0_i32_0 = arith.constant 0 : i32
    return %c0_i32, %arg1 : i32, i32
  }
  func.func @transform_3(%arg0: i32, %arg1: i32, %arg2: i32) -> (i32, i32) {
    %c0_i32 = arith.constant 0 : i32
    %c0_i32_0 = arith.constant 0 : i32
    return %c0_i32, %arg1 : i32, i32
  }
  func.func @transform_4(%arg0: i32, %arg1: i32, %arg2: i32) -> (i32, i32) {
    %c0_i32 = arith.constant 0 : i32
    return %arg0, %arg1 : i32, i32
  }
}

module attributes {stable_mosaic.version = 11 : i64} {
  func.func @_mm_fused_kernel(%arg0: i32, %arg1: i32, %arg2: i32, %arg3: memref<128x576xbf16, #tpu.memory_space<vmem>>, %arg4: memref<576x64xbf16, #tpu.memory_space<vmem>>, %arg5: memref<1x64xf32, #tpu.memory_space<vmem>>, %arg6: memref<1x64xf32, #tpu.memory_space<vmem>>, %arg7: memref<128x64xf32, #tpu.memory_space<vmem>>, %arg8: memref<128x64xf32, #tpu.memory_space<vmem>>) attributes {dimension_semantics = [#tpu.dimension_semantics<parallel>, #tpu.dimension_semantics<parallel>, #tpu.dimension_semantics<arbitrary>], iteration_bounds = array<i64: 1, 1, 1>, scalar_prefetch = 0 : i64, scratch_operands = 0 : i64, tpu.core_type = #tpu.core_type<tc>, window_params = [{transform_indices = @transform_0, window_bounds = array<i64: 128, 576>}, {transform_indices = @transform_1, window_bounds = array<i64: 576, 64>}, {transform_indices = @transform_2, window_bounds = array<i64: 1, 64>}, {transform_indices = @transform_3, window_bounds = array<i64: 1, 64>}, {transform_indices = @transform_4, window_bounds = array<i64: 128, 64>}, {transform_indices = @transform_5, window_bounds = array<i64: 128, 64>}]} {
    %c0 = arith.constant 0 : index
    %c0_0 = arith.constant 0 : index
    %0 = vector.load %arg3[%c0, %c0_0] : memref<128x576xbf16, #tpu.memory_space<vmem>>, vector<128x576xbf16>
    %c0_1 = arith.constant 0 : index
    %c0_2 = arith.constant 0 : index
    %1 = vector.load %arg4[%c0_1, %c0_2] : memref<576x64xbf16, #tpu.memory_space<vmem>>, vector<576x64xbf16>
    %cst = arith.constant dense<0.000000e+00> : vector<128x64xf32>
    %2 = tpu.matmul %0, %1, %cst {dimension_numbers = #tpu.dot_dimension_numbers<[1], [0], [0], [1], [0, 0, 1, 1], [], []>} : vector<128x576xbf16>, vector<576x64xbf16>, vector<128x64xf32> -> vector<128x64xf32>
    %c0_3 = arith.constant 0 : index
    %c0_4 = arith.constant 0 : index
    %3 = vector.load %arg5[%c0_3, %c0_4] : memref<1x64xf32, #tpu.memory_space<vmem>>, vector<1x64xf32>
    %4 = vector.broadcast %3 : vector<1x64xf32> to vector<128x64xf32>
    %5 = arith.mulf %2, %4 : vector<128x64xf32>
    %c0_5 = arith.constant 0 : index
    %c0_6 = arith.constant 0 : index
    %6 = vector.load %arg6[%c0_5, %c0_6] : memref<1x64xf32, #tpu.memory_space<vmem>>, vector<1x64xf32>
    %7 = vector.broadcast %6 : vector<1x64xf32> to vector<128x64xf32>
    %8 = arith.addf %5, %7 : vector<128x64xf32>
    %c0_7 = arith.constant 0 : index
    %c0_8 = arith.constant 0 : index
    %9 = vector.load %arg7[%c0_7, %c0_8] : memref<128x64xf32, #tpu.memory_space<vmem>>, vector<128x64xf32>
    %10 = arith.addf %8, %9 : vector<128x64xf32>
    %cst_9 = arith.constant 0.000000e+00 : f32
    %11 = vector.broadcast %cst_9 : f32 to vector<128x64xf32>
    %12 = arith.maximumf %10, %11 : vector<128x64xf32>
    %c0_10 = arith.constant 0 : index
    %c0_11 = arith.constant 0 : index
    %13 = vector.load %arg8[%c0_10, %c0_11] : memref<128x64xf32, #tpu.memory_space<vmem>>, vector<128x64xf32>
    tpu.vector_store %arg8[%c0_10, %c0_11], %12 {strides = array<i32>} : memref<128x64xf32, #tpu.memory_space<vmem>>, vector<128x64xf32>,
    return
  }
  func.func @transform_0(%arg0: i32, %arg1: i32, %arg2: i32) -> (i32, i32) {
    %c0_i32 = arith.constant 0 : i32
    return %arg0, %arg2 : i32, i32
  }
  func.func @transform_1(%arg0: i32, %arg1: i32, %arg2: i32) -> (i32, i32) {
    %c0_i32 = arith.constant 0 : i32
    return %arg2, %arg1 : i32, i32
  }
  func.func @transform_2(%arg0: i32, %arg1: i32, %arg2: i32) -> (i32, i32) {
    %c0_i32 = arith.constant 0 : i32
    %c0_i32_0 = arith.constant 0 : i32
    return %c0_i32, %arg1 : i32, i32
  }
  func.func @transform_3(%arg0: i32, %arg1: i32, %arg2: i32) -> (i32, i32) {
    %c0_i32 = arith.constant 0 : i32
    %c0_i32_0 = arith.constant 0 : i32
    return %c0_i32, %arg1 : i32, i32
  }
  func.func @transform_4(%arg0: i32, %arg1: i32, %arg2: i32) -> (i32, i32) {
    %c0_i32 = arith.constant 0 : i32
    return %arg0, %arg1 : i32, i32
  }
  func.func @transform_5(%arg0: i32, %arg1: i32, %arg2: i32) -> (i32, i32) {
    %c0_i32 = arith.constant 0 : i32
    return %arg0, %arg1 : i32, i32
  }
}

module attributes {stable_mosaic.version = 11 : i64} {
  func.func @_mm_fused_kernel(%arg0: i32, %arg1: i32, %arg2: i32, %arg3: memref<32x576xbf16, #tpu.memory_space<vmem>>, %arg4: memref<576x128xbf16, #tpu.memory_space<vmem>>, %arg5: memref<1x128xf32, #tpu.memory_space<vmem>>, %arg6: memref<1x128xf32, #tpu.memory_space<vmem>>, %arg7: memref<32x128xf32, #tpu.memory_space<vmem>>) attributes {dimension_semantics = [#tpu.dimension_semantics<parallel>, #tpu.dimension_semantics<parallel>, #tpu.dimension_semantics<arbitrary>], iteration_bounds = array<i64: 1, 1, 1>, scalar_prefetch = 0 : i64, scratch_operands = 0 : i64, tpu.core_type = #tpu.core_type<tc>, window_params = [{transform_indices = @transform_0, window_bounds = array<i64: 32, 576>}, {transform_indices = @transform_1, window_bounds = array<i64: 576, 128>}, {transform_indices = @transform_2, window_bounds = array<i64: 1, 128>}, {transform_indices = @transform_3, window_bounds = array<i64: 1, 128>}, {transform_indices = @transform_4, window_bounds = array<i64: 32, 128>}]} {
    %c0 = arith.constant 0 : index
    %c0_0 = arith.constant 0 : index
    %0 = vector.load %arg3[%c0, %c0_0] : memref<32x576xbf16, #tpu.memory_space<vmem>>, vector<32x576xbf16>
    %c0_1 = arith.constant 0 : index
    %c0_2 = arith.constant 0 : index
    %1 = vector.load %arg4[%c0_1, %c0_2] : memref<576x128xbf16, #tpu.memory_space<vmem>>, vector<576x128xbf16>
    %cst = arith.constant dense<0.000000e+00> : vector<32x128xf32>
    %2 = tpu.matmul %0, %1, %cst {dimension_numbers = #tpu.dot_dimension_numbers<[1], [0], [0], [1], [0, 0, 1, 1], [], []>} : vector<32x576xbf16>, vector<576x128xbf16>, vector<32x128xf32> -> vector<32x128xf32>
    %c0_3 = arith.constant 0 : index
    %c0_4 = arith.constant 0 : index
    %3 = vector.load %arg5[%c0_3, %c0_4] : memref<1x128xf32, #tpu.memory_space<vmem>>, vector<1x128xf32>
    %4 = vector.broadcast %3 : vector<1x128xf32> to vector<32x128xf32>
    %5 = arith.mulf %2, %4 : vector<32x128xf32>
    %c0_5 = arith.constant 0 : index
    %c0_6 = arith.constant 0 : index
    %6 = vector.load %arg6[%c0_5, %c0_6] : memref<1x128xf32, #tpu.memory_space<vmem>>, vector<1x128xf32>
    %7 = vector.broadcast %6 : vector<1x128xf32> to vector<32x128xf32>
    %8 = arith.addf %5, %7 : vector<32x128xf32>
    %cst_7 = arith.constant 0.000000e+00 : f32
    %9 = vector.broadcast %cst_7 : f32 to vector<32x128xf32>
    %10 = arith.maximumf %8, %9 : vector<32x128xf32>
    %c0_8 = arith.constant 0 : index
    %c0_9 = arith.constant 0 : index
    %11 = vector.load %arg7[%c0_8, %c0_9] : memref<32x128xf32, #tpu.memory_space<vmem>>, vector<32x128xf32>
    tpu.vector_store %arg7[%c0_8, %c0_9], %10 {strides = array<i32>} : memref<32x128xf32, #tpu.memory_space<vmem>>, vector<32x128xf32>,
    return
  }
  func.func @transform_0(%arg0: i32, %arg1: i32, %arg2: i32) -> (i32, i32) {
    %c0_i32 = arith.constant 0 : i32
    return %arg0, %arg2 : i32, i32
  }
  func.func @transform_1(%arg0: i32, %arg1: i32, %arg2: i32) -> (i32, i32) {
    %c0_i32 = arith.constant 0 : i32
    return %arg2, %arg1 : i32, i32
  }
  func.func @transform_2(%arg0: i32, %arg1: i32, %arg2: i32) -> (i32, i32) {
    %c0_i32 = arith.constant 0 : i32
    %c0_i32_0 = arith.constant 0 : i32
    return %c0_i32, %arg1 : i32, i32
  }
  func.func @transform_3(%arg0: i32, %arg1: i32, %arg2: i32) -> (i32, i32) {
    %c0_i32 = arith.constant 0 : i32
    %c0_i32_0 = arith.constant 0 : i32
    return %c0_i32, %arg1 : i32, i32
  }
  func.func @transform_4(%arg0: i32, %arg1: i32, %arg2: i32) -> (i32, i32) {
    %c0_i32 = arith.constant 0 : i32
    return %arg0, %arg1 : i32, i32
  }
}

module attributes {stable_mosaic.version = 11 : i64} {
  func.func @_mm_fused_kernel(%arg0: i32, %arg1: i32, %arg2: i32, %arg3: memref<32x1152xbf16, #tpu.memory_space<vmem>>, %arg4: memref<1152x128xbf16, #tpu.memory_space<vmem>>, %arg5: memref<1x128xf32, #tpu.memory_space<vmem>>, %arg6: memref<1x128xf32, #tpu.memory_space<vmem>>, %arg7: memref<32x128xf32, #tpu.memory_space<vmem>>) attributes {dimension_semantics = [#tpu.dimension_semantics<parallel>, #tpu.dimension_semantics<parallel>, #tpu.dimension_semantics<arbitrary>], iteration_bounds = array<i64: 1, 1, 1>, scalar_prefetch = 0 : i64, scratch_operands = 0 : i64, tpu.core_type = #tpu.core_type<tc>, window_params = [{transform_indices = @transform_0, window_bounds = array<i64: 32, 1152>}, {transform_indices = @transform_1, window_bounds = array<i64: 1152, 128>}, {transform_indices = @transform_2, window_bounds = array<i64: 1, 128>}, {transform_indices = @transform_3, window_bounds = array<i64: 1, 128>}, {transform_indices = @transform_4, window_bounds = array<i64: 32, 128>}]} {
    %c0 = arith.constant 0 : index
    %c0_0 = arith.constant 0 : index
    %0 = vector.load %arg3[%c0, %c0_0] : memref<32x1152xbf16, #tpu.memory_space<vmem>>, vector<32x1152xbf16>
    %c0_1 = arith.constant 0 : index
    %c0_2 = arith.constant 0 : index
    %1 = vector.load %arg4[%c0_1, %c0_2] : memref<1152x128xbf16, #tpu.memory_space<vmem>>, vector<1152x128xbf16>
    %cst = arith.constant dense<0.000000e+00> : vector<32x128xf32>
    %2 = tpu.matmul %0, %1, %cst {dimension_numbers = #tpu.dot_dimension_numbers<[1], [0], [0], [1], [0, 0, 1, 1], [], []>} : vector<32x1152xbf16>, vector<1152x128xbf16>, vector<32x128xf32> -> vector<32x128xf32>
    %c0_3 = arith.constant 0 : index
    %c0_4 = arith.constant 0 : index
    %3 = vector.load %arg5[%c0_3, %c0_4] : memref<1x128xf32, #tpu.memory_space<vmem>>, vector<1x128xf32>
    %4 = vector.broadcast %3 : vector<1x128xf32> to vector<32x128xf32>
    %5 = arith.mulf %2, %4 : vector<32x128xf32>
    %c0_5 = arith.constant 0 : index
    %c0_6 = arith.constant 0 : index
    %6 = vector.load %arg6[%c0_5, %c0_6] : memref<1x128xf32, #tpu.memory_space<vmem>>, vector<1x128xf32>
    %7 = vector.broadcast %6 : vector<1x128xf32> to vector<32x128xf32>
    %8 = arith.addf %5, %7 : vector<32x128xf32>
    %cst_7 = arith.constant 0.000000e+00 : f32
    %9 = vector.broadcast %cst_7 : f32 to vector<32x128xf32>
    %10 = arith.maximumf %8, %9 : vector<32x128xf32>
    %c0_8 = arith.constant 0 : index
    %c0_9 = arith.constant 0 : index
    %11 = vector.load %arg7[%c0_8, %c0_9] : memref<32x128xf32, #tpu.memory_space<vmem>>, vector<32x128xf32>
    tpu.vector_store %arg7[%c0_8, %c0_9], %10 {strides = array<i32>} : memref<32x128xf32, #tpu.memory_space<vmem>>, vector<32x128xf32>,
    return
  }
  func.func @transform_0(%arg0: i32, %arg1: i32, %arg2: i32) -> (i32, i32) {
    %c0_i32 = arith.constant 0 : i32
    return %arg0, %arg2 : i32, i32
  }
  func.func @transform_1(%arg0: i32, %arg1: i32, %arg2: i32) -> (i32, i32) {
    %c0_i32 = arith.constant 0 : i32
    return %arg2, %arg1 : i32, i32
  }
  func.func @transform_2(%arg0: i32, %arg1: i32, %arg2: i32) -> (i32, i32) {
    %c0_i32 = arith.constant 0 : i32
    %c0_i32_0 = arith.constant 0 : i32
    return %c0_i32, %arg1 : i32, i32
  }
  func.func @transform_3(%arg0: i32, %arg1: i32, %arg2: i32) -> (i32, i32) {
    %c0_i32 = arith.constant 0 : i32
    %c0_i32_0 = arith.constant 0 : i32
    return %c0_i32, %arg1 : i32, i32
  }
  func.func @transform_4(%arg0: i32, %arg1: i32, %arg2: i32) -> (i32, i32) {
    %c0_i32 = arith.constant 0 : i32
    return %arg0, %arg1 : i32, i32
  }
}

module attributes {stable_mosaic.version = 11 : i64} {
  func.func @_mm_fused_kernel(%arg0: i32, %arg1: i32, %arg2: i32, %arg3: memref<32x1152xbf16, #tpu.memory_space<vmem>>, %arg4: memref<1152x128xbf16, #tpu.memory_space<vmem>>, %arg5: memref<1x128xf32, #tpu.memory_space<vmem>>, %arg6: memref<1x128xf32, #tpu.memory_space<vmem>>, %arg7: memref<32x128xf32, #tpu.memory_space<vmem>>, %arg8: memref<32x128xf32, #tpu.memory_space<vmem>>) attributes {dimension_semantics = [#tpu.dimension_semantics<parallel>, #tpu.dimension_semantics<parallel>, #tpu.dimension_semantics<arbitrary>], iteration_bounds = array<i64: 1, 1, 1>, scalar_prefetch = 0 : i64, scratch_operands = 0 : i64, tpu.core_type = #tpu.core_type<tc>, window_params = [{transform_indices = @transform_0, window_bounds = array<i64: 32, 1152>}, {transform_indices = @transform_1, window_bounds = array<i64: 1152, 128>}, {transform_indices = @transform_2, window_bounds = array<i64: 1, 128>}, {transform_indices = @transform_3, window_bounds = array<i64: 1, 128>}, {transform_indices = @transform_4, window_bounds = array<i64: 32, 128>}, {transform_indices = @transform_5, window_bounds = array<i64: 32, 128>}]} {
    %c0 = arith.constant 0 : index
    %c0_0 = arith.constant 0 : index
    %0 = vector.load %arg3[%c0, %c0_0] : memref<32x1152xbf16, #tpu.memory_space<vmem>>, vector<32x1152xbf16>
    %c0_1 = arith.constant 0 : index
    %c0_2 = arith.constant 0 : index
    %1 = vector.load %arg4[%c0_1, %c0_2] : memref<1152x128xbf16, #tpu.memory_space<vmem>>, vector<1152x128xbf16>
    %cst = arith.constant dense<0.000000e+00> : vector<32x128xf32>
    %2 = tpu.matmul %0, %1, %cst {dimension_numbers = #tpu.dot_dimension_numbers<[1], [0], [0], [1], [0, 0, 1, 1], [], []>} : vector<32x1152xbf16>, vector<1152x128xbf16>, vector<32x128xf32> -> vector<32x128xf32>
    %c0_3 = arith.constant 0 : index
    %c0_4 = arith.constant 0 : index
    %3 = vector.load %arg5[%c0_3, %c0_4] : memref<1x128xf32, #tpu.memory_space<vmem>>, vector<1x128xf32>
    %4 = vector.broadcast %3 : vector<1x128xf32> to vector<32x128xf32>
    %5 = arith.mulf %2, %4 : vector<32x128xf32>
    %c0_5 = arith.constant 0 : index
    %c0_6 = arith.constant 0 : index
    %6 = vector.load %arg6[%c0_5, %c0_6] : memref<1x128xf32, #tpu.memory_space<vmem>>, vector<1x128xf32>
    %7 = vector.broadcast %6 : vector<1x128xf32> to vector<32x128xf32>
    %8 = arith.addf %5, %7 : vector<32x128xf32>
    %c0_7 = arith.constant 0 : index
    %c0_8 = arith.constant 0 : index
    %9 = vector.load %arg7[%c0_7, %c0_8] : memref<32x128xf32, #tpu.memory_space<vmem>>, vector<32x128xf32>
    %10 = arith.addf %8, %9 : vector<32x128xf32>
    %cst_9 = arith.constant 0.000000e+00 : f32
    %11 = vector.broadcast %cst_9 : f32 to vector<32x128xf32>
    %12 = arith.maximumf %10, %11 : vector<32x128xf32>
    %c0_10 = arith.constant 0 : index
    %c0_11 = arith.constant 0 : index
    %13 = vector.load %arg8[%c0_10, %c0_11] : memref<32x128xf32, #tpu.memory_space<vmem>>, vector<32x128xf32>
    tpu.vector_store %arg8[%c0_10, %c0_11], %12 {strides = array<i32>} : memref<32x128xf32, #tpu.memory_space<vmem>>, vector<32x128xf32>,
    return
  }
  func.func @transform_0(%arg0: i32, %arg1: i32, %arg2: i32) -> (i32, i32) {
    %c0_i32 = arith.constant 0 : i32
    return %arg0, %arg2 : i32, i32
  }
  func.func @transform_1(%arg0: i32, %arg1: i32, %arg2: i32) -> (i32, i32) {
    %c0_i32 = arith.constant 0 : i32
    return %arg2, %arg1 : i32, i32
  }
  func.func @transform_2(%arg0: i32, %arg1: i32, %arg2: i32) -> (i32, i32) {
    %c0_i32 = arith.constant 0 : i32
    %c0_i32_0 = arith.constant 0 : i32
    return %c0_i32, %arg1 : i32, i32
  }
  func.func @transform_3(%arg0: i32, %arg1: i32, %arg2: i32) -> (i32, i32) {
    %c0_i32 = arith.constant 0 : i32
    %c0_i32_0 = arith.constant 0 : i32
    return %c0_i32, %arg1 : i32, i32
  }
  func.func @transform_4(%arg0: i32, %arg1: i32, %arg2: i32) -> (i32, i32) {
    %c0_i32 = arith.constant 0 : i32
    return %arg0, %arg1 : i32, i32
  }
  func.func @transform_5(%arg0: i32, %arg1: i32, %arg2: i32) -> (i32, i32) {
    %c0_i32 = arith.constant 0 : i32
    return %arg0, %arg1 : i32, i32
  }
}

module attributes {stable_mosaic.version = 11 : i64} {
  func.func @_mm_fused_kernel(%arg0: i32, %arg1: i32, %arg2: i32, %arg3: memref<32x1152xbf16, #tpu.memory_space<vmem>>, %arg4: memref<1152x128xbf16, #tpu.memory_space<vmem>>, %arg5: memref<1x128xf32, #tpu.memory_space<vmem>>, %arg6: memref<1x128xf32, #tpu.memory_space<vmem>>, %arg7: memref<32x128xf32, #tpu.memory_space<vmem>>, %arg8: memref<32x128xf32, #tpu.memory_space<vmem>>) attributes {dimension_semantics = [#tpu.dimension_semantics<parallel>, #tpu.dimension_semantics<parallel>, #tpu.dimension_semantics<arbitrary>], iteration_bounds = array<i64: 1, 1, 1>, scalar_prefetch = 0 : i64, scratch_operands = 0 : i64, tpu.core_type = #tpu.core_type<tc>, window_params = [{transform_indices = @transform_0, window_bounds = array<i64: 32, 1152>}, {transform_indices = @transform_1, window_bounds = array<i64: 1152, 128>}, {transform_indices = @transform_2, window_bounds = array<i64: 1, 128>}, {transform_indices = @transform_3, window_bounds = array<i64: 1, 128>}, {transform_indices = @transform_4, window_bounds = array<i64: 32, 128>}, {transform_indices = @transform_5, window_bounds = array<i64: 32, 128>}]} {
    %c0 = arith.constant 0 : index
    %c0_0 = arith.constant 0 : index
    %0 = vector.load %arg3[%c0, %c0_0] : memref<32x1152xbf16, #tpu.memory_space<vmem>>, vector<32x1152xbf16>
    %c0_1 = arith.constant 0 : index
    %c0_2 = arith.constant 0 : index
    %1 = vector.load %arg4[%c0_1, %c0_2] : memref<1152x128xbf16, #tpu.memory_space<vmem>>, vector<1152x128xbf16>
    %cst = arith.constant dense<0.000000e+00> : vector<32x128xf32>
    %2 = tpu.matmul %0, %1, %cst {dimension_numbers = #tpu.dot_dimension_numbers<[1], [0], [0], [1], [0, 0, 1, 1], [], []>} : vector<32x1152xbf16>, vector<1152x128xbf16>, vector<32x128xf32> -> vector<32x128xf32>
    %c0_3 = arith.constant 0 : index
    %c0_4 = arith.constant 0 : index
    %3 = vector.load %arg5[%c0_3, %c0_4] : memref<1x128xf32, #tpu.memory_space<vmem>>, vector<1x128xf32>
    %4 = vector.broadcast %3 : vector<1x128xf32> to vector<32x128xf32>
    %5 = arith.mulf %2, %4 : vector<32x128xf32>
    %c0_5 = arith.constant 0 : index
    %c0_6 = arith.constant 0 : index
    %6 = vector.load %arg6[%c0_5, %c0_6] : memref<1x128xf32, #tpu.memory_space<vmem>>, vector<1x128xf32>
    %7 = vector.broadcast %6 : vector<1x128xf32> to vector<32x128xf32>
    %8 = arith.addf %5, %7 : vector<32x128xf32>
    %c0_7 = arith.constant 0 : index
    %c0_8 = arith.constant 0 : index
    %9 = vector.load %arg7[%c0_7, %c0_8] : memref<32x128xf32, #tpu.memory_space<vmem>>, vector<32x128xf32>
    %10 = arith.addf %8, %9 : vector<32x128xf32>
    %cst_9 = arith.constant 0.000000e+00 : f32
    %11 = vector.broadcast %cst_9 : f32 to vector<32x128xf32>
    %12 = arith.maximumf %10, %11 : vector<32x128xf32>
    %c0_10 = arith.constant 0 : index
    %c0_11 = arith.constant 0 : index
    %13 = vector.load %arg8[%c0_10, %c0_11] : memref<32x128xf32, #tpu.memory_space<vmem>>, vector<32x128xf32>
    tpu.vector_store %arg8[%c0_10, %c0_11], %12 {strides = array<i32>} : memref<32x128xf32, #tpu.memory_space<vmem>>, vector<32x128xf32>,
    return
  }
  func.func @transform_0(%arg0: i32, %arg1: i32, %arg2: i32) -> (i32, i32) {
    %c0_i32 = arith.constant 0 : i32
    return %arg0, %arg2 : i32, i32
  }
  func.func @transform_1(%arg0: i32, %arg1: i32, %arg2: i32) -> (i32, i32) {
    %c0_i32 = arith.constant 0 : i32
    return %arg2, %arg1 : i32, i32
  }
  func.func @transform_2(%arg0: i32, %arg1: i32, %arg2: i32) -> (i32, i32) {
    %c0_i32 = arith.constant 0 : i32
    %c0_i32_0 = arith.constant 0 : i32
    return %c0_i32, %arg1 : i32, i32
  }
  func.func @transform_3(%arg0: i32, %arg1: i32, %arg2: i32) -> (i32, i32) {
    %c0_i32 = arith.constant 0 : i32
    %c0_i32_0 = arith.constant 0 : i32
    return %c0_i32, %arg1 : i32, i32
  }
  func.func @transform_4(%arg0: i32, %arg1: i32, %arg2: i32) -> (i32, i32) {
    %c0_i32 = arith.constant 0 : i32
    return %arg0, %arg1 : i32, i32
  }
  func.func @transform_5(%arg0: i32, %arg1: i32, %arg2: i32) -> (i32, i32) {
    %c0_i32 = arith.constant 0 : i32
    return %arg0, %arg1 : i32, i32
  }
}

module attributes {stable_mosaic.version = 11 : i64} {
  func.func @_mm_fused_kernel(%arg0: i32, %arg1: i32, %arg2: i32, %arg3: memref<32x64xbf16, #tpu.memory_space<vmem>>, %arg4: memref<64x128xbf16, #tpu.memory_space<vmem>>, %arg5: memref<1x128xf32, #tpu.memory_space<vmem>>, %arg6: memref<1x128xf32, #tpu.memory_space<vmem>>, %arg7: memref<32x128xf32, #tpu.memory_space<vmem>>) attributes {dimension_semantics = [#tpu.dimension_semantics<parallel>, #tpu.dimension_semantics<parallel>, #tpu.dimension_semantics<arbitrary>], iteration_bounds = array<i64: 1, 1, 1>, scalar_prefetch = 0 : i64, scratch_operands = 0 : i64, tpu.core_type = #tpu.core_type<tc>, window_params = [{transform_indices = @transform_0, window_bounds = array<i64: 32, 64>}, {transform_indices = @transform_1, window_bounds = array<i64: 64, 128>}, {transform_indices = @transform_2, window_bounds = array<i64: 1, 128>}, {transform_indices = @transform_3, window_bounds = array<i64: 1, 128>}, {transform_indices = @transform_4, window_bounds = array<i64: 32, 128>}]} {
    %c0 = arith.constant 0 : index
    %c0_0 = arith.constant 0 : index
    %0 = vector.load %arg3[%c0, %c0_0] : memref<32x64xbf16, #tpu.memory_space<vmem>>, vector<32x64xbf16>
    %c0_1 = arith.constant 0 : index
    %c0_2 = arith.constant 0 : index
    %1 = vector.load %arg4[%c0_1, %c0_2] : memref<64x128xbf16, #tpu.memory_space<vmem>>, vector<64x128xbf16>
    %cst = arith.constant dense<0.000000e+00> : vector<32x128xf32>
    %2 = tpu.matmul %0, %1, %cst {dimension_numbers = #tpu.dot_dimension_numbers<[1], [0], [0], [1], [0, 0, 1, 1], [], []>} : vector<32x64xbf16>, vector<64x128xbf16>, vector<32x128xf32> -> vector<32x128xf32>
    %c0_3 = arith.constant 0 : index
    %c0_4 = arith.constant 0 : index
    %3 = vector.load %arg5[%c0_3, %c0_4] : memref<1x128xf32, #tpu.memory_space<vmem>>, vector<1x128xf32>
    %4 = vector.broadcast %3 : vector<1x128xf32> to vector<32x128xf32>
    %5 = arith.mulf %2, %4 : vector<32x128xf32>
    %c0_5 = arith.constant 0 : index
    %c0_6 = arith.constant 0 : index
    %6 = vector.load %arg6[%c0_5, %c0_6] : memref<1x128xf32, #tpu.memory_space<vmem>>, vector<1x128xf32>
    %7 = vector.broadcast %6 : vector<1x128xf32> to vector<32x128xf32>
    %8 = arith.addf %5, %7 : vector<32x128xf32>
    %c0_7 = arith.constant 0 : index
    %c0_8 = arith.constant 0 : index
    %9 = vector.load %arg7[%c0_7, %c0_8] : memref<32x128xf32, #tpu.memory_space<vmem>>, vector<32x128xf32>
    tpu.vector_store %arg7[%c0_7, %c0_8], %8 {strides = array<i32>} : memref<32x128xf32, #tpu.memory_space<vmem>>, vector<32x128xf32>,
    return
  }
  func.func @transform_0(%arg0: i32, %arg1: i32, %arg2: i32) -> (i32, i32) {
    %c0_i32 = arith.constant 0 : i32
    return %arg0, %arg2 : i32, i32
  }
  func.func @transform_1(%arg0: i32, %arg1: i32, %arg2: i32) -> (i32, i32) {
    %c0_i32 = arith.constant 0 : i32
    return %arg2, %arg1 : i32, i32
  }
  func.func @transform_2(%arg0: i32, %arg1: i32, %arg2: i32) -> (i32, i32) {
    %c0_i32 = arith.constant 0 : i32
    %c0_i32_0 = arith.constant 0 : i32
    return %c0_i32, %arg1 : i32, i32
  }
  func.func @transform_3(%arg0: i32, %arg1: i32, %arg2: i32) -> (i32, i32) {
    %c0_i32 = arith.constant 0 : i32
    %c0_i32_0 = arith.constant 0 : i32
    return %c0_i32, %arg1 : i32, i32
  }
  func.func @transform_4(%arg0: i32, %arg1: i32, %arg2: i32) -> (i32, i32) {
    %c0_i32 = arith.constant 0 : i32
    return %arg0, %arg1 : i32, i32
  }
}

</mosaic_0001>

<llo_original>
// kernel: resnet_forward.10
$region0: #{resnet_forward.10}
  #allocation0 [shape = 'u32[]', space=smem, size = 0x4, offset = 0x4, fixed_abs, tag = 'smem constant byte address 0x4 - core index']
  #allocation1 [shape = 'u32[72,128]{1,0:T(1,128)}', space=vmem, size = 0x9000, scoped, tag = 'internal scratch']
  %s0 = inlined_call_operand.vmem [shape: bf16[512,160], index: 0, kind: input, shape index: {}]
  %s1 = inlined_call_operand.vmem [shape: bf16[160,64], index: 1, kind: input, shape index: {}]
  %s2 = inlined_call_operand.vmem [shape: f32[512,64], index: 2, kind: output, shape index: {}]
  %s3 = sld [smem:[#allocation0]]
  $region41: #{resnet_forward.10} parent=0
    _
  %s5 = ssub.s32 1, %s3
  %s6 = scalar_select 0, %s5, %s3
  loop: start=0, step=1, limit=4
  $region2: #{resnet_forward.10} parent=0 // loop_pre_header
    _
  $region3: #{resnet_forward.10} parent=0 // loop_header
    %s8 = sphi 0, %s12
    %p9 = scmp.ge.s32.totalorder %s8, 4
    %s15 = sphi 0, %s34
    %s16 = sphi 0, %s30
    %s17 = sphi 0, %s26
    %s18 = sphi 0, %s15
    %s19 = sphi 0, %s16
    %s20 = sphi 0, %s17
    %s21 = sphi 0, %s18
    %s22 = sphi 0, %s19
    %s23 = sphi 0, %s20
    %s39 = sphi 0, %s41
    %s42 = sphi 0, %s39
    %s43 = sphi 0, %s42
    %s59 = sphi 0, %s43
    %s67 = sphi 0, %s69
    %s70 = sphi 0, %s67
    %s71 = sphi 0, %s70
    %s87 = sphi 0, %s71
    %s95 = sphi 0, %s97
    %s98 = sphi 0, %s95
    %s99 = sphi 0, %s98
    %s115 = sphi 0, %s99
  $region4: #{resnet_forward.10} parent=0 // loop_header_branch
    %11 = sbr.rel (%p9) target = $region8
  $region5: #{resnet_forward.10} parent=0 // loop_body
    %s13 = ssub.s32 %s8, 1
    %s14 = ssub.s32 %s8, 2
    %s24 = sadd.s32 1, %s17
    %p25 = scmp.ge.s32.totalorder %s24, 1
    %s26 = scalar_select %p25, 0, %s24
    %s27 = sadd.s32 1, %s16
    %s28 = scalar_select %p25, %s27, %s16
    %p29 = scmp.ge.s32.totalorder %s28, 1
    %s30 = scalar_select %p29, 0, %s28
    %s31 = sadd.s32 1, %s15
    %s32 = scalar_select %p29, %s31, %s15
    %p33 = scmp.ge.s32.totalorder %s32, 2
    %s34 = scalar_select %p33, 0, %s32
    %s35 = ssub.s32 %s15, %s34
    %s36 = ssub.s32 %s17, %s26
    %s37 = sor.u32 %s35, %s36
    %p38 = scmp.eq.s32.totalorder %s37, 0
    %s40 = sadd.s32 %s39, 1
    %s41 = scalar_select %p38, %s39, %s40
    %p44 = pneg %p38
    %p45 = scmp.eq.s32.totalorder %s8, 1
    %p46 = por %p44, %p45
    %p47 = scmp.ne.s32.totalorder %s39, %s42
    %p48 = scmp.eq.s32.totalorder %s8, 0
    %p49 = por %p47, %p48
    %p50 = scmp.ne.s32.totalorder %s39, %s42
    %p51 = scmp.eq.s32.totalorder %s13, 1
    %p52 = por %p50, %p51
    %p53 = scmp.ne.s32.totalorder %s42, %s43
    %p54 = scmp.eq.s32.totalorder %s13, 0
    %p55 = por %p53, %p54
    %p56 = scmp.ne.s32.totalorder %s42, %s43
    %p57 = scmp.eq.s32.totalorder %s14, 1
    %p58 = por %p56, %p57
    %p60 = scmp.ne.s32.totalorder %s43, %s59
    %p61 = scmp.eq.s32.totalorder %s14, 0
    %p62 = por %p60, %p61
    %s63 = ssub.s32 %s17, %s26
    %s64 = ssub.s32 %s16, %s30
    %s65 = sor.u32 %s63, %s64
    %p66 = scmp.eq.s32.totalorder %s65, 0
    %s68 = sadd.s32 %s67, 1
    %s69 = scalar_select %p66, %s67, %s68
    %p72 = pneg %p66
    %p73 = scmp.eq.s32.totalorder %s8, 1
    %p74 = por %p72, %p73
    %p75 = scmp.ne.s32.totalorder %s67, %s70
    %p76 = scmp.eq.s32.totalorder %s8, 0
    %p77 = por %p75, %p76
    %p78 = scmp.ne.s32.totalorder %s67, %s70
    %p79 = scmp.eq.s32.totalorder %s13, 1
    %p80 = por %p78, %p79
    %p81 = scmp.ne.s32.totalorder %s70, %s71
    %p82 = scmp.eq.s32.totalorder %s13, 0
    %p83 = por %p81, %p82
    %p84 = scmp.ne.s32.totalorder %s70, %s71
    %p85 = scmp.eq.s32.totalorder %s14, 1
    %p86 = por %p84, %p85
    %p88 = scmp.ne.s32.totalorder %s71, %s87
    %p89 = scmp.eq.s32.totalorder %s14, 0
    %p90 = por %p88, %p89
    %s91 = ssub.s32 %s15, %s34
    %s92 = ssub.s32 %s16, %s30
    %s93 = sor.u32 %s91, %s92
    %p94 = scmp.eq.s32.totalorder %s93, 0
    %s96 = sadd.s32 %s95, 1
    %s97 = scalar_select %p94, %s95, %s96
    %p100 = pneg %p94
    %p101 = scmp.eq.s32.totalorder %s8, 1
    %p102 = por %p100, %p101
    %p103 = scmp.ne.s32.totalorder %s95, %s98
    %p104 = scmp.eq.s32.totalorder %s8, 0
    %p105 = por %p103, %p104
    %p106 = scmp.ne.s32.totalorder %s95, %s98
    %p107 = scmp.eq.s32.totalorder %s13, 1
    %p108 = por %p106, %p107
    %p109 = scmp.ne.s32.totalorder %s98, %s99
    %p110 = scmp.eq.s32.totalorder %s13, 0
    %p111 = por %p109, %p110
    %p112 = scmp.ne.s32.totalorder %s98, %s99
    %p113 = scmp.eq.s32.totalorder %s14, 1
    %p114 = por %p112, %p113
    %p116 = scmp.ne.s32.totalorder %s99, %s115
    %p117 = scmp.eq.s32.totalorder %s14, 0
    %p118 = por %p116, %p117
    %p119 = scmp.le.s32.totalorder 1, %s8
    %p120 = scmp.lt.s32.totalorder %s8, 3
    %p121 = pnand %p119, %p120
    %p122 = pneg %p121
    // Predicated region
    $region9: #{resnet_forward.10} parent=5 // pred_check
      _
    $region10: #{resnet_forward.10} parent=5 // pred_check_branch
      %124 = sbr.rel (%p121) target = $region12
    $region11: #{resnet_forward.10} parent=5 // pred_region
      %s125 = ssub.s32 %s8, 1
      // Predicated region
      $region13: #{resnet_forward.10} parent=11 // pred_check
        %p126 = pneg %p83
      $region14: #{resnet_forward.10} parent=11 // pred_check_branch
        %128 = sbr.rel (%p126) target = $region16
      $region15: #{resnet_forward.10} parent=11 // pred_region
        %s129 = smul.u32 20, %s20
        %p130 = scmp.lt.s32.totalorder %s129, 19
        %s131 = scalar_select %p130, %s129, 19
        %p132 = scmp.lt.s32.totalorder %s19, 0
        %s133 = scalar_select %p132, %s19, 0
        %s134 = sadd.s32 %s133, %s131
        %s135 = smul.addr %s134, 4
        %s136 = scalar_lea.vmem %s1, %s135
        %s137 = smul.u32 20, %s20
      $region16: #{resnet_forward.10} parent=11 // pred_fallthru
        _
    $region12: #{resnet_forward.10} parent=5 // pred_fallthru
      _
    %p138 = scmp.lt.s32.totalorder %s8, 2
    // Predicated region
    $region17: #{resnet_forward.10} parent=5 // pred_check
      %p139 = pneg %p138
    $region18: #{resnet_forward.10} parent=5 // pred_check_branch
      %141 = sbr.rel (%p139) target = $region20
    $region19: #{resnet_forward.10} parent=5 // pred_region
      // Predicated region
      $region21: #{resnet_forward.10} parent=19 // pred_check
        %p142 = pneg %p49
      $region22: #{resnet_forward.10} parent=19 // pred_check_branch
        %144 = sbr.rel (%p142) target = $region24
      $region23: #{resnet_forward.10} parent=19 // pred_region
        %s145 = smul.u32 32, %s15
        %s146 = smul.u32 2, %s17
        %p147 = scmp.lt.s32.totalorder %s145, 63
        %s148 = scalar_select %p147, %s145, 63
        %p149 = scmp.lt.s32.totalorder %s146, 1
        %s150 = scalar_select %p149, %s146, 1
        %s151 = smul.addr %s148, 2
        %s152 = sadd.s32 %s150, %s151
        %s153 = smul.addr %s152, 4
        %s154 = scalar_lea.vmem %s0, %s153
        %s155 = smul.u32 32, %s15
        %s156 = smul.u32 2, %s17
      $region24: #{resnet_forward.10} parent=19 // pred_fallthru
        _
    $region20: #{resnet_forward.10} parent=5 // pred_fallthru
      _
    %p157 = scmp.le.s32.totalorder 1, %s8
    %p158 = scmp.lt.s32.totalorder %s8, 3
    %p159 = pnand %p157, %p158
    %p160 = pneg %p159
    // Predicated region
    $region25: #{resnet_forward.10} parent=5 // pred_check
      _
    $region26: #{resnet_forward.10} parent=5 // pred_check_branch
      %162 = sbr.rel (%p159) target = $region28
    $region27: #{resnet_forward.10} parent=5 // pred_region
      %s163 = ssub.s32 %s8, 1
      %s164 = smul.u32 32, %s18
      %s165 = smul.u32 2, %s20
      %p166 = scmp.lt.s32.totalorder %s164, 63
      %s167 = scalar_select %p166, %s164, 63
      %p168 = scmp.lt.s32.totalorder %s165, 1
      %s169 = scalar_select %p168, %s165, 1
      %s170 = smul.addr %s167, 2
      %s171 = sadd.s32 %s169, %s170
      %s172 = smul.addr %s171, 4
      %s173 = scalar_lea.vmem %s0, %s172
      %p174 = pneg %p55
      %p175 = pneg %p52
      %s176 = smul.u32 20, %s20
      %p177 = scmp.lt.s32.totalorder %s176, 19
      %s178 = scalar_select %p177, %s176, 19
      %p179 = scmp.lt.s32.totalorder %s19, 0
      %s180 = scalar_select %p179, %s19, 0
      %s181 = sadd.s32 %s180, %s178
      %s182 = smul.addr %s181, 4
      %s183 = scalar_lea.vmem %s1, %s182
      %p184 = pneg %p83
      %p185 = pneg %p80
      %p186 = pneg %p111
      %p187 = pneg %p108
      %s188 = smul.u32 32, %s18
      %p189 = scmp.lt.s32.totalorder %s188, 63
      %s190 = scalar_select %p189, %s188, 63
      %p191 = scmp.lt.s32.totalorder %s19, 0
      %s192 = scalar_select %p191, %s19, 0
      %s193 = sadd.s32 %s192, %s190
      %s194 = smul.addr %s193, 8
      %s195 = scalar_lea.vmem %s2, %s194
      %s196 = smul.u32 32, %s18
      %s197 = smul.u32 2, %s20
      %p198 = scmp.lt.s32.totalorder %s196, 63
      %s199 = scalar_select %p198, %s196, 63
      %p200 = scmp.lt.s32.totalorder %s197, 1
      %s201 = scalar_select %p200, %s197, 1
      %s202 = smul.addr %s199, 2
      %s203 = sadd.s32 %s201, %s202
      %s204 = smul.addr %s203, 4
      %s205 = scalar_lea.vmem %s0, %s204
      %s206 = smul.u32 32, %s18
      %s207 = smul.u32 2, %s20
      %s208 = smul.u32 20, %s20
      %p209 = scmp.lt.s32.totalorder %s208, 19
      %s210 = scalar_select %p209, %s208, 19
      %p211 = scmp.lt.s32.totalorder %s19, 0
      %s212 = scalar_select %p211, %s19, 0
      %s213 = sadd.s32 %s212, %s210
      %s214 = smul.addr %s213, 4
      %s215 = scalar_lea.vmem %s1, %s214
      %s216 = smul.u32 20, %s20
      %s217 = smul.u32 32, %s18
      %p218 = scmp.lt.s32.totalorder %s217, 63
      %s219 = scalar_select %p218, %s217, 63
      %p220 = scmp.lt.s32.totalorder %s19, 0
      %s221 = scalar_select %p220, %s19, 0
      %s222 = sadd.s32 %s221, %s219
      %s223 = smul.addr %s222, 8
      %s224 = scalar_lea.vmem %s2, %s223
      %s225 = smul.u32 32, %s18
      %v227 = vld [vmem:[%s205] sm:$0xff]
      %v228 = vld [vmem:[%s205 + $0x8] sm:$0xff]
      %v229 = vld [vmem:[%s205 + $0x10] sm:$0xff]
      %v230 = vld [vmem:[%s205 + $0x18] sm:$0xff]
      %v231 = vld [vmem:[%s205 + $0x20] sm:$0xff]
      %v232 = vld [vmem:[%s205 + $0x28] sm:$0xff]
      %v233 = vld [vmem:[%s205 + $0x30] sm:$0xff]
      %v234 = vld [vmem:[%s205 + $0x38] sm:$0xff]
      %v235 = vld [vmem:[%s205 + $0x40] sm:$0xff]
      %v236 = vld [vmem:[%s205 + $0x48] sm:$0xff]
      %v237 = vld [vmem:[%s205 + $0x50] sm:$0xff]
      %v238 = vld [vmem:[%s205 + $0x58] sm:$0xff]
      %v239 = vld [vmem:[%s205 + $0x60] sm:$0xff]
      %v240 = vld [vmem:[%s205 + $0x68] sm:$0xff]
      %v241 = vld [vmem:[%s205 + $0x70] sm:$0xff]
      %v242 = vld [vmem:[%s205 + $0x78] sm:$0xff]
      %v243 = vld [vmem:[%s205 + $0x80] sm:$0xff]
      %v244 = vld [vmem:[%s205 + $0x88] sm:$0xff]
      %v245 = vld [vmem:[%s205 + $0x90] sm:$0xff]
      %v246 = vld [vmem:[%s205 + $0x98] sm:$0xff]
      %v247 = vld [vmem:[%s205 + $0xa0] sm:$0xff]
      %v248 = vld [vmem:[%s205 + $0xa8] sm:$0xff]
      %v249 = vld [vmem:[%s205 + $0xb0] sm:$0xff]
      %v250 = vld [vmem:[%s205 + $0xb8] sm:$0xff]
      %v251 = vld [vmem:[%s205 + $0xc0] sm:$0xff]
      %v252 = vld [vmem:[%s205 + $0xc8] sm:$0xff]
      %v253 = vld [vmem:[%s205 + $0xd0] sm:$0xff]
      %v254 = vld [vmem:[%s205 + $0xd8] sm:$0xff]
      %v255 = vld [vmem:[%s205 + $0xe0] sm:$0xff]
      %v256 = vld [vmem:[%s205 + $0xe8] sm:$0xff]
      %v257 = vld [vmem:[%s205 + $0xf0] sm:$0xff]
      %v258 = vld [vmem:[%s205 + $0xf8] sm:$0xff]
      %v259 = vld [vmem:[%s215] sm:$0xf]
      %v260 = vld [vmem:[%s215 + $0x4] sm:$0xf]
      %v261 = vld [vmem:[%s215 + $0x8] sm:$0xf]
      %v262 = vld [vmem:[%s215 + $0xc] sm:$0xf]
      %v263 = vld [vmem:[%s215 + $0x10] sm:$0xf]
      %v264 = vld [vmem:[%s215 + $0x14] sm:$0xf]
      %v265 = vld [vmem:[%s215 + $0x18] sm:$0xf]
      %v266 = vld [vmem:[%s215 + $0x1c] sm:$0xf]
      %v267 = vld [vmem:[%s215 + $0x20] sm:$0xf]
      %v268 = vld [vmem:[%s215 + $0x24] sm:$0xf]
      %v269 = vld [vmem:[%s215 + $0x28] sm:$0xf]
      %v270 = vld [vmem:[%s215 + $0x2c] sm:$0xf]
      %v271 = vld [vmem:[%s215 + $0x30] sm:$0xf]
      %v272 = vld [vmem:[%s215 + $0x34] sm:$0xf]
      %v273 = vld [vmem:[%s215 + $0x38] sm:$0xf]
      %v274 = vld [vmem:[%s215 + $0x3c] sm:$0xf]
      %v275 = vld [vmem:[%s215 + $0x40] sm:$0xf]
      %v276 = vld [vmem:[%s215 + $0x44] sm:$0xf]
      %v277 = vld [vmem:[%s215 + $0x48] sm:$0xf]
      %v278 = vld [vmem:[%s215 + $0x4c] sm:$0xf]
      %v311 = vunpack.c.l.b16 %v227
      %v312 = vunpack.c.h.b16 %v227
      %v313 = vunpack.c.l.b16 %v228
      %v314 = vunpack.c.h.b16 %v228
      %v315 = vunpack.c.l.b16 %v229
      %v316 = vunpack.c.h.b16 %v229
      %v317 = vunpack.c.l.b16 %v230
      %v318 = vunpack.c.h.b16 %v230
      %v319 = vunpack.c.l.b16 %v231
      %v320 = vunpack.c.h.b16 %v231
      %v321 = vunpack.c.l.b16 %v232
      %v322 = vunpack.c.h.b16 %v232
      %v323 = vunpack.c.l.b16 %v233
      %v324 = vunpack.c.h.b16 %v233
      %v325 = vunpack.c.l.b16 %v234
      %v326 = vunpack.c.h.b16 %v234
      %v327 = vunpack.c.l.b16 %v235
      %v328 = vunpack.c.h.b16 %v235
      %v329 = vunpack.c.l.b16 %v236
      %v330 = vunpack.c.h.b16 %v236
      %v331 = vunpack.c.l.b16 %v237
      %v332 = vunpack.c.h.b16 %v237
      %v333 = vunpack.c.l.b16 %v238
      %v334 = vunpack.c.h.b16 %v238
      %v335 = vunpack.c.l.b16 %v239
      %v336 = vunpack.c.h.b16 %v239
      %v337 = vunpack.c.l.b16 %v240
      %v338 = vunpack.c.h.b16 %v240
      %v339 = vunpack.c.l.b16 %v241
      %v340 = vunpack.c.h.b16 %v241
      %v341 = vunpack.c.l.b16 %v242
      %v342 = vunpack.c.h.b16 %v242
      %v343 = vunpack.c.l.b16 %v243
      %v344 = vunpack.c.h.b16 %v243
      %v345 = vunpack.c.l.b16 %v244
      %v346 = vunpack.c.h.b16 %v244
      %v347 = vunpack.c.l.b16 %v245
      %v348 = vunpack.c.h.b16 %v245
      %v349 = vunpack.c.l.b16 %v246
      %v350 = vunpack.c.h.b16 %v246
      %v351 = vunpack.c.l.b16 %v247
      %v352 = vunpack.c.h.b16 %v247
      %v353 = vunpack.c.l.b16 %v248
      %v354 = vunpack.c.h.b16 %v248
      %v355 = vunpack.c.l.b16 %v249
      %v356 = vunpack.c.h.b16 %v249
      %v357 = vunpack.c.l.b16 %v250
      %v358 = vunpack.c.h.b16 %v250
      %v359 = vunpack.c.l.b16 %v251
      %v360 = vunpack.c.h.b16 %v251
      %v361 = vunpack.c.l.b16 %v252
      %v362 = vunpack.c.h.b16 %v252
      %v363 = vunpack.c.l.b16 %v253
      %v364 = vunpack.c.h.b16 %v253
      %v365 = vunpack.c.l.b16 %v254
      %v366 = vunpack.c.h.b16 %v254
      %v367 = vunpack.c.l.b16 %v255
      %v368 = vunpack.c.h.b16 %v255
      %v369 = vunpack.c.l.b16 %v256
      %v370 = vunpack.c.h.b16 %v256
      %v371 = vunpack.c.l.b16 %v257
      %v372 = vunpack.c.h.b16 %v257
      %v373 = vunpack.c.l.b16 %v258
      %v374 = vunpack.c.h.b16 %v258
      %v375 = vpack.c.b16 %v313, %v311
      %v376 = vpack.c.b16 %v314, %v312
      %v377 = vpack.c.b16 %v317, %v315
      %v378 = vpack.c.b16 %v318, %v316
      %v379 = vpack.c.b16 %v321, %v319
      %v380 = vpack.c.b16 %v322, %v320
      %v381 = vpack.c.b16 %v325, %v323
      %v382 = vpack.c.b16 %v326, %v324
      %v383 = vpack.c.b16 %v329, %v327
      %v384 = vpack.c.b16 %v330, %v328
      %v385 = vpack.c.b16 %v333, %v331
      %v386 = vpack.c.b16 %v334, %v332
      %v387 = vpack.c.b16 %v337, %v335
      %v388 = vpack.c.b16 %v338, %v336
      %v389 = vpack.c.b16 %v341, %v339
      %v390 = vpack.c.b16 %v342, %v340
      %v391 = vpack.c.b16 %v345, %v343
      %v392 = vpack.c.b16 %v346, %v344
      %v393 = vpack.c.b16 %v349, %v347
      %v394 = vpack.c.b16 %v350, %v348
      %v395 = vpack.c.b16 %v353, %v351
      %v396 = vpack.c.b16 %v354, %v352
      %v397 = vpack.c.b16 %v357, %v355
      %v398 = vpack.c.b16 %v358, %v356
      %v399 = vpack.c.b16 %v361, %v359
      %v400 = vpack.c.b16 %v362, %v360
      %v401 = vpack.c.b16 %v365, %v363
      %v402 = vpack.c.b16 %v366, %v364
      %v403 = vpack.c.b16 %v369, %v367
      %v404 = vpack.c.b16 %v370, %v368
      %v405 = vpack.c.b16 %v373, %v371
      %v406 = vpack.c.b16 %v374, %v372
      %v443 = vunpack.c.l.b16 %v259
      %v444 = vunpack.c.l.b16 %v260
      %v445 = vunpack.c.l.b16 %v261
      %v446 = vunpack.c.l.b16 %v262
      %v447 = vunpack.c.l.b16 %v263
      %v448 = vunpack.c.l.b16 %v264
      %v449 = vunpack.c.l.b16 %v265
      %v450 = vunpack.c.l.b16 %v266
      %v451 = vunpack.c.l.b16 %v267
      %v452 = vunpack.c.l.b16 %v268
      %v453 = vunpack.c.l.b16 %v269
      %v454 = vunpack.c.l.b16 %v270
      %v455 = vunpack.c.l.b16 %v271
      %v456 = vunpack.c.l.b16 %v272
      %v457 = vunpack.c.l.b16 %v273
      %v458 = vunpack.c.l.b16 %v274
      %v459 = vunpack.c.l.b16 %v275
      %v460 = vunpack.c.l.b16 %v276
      %v461 = vunpack.c.l.b16 %v277
      %v462 = vunpack.c.l.b16 %v278
      %v463 = vpack.c.b16 %v444, %v443
      %v464 = vpack.c.b16 %v446, %v445
      %v465 = vpack.c.b16 %v448, %v447
      %v466 = vpack.c.b16 %v450, %v449
      %v467 = vpack.c.b16 %v452, %v451
      %v468 = vpack.c.b16 %v454, %v453
      %v469 = vpack.c.b16 %v456, %v455
      %v470 = vpack.c.b16 %v458, %v457
      %v471 = vpack.c.b16 %v460, %v459
      %v472 = vpack.c.b16 %v462, %v461
      %vm483 = vcmask 261120
      %v485 = vsel %vm483, %v376, 0
      %v488 = vsel %vm483, %v378, 0
      %v491 = vsel %vm483, %v380, 0
      %v494 = vsel %vm483, %v382, 0
      %v497 = vsel %vm483, %v384, 0
      %v500 = vsel %vm483, %v386, 0
      %v503 = vsel %vm483, %v388, 0
      %v506 = vsel %vm483, %v390, 0
      %v509 = vsel %vm483, %v392, 0
      %v512 = vsel %vm483, %v394, 0
      %v515 = vsel %vm483, %v396, 0
      %v518 = vsel %vm483, %v398, 0
      %v521 = vsel %vm483, %v400, 0
      %v524 = vsel %vm483, %v402, 0
      %v527 = vsel %vm483, %v404, 0
      %v530 = vsel %vm483, %v406, 0
      %532 = vmatpush.bf16.msra.mxu0 %v470
      %533 = vmatpush.bf16.msra.mxu0 %v469
      %534 = vmatpush.bf16.msra.mxu0 %v468
      %535 = vmatpush.bf16.msra.mxu0 %v467
      %536 = vmatpush.bf16.msra.mxu0 %v466
      %537 = vmatpush.bf16.msra.mxu0 %v465
      %538 = vmatpush.bf16.msra.mxu0 %v464
      %539 = vmatpush.bf16.msra.mxu0 %v463
      %540 = vmatmul.bf16.gmra.mxu0 %v375
      %v541 = vpop.f32.mrf.mxu0
      %v542 = vadd.f32 0.0, %v541
      %v543 = vpop.f32.mrf.mxu0
      %v544 = vadd.f32 0.0, %v543
      %545 = vmatmul.bf16.gmra.mxu0 %v377
      %v546 = vpop.f32.mrf.mxu0
      %v547 = vadd.f32 0.0, %v546
      %v548 = vpop.f32.mrf.mxu0
      %v549 = vadd.f32 0.0, %v548
      %550 = vmatmul.bf16.gmra.mxu0 %v379
      %v551 = vpop.f32.mrf.mxu0
      %v552 = vadd.f32 0.0, %v551
      %v553 = vpop.f32.mrf.mxu0
      %v554 = vadd.f32 0.0, %v553
      %555 = vmatmul.bf16.gmra.mxu0 %v381
      %v556 = vpop.f32.mrf.mxu0
      %v557 = vadd.f32 0.0, %v556
      %v558 = vpop.f32.mrf.mxu0
      %v559 = vadd.f32 0.0, %v558
      %560 = vmatmul.bf16.gmra.mxu0 %v383
      %v561 = vpop.f32.mrf.mxu0
      %v562 = vadd.f32 0.0, %v561
      %v563 = vpop.f32.mrf.mxu0
      %v564 = vadd.f32 0.0, %v563
      %565 = vmatmul.bf16.gmra.mxu0 %v385
      %v566 = vpop.f32.mrf.mxu0
      %v567 = vadd.f32 0.0, %v566
      %v568 = vpop.f32.mrf.mxu0
      %v569 = vadd.f32 0.0, %v568
      %570 = vmatmul.bf16.gmra.mxu0 %v387
      %v571 = vpop.f32.mrf.mxu0
      %v572 = vadd.f32 0.0, %v571
      %v573 = vpop.f32.mrf.mxu0
      %v574 = vadd.f32 0.0, %v573
      %575 = vmatmul.bf16.gmra.mxu0 %v389
      %v576 = vpop.f32.mrf.mxu0
      %v577 = vadd.f32 0.0, %v576
      %v578 = vpop.f32.mrf.mxu0
      %v579 = vadd.f32 0.0, %v578
      %580 = vmatmul.bf16.gmra.mxu0 %v391
      %v581 = vpop.f32.mrf.mxu0
      %v582 = vadd.f32 0.0, %v581
      %v583 = vpop.f32.mrf.mxu0
      %v584 = vadd.f32 0.0, %v583
      %585 = vmatmul.bf16.gmra.mxu0 %v393
      %v586 = vpop.f32.mrf.mxu0
      %v587 = vadd.f32 0.0, %v586
      %v588 = vpop.f32.mrf.mxu0
      %v589 = vadd.f32 0.0, %v588
      %590 = vmatmul.bf16.gmra.mxu0 %v395
      %v591 = vpop.f32.mrf.mxu0
      %v592 = vadd.f32 0.0, %v591
      %v593 = vpop.f32.mrf.mxu0
      %v594 = vadd.f32 0.0, %v593
      %595 = vmatmul.bf16.gmra.mxu0 %v397
      %v596 = vpop.f32.mrf.mxu0
      %v597 = vadd.f32 0.0, %v596
      %v598 = vpop.f32.mrf.mxu0
      %v599 = vadd.f32 0.0, %v598
      %600 = vmatmul.bf16.gmra.mxu0 %v399
      %v601 = vpop.f32.mrf.mxu0
      %v602 = vadd.f32 0.0, %v601
      %v603 = vpop.f32.mrf.mxu0
      %v604 = vadd.f32 0.0, %v603
      %605 = vmatmul.bf16.gmra.mxu0 %v401
      %v606 = vpop.f32.mrf.mxu0
      %v607 = vadd.f32 0.0, %v606
      %v608 = vpop.f32.mrf.mxu0
      %v609 = vadd.f32 0.0, %v608
      %610 = vmatmul.bf16.gmra.mxu0 %v403
      %v611 = vpop.f32.mrf.mxu0
      %v612 = vadd.f32 0.0, %v611
      %v613 = vpop.f32.mrf.mxu0
      %v614 = vadd.f32 0.0, %v613
      %615 = vmatmul.bf16.gmra.mxu0 %v405
      %v616 = vpop.f32.mrf.mxu0
      %v617 = vadd.f32 0.0, %v616
      %v618 = vpop.f32.mrf.mxu0
      %v619 = vadd.f32 0.0, %v618
      %620 = vdwg.mxu0
      %621 = vmatpush.bf16.msra.mxu0 0
      %622 = vmatpush.bf16.msra.mxu0 0
      %623 = vmatpush.bf16.msra.mxu0 0
      %624 = vmatpush.bf16.msra.mxu0 0
      %625 = vmatpush.bf16.msra.mxu0 0
      %626 = vmatpush.bf16.msra.mxu0 0
      %627 = vmatpush.bf16.msra.mxu0 %v472
      %628 = vmatpush.bf16.msra.mxu0 %v471
      %629 = vmatmul.bf16.gmra.mxu0 %v485
      %v630 = vpop.f32.mrf.mxu0
      %v631 = vadd.f32 %v542, %v630
      %v632 = vpop.f32.mrf.mxu0
      %v633 = vadd.f32 %v544, %v632
      %634 = vmatmul.bf16.gmra.mxu0 %v488
      %v635 = vpop.f32.mrf.mxu0
      %v636 = vadd.f32 %v547, %v635
      %v637 = vpop.f32.mrf.mxu0
      %v638 = vadd.f32 %v549, %v637
      %639 = vmatmul.bf16.gmra.mxu0 %v491
      %v640 = vpop.f32.mrf.mxu0
      %v641 = vadd.f32 %v552, %v640
      %v642 = vpop.f32.mrf.mxu0
      %v643 = vadd.f32 %v554, %v642
      %644 = vmatmul.bf16.gmra.mxu0 %v494
      %v645 = vpop.f32.mrf.mxu0
      %v646 = vadd.f32 %v557, %v645
      %v647 = vpop.f32.mrf.mxu0
      %v648 = vadd.f32 %v559, %v647
      %649 = vmatmul.bf16.gmra.mxu0 %v497
      %v650 = vpop.f32.mrf.mxu0
      %v651 = vadd.f32 %v562, %v650
      %v652 = vpop.f32.mrf.mxu0
      %v653 = vadd.f32 %v564, %v652
      %654 = vmatmul.bf16.gmra.mxu0 %v500
      %v655 = vpop.f32.mrf.mxu0
      %v656 = vadd.f32 %v567, %v655
      %v657 = vpop.f32.mrf.mxu0
      %v658 = vadd.f32 %v569, %v657
      %659 = vmatmul.bf16.gmra.mxu0 %v503
      %v660 = vpop.f32.mrf.mxu0
      %v661 = vadd.f32 %v572, %v660
      %v662 = vpop.f32.mrf.mxu0
      %v663 = vadd.f32 %v574, %v662
      %664 = vmatmul.bf16.gmra.mxu0 %v506
      %v665 = vpop.f32.mrf.mxu0
      %v666 = vadd.f32 %v577, %v665
      %v667 = vpop.f32.mrf.mxu0
      %v668 = vadd.f32 %v579, %v667
      %669 = vmatmul.bf16.gmra.mxu0 %v509
      %v670 = vpop.f32.mrf.mxu0
      %v671 = vadd.f32 %v582, %v670
      %v672 = vpop.f32.mrf.mxu0
      %v673 = vadd.f32 %v584, %v672
      %674 = vmatmul.bf16.gmra.mxu0 %v512
      %v675 = vpop.f32.mrf.mxu0
      %v676 = vadd.f32 %v587, %v675
      %v677 = vpop.f32.mrf.mxu0
      %v678 = vadd.f32 %v589, %v677
      %679 = vmatmul.bf16.gmra.mxu0 %v515
      %v680 = vpop.f32.mrf.mxu0
      %v681 = vadd.f32 %v592, %v680
      %v682 = vpop.f32.mrf.mxu0
      %v683 = vadd.f32 %v594, %v682
      %684 = vmatmul.bf16.gmra.mxu0 %v518
      %v685 = vpop.f32.mrf.mxu0
      %v686 = vadd.f32 %v597, %v685
      %v687 = vpop.f32.mrf.mxu0
      %v688 = vadd.f32 %v599, %v687
      %689 = vmatmul.bf16.gmra.mxu0 %v521
      %v690 = vpop.f32.mrf.mxu0
      %v691 = vadd.f32 %v602, %v690
      %v692 = vpop.f32.mrf.mxu0
      %v693 = vadd.f32 %v604, %v692
      %694 = vmatmul.bf16.gmra.mxu0 %v524
      %v695 = vpop.f32.mrf.mxu0
      %v696 = vadd.f32 %v607, %v695
      %v697 = vpop.f32.mrf.mxu0
      %v698 = vadd.f32 %v609, %v697
      %699 = vmatmul.bf16.gmra.mxu0 %v527
      %v700 = vpop.f32.mrf.mxu0
      %v701 = vadd.f32 %v612, %v700
      %v702 = vpop.f32.mrf.mxu0
      %v703 = vadd.f32 %v614, %v702
      %704 = vmatmul.bf16.gmra.mxu0 %v530
      %v705 = vpop.f32.mrf.mxu0
      %v706 = vadd.f32 %v617, %v705
      %v707 = vpop.f32.mrf.mxu0
      %v708 = vadd.f32 %v619, %v707
      %709 = vdwg.mxu0
      %vm710 = vcmask 523264
      %711 = vst.msk [vmem:[%s224] sm:$0xff] %vm710, %v631
      %712 = vst.msk [vmem:[%s224 + $0x8] sm:$0xff] %vm710, %v633
      %713 = vst.msk [vmem:[%s224 + $0x10] sm:$0xff] %vm710, %v636
      %714 = vst.msk [vmem:[%s224 + $0x18] sm:$0xff] %vm710, %v638
      %715 = vst.msk [vmem:[%s224 + $0x20] sm:$0xff] %vm710, %v641
      %716 = vst.msk [vmem:[%s224 + $0x28] sm:$0xff] %vm710, %v643
      %717 = vst.msk [vmem:[%s224 + $0x30] sm:$0xff] %vm710, %v646
      %718 = vst.msk [vmem:[%s224 + $0x38] sm:$0xff] %vm710, %v648
      %719 = vst.msk [vmem:[%s224 + $0x40] sm:$0xff] %vm710, %v651
      %720 = vst.msk [vmem:[%s224 + $0x48] sm:$0xff] %vm710, %v653
      %721 = vst.msk [vmem:[%s224 + $0x50] sm:$0xff] %vm710, %v656
      %722 = vst.msk [vmem:[%s224 + $0x58] sm:$0xff] %vm710, %v658
      %723 = vst.msk [vmem:[%s224 + $0x60] sm:$0xff] %vm710, %v661
      %724 = vst.msk [vmem:[%s224 + $0x68] sm:$0xff] %vm710, %v663
      %725 = vst.msk [vmem:[%s224 + $0x70] sm:$0xff] %vm710, %v666
      %726 = vst.msk [vmem:[%s224 + $0x78] sm:$0xff] %vm710, %v668
      %727 = vst.msk [vmem:[%s224 + $0x80] sm:$0xff] %vm710, %v671
      %728 = vst.msk [vmem:[%s224 + $0x88] sm:$0xff] %vm710, %v673
      %729 = vst.msk [vmem:[%s224 + $0x90] sm:$0xff] %vm710, %v676
      %730 = vst.msk [vmem:[%s224 + $0x98] sm:$0xff] %vm710, %v678
      %731 = vst.msk [vmem:[%s224 + $0xa0] sm:$0xff] %vm710, %v681
      %732 = vst.msk [vmem:[%s224 + $0xa8] sm:$0xff] %vm710, %v683
      %733 = vst.msk [vmem:[%s224 + $0xb0] sm:$0xff] %vm710, %v686
      %734 = vst.msk [vmem:[%s224 + $0xb8] sm:$0xff] %vm710, %v688
      %735 = vst.msk [vmem:[%s224 + $0xc0] sm:$0xff] %vm710, %v691
      %736 = vst.msk [vmem:[%s224 + $0xc8] sm:$0xff] %vm710, %v693
      %737 = vst.msk [vmem:[%s224 + $0xd0] sm:$0xff] %vm710, %v696
      %738 = vst.msk [vmem:[%s224 + $0xd8] sm:$0xff] %vm710, %v698
      %739 = vst.msk [vmem:[%s224 + $0xe0] sm:$0xff] %vm710, %v701
      %740 = vst.msk [vmem:[%s224 + $0xe8] sm:$0xff] %vm710, %v703
      %741 = vst.msk [vmem:[%s224 + $0xf0] sm:$0xff] %vm710, %v706
      %742 = vst.msk [vmem:[%s224 + $0xf8] sm:$0xff] %vm710, %v708
      %s743 = smul.u32 32, %s18
      %p744 = scmp.lt.s32.totalorder %s743, 63
      %s745 = scalar_select %p744, %s743, 63
      %p746 = scmp.lt.s32.totalorder %s19, 0
      %s747 = scalar_select %p746, %s19, 0
      %s748 = sadd.s32 %s747, %s745
      %s749 = smul.addr %s748, 8
      %s750 = scalar_lea.vmem %s2, %s749
      // Predicated region
      $region29: #{resnet_forward.10} parent=27 // pred_check
        %p751 = pneg %p108
      $region30: #{resnet_forward.10} parent=27 // pred_check_branch
        %753 = sbr.rel (%p751) target = $region32
      $region31: #{resnet_forward.10} parent=27 // pred_region
        %s754 = smul.u32 32, %s18
      $region32: #{resnet_forward.10} parent=27 // pred_fallthru
        _
    $region28: #{resnet_forward.10} parent=5 // pred_fallthru
      _
    %p755 = scmp.le.s32.totalorder 2, %s8
    // Predicated region
    $region33: #{resnet_forward.10} parent=5 // pred_check
      %p756 = pneg %p755
    $region34: #{resnet_forward.10} parent=5 // pred_check_branch
      %758 = sbr.rel (%p756) target = $region36
    $region35: #{resnet_forward.10} parent=5 // pred_region
      %s759 = ssub.s32 %s8, 2
      // Predicated region
      $region37: #{resnet_forward.10} parent=35 // pred_check
        %p760 = pneg %p114
      $region38: #{resnet_forward.10} parent=35 // pred_check_branch
        %762 = sbr.rel (%p760) target = $region40
      $region39: #{resnet_forward.10} parent=35 // pred_region
        %s763 = smul.u32 32, %s21
        %p764 = scmp.lt.s32.totalorder %s763, 63
        %s765 = scalar_select %p764, %s763, 63
        %p766 = scmp.lt.s32.totalorder %s22, 0
        %s767 = scalar_select %p766, %s22, 0
        %s768 = sadd.s32 %s767, %s765
        %s769 = smul.addr %s768, 8
        %s770 = scalar_lea.vmem %s2, %s769
      $region40: #{resnet_forward.10} parent=35 // pred_fallthru
        _
    $region36: #{resnet_forward.10} parent=5 // pred_fallthru
      _
  $region6: #{resnet_forward.10} parent=0 // loop_footer
    %s12 = sadd.s32 1, %s8
  $region7: #{resnet_forward.10} parent=0 // loop_footer_branch
    %7 = sbr.rel target = $region3
  $region8: #{resnet_forward.10} parent=0 // loop_exit
    _

// kernel: resnet_forward.11
$region0: #{resnet_forward.11}
  #allocation0 [shape = 'u32[]', space=smem, size = 0x4, offset = 0x4, fixed_abs, tag = 'smem constant byte address 0x4 - core index']
  #allocation1 [shape = 'u32[72,128]{1,0:T(1,128)}', space=vmem, size = 0x9000, scoped, tag = 'internal scratch']
  %s0 = inlined_call_operand.vmem [shape: bf16[128,576], index: 0, kind: input, shape index: {}]
  %s1 = inlined_call_operand.vmem [shape: bf16[576,64], index: 1, kind: input, shape index: {}]
  %s2 = inlined_call_operand.vmem [shape: f32[1,64], index: 2, kind: input, shape index: {}]
  %s3 = inlined_call_operand.vmem [shape: f32[1,64], index: 3, kind: input, shape index: {}]
  %s4 = inlined_call_operand.vmem [shape: f32[128,64], index: 4, kind: output, shape index: {}]
  %s5 = sld [smem:[#allocation0]]
  $region26: #{resnet_forward.11} parent=0
    _
  %s7 = ssub.s32 1, %s5
  %s8 = scalar_select 0, %s7, %s5
  // Predicated region
  $region2: #{resnet_forward.11} parent=0 // pred_check
    _
  $region3: #{resnet_forward.11} parent=0 // pred_check_branch
    %10 = sbr.rel (0) target = $region5
  $region4: #{resnet_forward.11} parent=0 // pred_region
    _
  $region5: #{resnet_forward.11} parent=0 // pred_fallthru
    _
  // Predicated region
  $region6: #{resnet_forward.11} parent=0 // pred_check
    _
  $region7: #{resnet_forward.11} parent=0 // pred_check_branch
    %12 = sbr.rel (0) target = $region9
  $region8: #{resnet_forward.11} parent=0 // pred_region
    _
  $region9: #{resnet_forward.11} parent=0 // pred_fallthru
    _
  // Predicated region
  $region10: #{resnet_forward.11} parent=0 // pred_check
    _
  $region11: #{resnet_forward.11} parent=0 // pred_check_branch
    %14 = sbr.rel (0) target = $region13
  $region12: #{resnet_forward.11} parent=0 // pred_region
    _
  $region13: #{resnet_forward.11} parent=0 // pred_fallthru
    _
  // Predicated region
  $region14: #{resnet_forward.11} parent=0 // pred_check
    _
  $region15: #{resnet_forward.11} parent=0 // pred_check_branch
    %16 = sbr.rel (0) target = $region17
  $region16: #{resnet_forward.11} parent=0 // pred_region
    _
  $region17: #{resnet_forward.11} parent=0 // pred_fallthru
    _
  %v18 = vld [vmem:[%s0] sm:$0xff]
  %v19 = vld [vmem:[%s0 + $0x8] sm:$0xff]
  %v20 = vld [vmem:[%s0 + $0x10] sm:$0xf]
  %v21 = vld [vmem:[%s0 + $0x14] sm:$0xff]
  %v22 = vld [vmem:[%s0 + $0x1c] sm:$0xff]
  %v23 = vld [vmem:[%s0 + $0x24] sm:$0xf]
  %v24 = vld [vmem:[%s0 + $0x28] sm:$0xff]
  %v25 = vld [vmem:[%s0 + $0x30] sm:$0xff]
  %v26 = vld [vmem:[%s0 + $0x38] sm:$0xf]
  %v27 = vld [vmem:[%s0 + $0x3c] sm:$0xff]
  %v28 = vld [vmem:[%s0 + $0x44] sm:$0xff]
  %v29 = vld [vmem:[%s0 + $0x4c] sm:$0xf]
  %v30 = vld [vmem:[%s0 + $0x50] sm:$0xff]
  %v31 = vld [vmem:[%s0 + $0x58] sm:$0xff]
  %v32 = vld [vmem:[%s0 + $0x60] sm:$0xf]
  %v33 = vld [vmem:[%s0 + $0x64] sm:$0xff]
  %v34 = vld [vmem:[%s0 + $0x6c] sm:$0xff]
  %v35 = vld [vmem:[%s0 + $0x74] sm:$0xf]
  %v36 = vld [vmem:[%s0 + $0x78] sm:$0xff]
  %v37 = vld [vmem:[%s0 + $0x80] sm:$0xff]
  %v38 = vld [vmem:[%s0 + $0x88] sm:$0xf]
  %v39 = vld [vmem:[%s0 + $0x8c] sm:$0xff]
  %v40 = vld [vmem:[%s0 + $0x94] sm:$0xff]
  %v41 = vld [vmem:[%s0 + $0x9c] sm:$0xf]
  %v42 = vld [vmem:[%s0 + $0xa0] sm:$0xff]
  %v43 = vld [vmem:[%s0 + $0xa8] sm:$0xff]
  %v44 = vld [vmem:[%s0 + $0xb0] sm:$0xf]
  %v45 = vld [vmem:[%s0 + $0xb4] sm:$0xff]
  %v46 = vld [vmem:[%s0 + $0xbc] sm:$0xff]
  %v47 = vld [vmem:[%s0 + $0xc4] sm:$0xf]
  %v48 = vld [vmem:[%s0 + $0xc8] sm:$0xff]
  %v49 = vld [vmem:[%s0 + $0xd0] sm:$0xff]
  %v50 = vld [vmem:[%s0 + $0xd8] sm:$0xf]
  %v51 = vld [vmem:[%s0 + $0xdc] sm:$0xff]
  %v52 = vld [vmem:[%s0 + $0xe4] sm:$0xff]
  %v53 = vld [vmem:[%s0 + $0xec] sm:$0xf]
  %v54 = vld [vmem:[%s0 + $0xf0] sm:$0xff]
  %v55 = vld [vmem:[%s0 + $0xf8] sm:$0xff]
  %v56 = vld [vmem:[%s0 + $0x100] sm:$0xf]
  %v57 = vld [vmem:[%s0 + $0x104] sm:$0xff]
  %v58 = vld [vmem:[%s0 + $0x10c] sm:$0xff]
  %v59 = vld [vmem:[%s0 + $0x114] sm:$0xf]
  %v60 = vld [vmem:[%s0 + $0x118] sm:$0xff]
  %v61 = vld [vmem:[%s0 + $0x120] sm:$0xff]
  %v62 = vld [vmem:[%s0 + $0x128] sm:$0xf]
  %v63 = vld [vmem:[%s0 + $0x12c] sm:$0xff]
  %v64 = vld [vmem:[%s0 + $0x134] sm:$0xff]
  %v65 = vld [vmem:[%s0 + $0x13c] sm:$0xf]
  %v66 = vld [vmem:[%s1] sm:$0xf]
  %v67 = vld [vmem:[%s1 + $0x4] sm:$0xf]
  %v68 = vld [vmem:[%s1 + $0x8] sm:$0xf]
  %v69 = vld [vmem:[%s1 + $0xc] sm:$0xf]
  %v70 = vld [vmem:[%s1 + $0x10] sm:$0xf]
  %v71 = vld [vmem:[%s1 + $0x14] sm:$0xf]
  %v72 = vld [vmem:[%s1 + $0x18] sm:$0xf]
  %v73 = vld [vmem:[%s1 + $0x1c] sm:$0xf]
  %v74 = vld [vmem:[%s1 + $0x20] sm:$0xf]
  %v75 = vld [vmem:[%s1 + $0x24] sm:$0xf]
  %v76 = vld [vmem:[%s1 + $0x28] sm:$0xf]
  %v77 = vld [vmem:[%s1 + $0x2c] sm:$0xf]
  %v78 = vld [vmem:[%s1 + $0x30] sm:$0xf]
  %v79 = vld [vmem:[%s1 + $0x34] sm:$0xf]
  %v80 = vld [vmem:[%s1 + $0x38] sm:$0xf]
  %v81 = vld [vmem:[%s1 + $0x3c] sm:$0xf]
  %v82 = vld [vmem:[%s1 + $0x40] sm:$0xf]
  %v83 = vld [vmem:[%s1 + $0x44] sm:$0xf]
  %v84 = vld [vmem:[%s1 + $0x48] sm:$0xf]
  %v85 = vld [vmem:[%s1 + $0x4c] sm:$0xf]
  %v86 = vld [vmem:[%s1 + $0x50] sm:$0xf]
  %v87 = vld [vmem:[%s1 + $0x54] sm:$0xf]
  %v88 = vld [vmem:[%s1 + $0x58] sm:$0xf]
  %v89 = vld [vmem:[%s1 + $0x5c] sm:$0xf]
  %v90 = vld [vmem:[%s1 + $0x60] sm:$0xf]
  %v91 = vld [vmem:[%s1 + $0x64] sm:$0xf]
  %v92 = vld [vmem:[%s1 + $0x68] sm:$0xf]
  %v93 = vld [vmem:[%s1 + $0x6c] sm:$0xf]
  %v94 = vld [vmem:[%s1 + $0x70] sm:$0xf]
  %v95 = vld [vmem:[%s1 + $0x74] sm:$0xf]
  %v96 = vld [vmem:[%s1 + $0x78] sm:$0xf]
  %v97 = vld [vmem:[%s1 + $0x7c] sm:$0xf]
  %v98 = vld [vmem:[%s1 + $0x80] sm:$0xf]
  %v99 = vld [vmem:[%s1 + $0x84] sm:$0xf]
  %v100 = vld [vmem:[%s1 + $0x88] sm:$0xf]
  %v101 = vld [vmem:[%s1 + $0x8c] sm:$0xf]
  %v102 = vld [vmem:[%s1 + $0x90] sm:$0xf]
  %v103 = vld [vmem:[%s1 + $0x94] sm:$0xf]
  %v104 = vld [vmem:[%s1 + $0x98] sm:$0xf]
  %v105 = vld [vmem:[%s1 + $0x9c] sm:$0xf]
  %v106 = vld [vmem:[%s1 + $0xa0] sm:$0xf]
  %v107 = vld [vmem:[%s1 + $0xa4] sm:$0xf]
  %v108 = vld [vmem:[%s1 + $0xa8] sm:$0xf]
  %v109 = vld [vmem:[%s1 + $0xac] sm:$0xf]
  %v110 = vld [vmem:[%s1 + $0xb0] sm:$0xf]
  %v111 = vld [vmem:[%s1 + $0xb4] sm:$0xf]
  %v112 = vld [vmem:[%s1 + $0xb8] sm:$0xf]
  %v113 = vld [vmem:[%s1 + $0xbc] sm:$0xf]
  %v114 = vld [vmem:[%s1 + $0xc0] sm:$0xf]
  %v115 = vld [vmem:[%s1 + $0xc4] sm:$0xf]
  %v116 = vld [vmem:[%s1 + $0xc8] sm:$0xf]
  %v117 = vld [vmem:[%s1 + $0xcc] sm:$0xf]
  %v118 = vld [vmem:[%s1 + $0xd0] sm:$0xf]
  %v119 = vld [vmem:[%s1 + $0xd4] sm:$0xf]
  %v120 = vld [vmem:[%s1 + $0xd8] sm:$0xf]
  %v121 = vld [vmem:[%s1 + $0xdc] sm:$0xf]
  %v122 = vld [vmem:[%s1 + $0xe0] sm:$0xf]
  %v123 = vld [vmem:[%s1 + $0xe4] sm:$0xf]
  %v124 = vld [vmem:[%s1 + $0xe8] sm:$0xf]
  %v125 = vld [vmem:[%s1 + $0xec] sm:$0xf]
  %v126 = vld [vmem:[%s1 + $0xf0] sm:$0xf]
  %v127 = vld [vmem:[%s1 + $0xf4] sm:$0xf]
  %v128 = vld [vmem:[%s1 + $0xf8] sm:$0xf]
  %v129 = vld [vmem:[%s1 + $0xfc] sm:$0xf]
  %v130 = vld [vmem:[%s1 + $0x100] sm:$0xf]
  %v131 = vld [vmem:[%s1 + $0x104] sm:$0xf]
  %v132 = vld [vmem:[%s1 + $0x108] sm:$0xf]
  %v133 = vld [vmem:[%s1 + $0x10c] sm:$0xf]
  %v134 = vld [vmem:[%s1 + $0x110] sm:$0xf]
  %v135 = vld [vmem:[%s1 + $0x114] sm:$0xf]
  %v136 = vld [vmem:[%s1 + $0x118] sm:$0xf]
  %v137 = vld [vmem:[%s1 + $0x11c] sm:$0xf]
  %v186 = vunpack.c.l.b16 %v18
  %v187 = vunpack.c.h.b16 %v18
  %v188 = vunpack.c.l.b16 %v19
  %v189 = vunpack.c.h.b16 %v19
  %v190 = vunpack.c.l.b16 %v20
  %v191 = vunpack.c.l.b16 %v21
  %v192 = vunpack.c.h.b16 %v21
  %v193 = vunpack.c.l.b16 %v22
  %v194 = vunpack.c.h.b16 %v22
  %v195 = vunpack.c.l.b16 %v23
  %v196 = vunpack.c.l.b16 %v24
  %v197 = vunpack.c.h.b16 %v24
  %v198 = vunpack.c.l.b16 %v25
  %v199 = vunpack.c.h.b16 %v25
  %v200 = vunpack.c.l.b16 %v26
  %v201 = vunpack.c.l.b16 %v27
  %v202 = vunpack.c.h.b16 %v27
  %v203 = vunpack.c.l.b16 %v28
  %v204 = vunpack.c.h.b16 %v28
  %v205 = vunpack.c.l.b16 %v29
  %v206 = vunpack.c.l.b16 %v30
  %v207 = vunpack.c.h.b16 %v30
  %v208 = vunpack.c.l.b16 %v31
  %v209 = vunpack.c.h.b16 %v31
  %v210 = vunpack.c.l.b16 %v32
  %v211 = vunpack.c.l.b16 %v33
  %v212 = vunpack.c.h.b16 %v33
  %v213 = vunpack.c.l.b16 %v34
  %v214 = vunpack.c.h.b16 %v34
  %v215 = vunpack.c.l.b16 %v35
  %v216 = vunpack.c.l.b16 %v36
  %v217 = vunpack.c.h.b16 %v36
  %v218 = vunpack.c.l.b16 %v37
  %v219 = vunpack.c.h.b16 %v37
  %v220 = vunpack.c.l.b16 %v38
  %v221 = vunpack.c.l.b16 %v39
  %v222 = vunpack.c.h.b16 %v39
  %v223 = vunpack.c.l.b16 %v40
  %v224 = vunpack.c.h.b16 %v40
  %v225 = vunpack.c.l.b16 %v41
  %v226 = vunpack.c.l.b16 %v42
  %v227 = vunpack.c.h.b16 %v42
  %v228 = vunpack.c.l.b16 %v43
  %v229 = vunpack.c.h.b16 %v43
  %v230 = vunpack.c.l.b16 %v44
  %v231 = vunpack.c.l.b16 %v45
  %v232 = vunpack.c.h.b16 %v45
  %v233 = vunpack.c.l.b16 %v46
  %v234 = vunpack.c.h.b16 %v46
  %v235 = vunpack.c.l.b16 %v47
  %v236 = vunpack.c.l.b16 %v48
  %v237 = vunpack.c.h.b16 %v48
  %v238 = vunpack.c.l.b16 %v49
  %v239 = vunpack.c.h.b16 %v49
  %v240 = vunpack.c.l.b16 %v50
  %v241 = vunpack.c.l.b16 %v51
  %v242 = vunpack.c.h.b16 %v51
  %v243 = vunpack.c.l.b16 %v52
  %v244 = vunpack.c.h.b16 %v52
  %v245 = vunpack.c.l.b16 %v53
  %v246 = vunpack.c.l.b16 %v54
  %v247 = vunpack.c.h.b16 %v54
  %v248 = vunpack.c.l.b16 %v55
  %v249 = vunpack.c.h.b16 %v55
  %v250 = vunpack.c.l.b16 %v56
  %v251 = vunpack.c.l.b16 %v57
  %v252 = vunpack.c.h.b16 %v57
  %v253 = vunpack.c.l.b16 %v58
  %v254 = vunpack.c.h.b16 %v58
  %v255 = vunpack.c.l.b16 %v59
  %v256 = vunpack.c.l.b16 %v60
  %v257 = vunpack.c.h.b16 %v60
  %v258 = vunpack.c.l.b16 %v61
  %v259 = vunpack.c.h.b16 %v61
  %v260 = vunpack.c.l.b16 %v62
  %v261 = vunpack.c.l.b16 %v63
  %v262 = vunpack.c.h.b16 %v63
  %v263 = vunpack.c.l.b16 %v64
  %v264 = vunpack.c.h.b16 %v64
  %v265 = vunpack.c.l.b16 %v65
  %v266 = vpack.c.b16 %v191, %v186
  %v267 = vpack.c.b16 %v192, %v187
  %v268 = vpack.c.b16 %v193, %v188
  %v269 = vpack.c.b16 %v194, %v189
  %v270 = vpack.c.b16 %v195, %v190
  %v271 = vpack.c.b16 %v201, %v196
  %v272 = vpack.c.b16 %v202, %v197
  %v273 = vpack.c.b16 %v203, %v198
  %v274 = vpack.c.b16 %v204, %v199
  %v275 = vpack.c.b16 %v205, %v200
  %v276 = vpack.c.b16 %v211, %v206
  %v277 = vpack.c.b16 %v212, %v207
  %v278 = vpack.c.b16 %v213, %v208
  %v279 = vpack.c.b16 %v214, %v209
  %v280 = vpack.c.b16 %v215, %v210
  %v281 = vpack.c.b16 %v221, %v216
  %v282 = vpack.c.b16 %v222, %v217
  %v283 = vpack.c.b16 %v223, %v218
  %v284 = vpack.c.b16 %v224, %v219
  %v285 = vpack.c.b16 %v225, %v220
  %v286 = vpack.c.b16 %v231, %v226
  %v287 = vpack.c.b16 %v232, %v227
  %v288 = vpack.c.b16 %v233, %v228
  %v289 = vpack.c.b16 %v234, %v229
  %v290 = vpack.c.b16 %v235, %v230
  %v291 = vpack.c.b16 %v241, %v236
  %v292 = vpack.c.b16 %v242, %v237
  %v293 = vpack.c.b16 %v243, %v238
  %v294 = vpack.c.b16 %v244, %v239
  %v295 = vpack.c.b16 %v245, %v240
  %v296 = vpack.c.b16 %v251, %v246
  %v297 = vpack.c.b16 %v252, %v247
  %v298 = vpack.c.b16 %v253, %v248
  %v299 = vpack.c.b16 %v254, %v249
  %v300 = vpack.c.b16 %v255, %v250
  %v301 = vpack.c.b16 %v261, %v256
  %v302 = vpack.c.b16 %v262, %v257
  %v303 = vpack.c.b16 %v263, %v258
  %v304 = vpack.c.b16 %v264, %v259
  %v305 = vpack.c.b16 %v265, %v260
  %v410 = vunpack.c.l.b16 %v66
  %v411 = vunpack.c.l.b16 %v67
  %v412 = vunpack.c.l.b16 %v68
  %v413 = vunpack.c.l.b16 %v69
  %v414 = vunpack.c.l.b16 %v70
  %v415 = vunpack.c.l.b16 %v71
  %v416 = vunpack.c.l.b16 %v72
  %v417 = vunpack.c.l.b16 %v73
  %v418 = vunpack.c.l.b16 %v74
  %v419 = vunpack.c.l.b16 %v75
  %v420 = vunpack.c.l.b16 %v76
  %v421 = vunpack.c.l.b16 %v77
  %v422 = vunpack.c.l.b16 %v78
  %v423 = vunpack.c.l.b16 %v79
  %v424 = vunpack.c.l.b16 %v80
  %v425 = vunpack.c.l.b16 %v81
  %v426 = vunpack.c.l.b16 %v82
  %v427 = vunpack.c.l.b16 %v83
  %v428 = vunpack.c.l.b16 %v84
  %v429 = vunpack.c.l.b16 %v85
  %v430 = vunpack.c.l.b16 %v86
  %v431 = vunpack.c.l.b16 %v87
  %v432 = vunpack.c.l.b16 %v88
  %v433 = vunpack.c.l.b16 %v89
  %v434 = vunpack.c.l.b16 %v90
  %v435 = vunpack.c.l.b16 %v91
  %v436 = vunpack.c.l.b16 %v92
  %v437 = vunpack.c.l.b16 %v93
  %v438 = vunpack.c.l.b16 %v94
  %v439 = vunpack.c.l.b16 %v95
  %v440 = vunpack.c.l.b16 %v96
  %v441 = vunpack.c.l.b16 %v97
  %v442 = vunpack.c.l.b16 %v98
  %v443 = vunpack.c.l.b16 %v99
  %v444 = vunpack.c.l.b16 %v100
  %v445 = vunpack.c.l.b16 %v101
  %v446 = vunpack.c.l.b16 %v102
  %v447 = vunpack.c.l.b16 %v103
  %v448 = vunpack.c.l.b16 %v104
  %v449 = vunpack.c.l.b16 %v105
  %v450 = vunpack.c.l.b16 %v106
  %v451 = vunpack.c.l.b16 %v107
  %v452 = vunpack.c.l.b16 %v108
  %v453 = vunpack.c.l.b16 %v109
  %v454 = vunpack.c.l.b16 %v110
  %v455 = vunpack.c.l.b16 %v111
  %v456 = vunpack.c.l.b16 %v112
  %v457 = vunpack.c.l.b16 %v113
  %v458 = vunpack.c.l.b16 %v114
  %v459 = vunpack.c.l.b16 %v115
  %v460 = vunpack.c.l.b16 %v116
  %v461 = vunpack.c.l.b16 %v117
  %v462 = vunpack.c.l.b16 %v118
  %v463 = vunpack.c.l.b16 %v119
  %v464 = vunpack.c.l.b16 %v120
  %v465 = vunpack.c.l.b16 %v121
  %v466 = vunpack.c.l.b16 %v122
  %v467 = vunpack.c.l.b16 %v123
  %v468 = vunpack.c.l.b16 %v124
  %v469 = vunpack.c.l.b16 %v125
  %v470 = vunpack.c.l.b16 %v126
  %v471 = vunpack.c.l.b16 %v127
  %v472 = vunpack.c.l.b16 %v128
  %v473 = vunpack.c.l.b16 %v129
  %v474 = vunpack.c.l.b16 %v130
  %v475 = vunpack.c.l.b16 %v131
  %v476 = vunpack.c.l.b16 %v132
  %v477 = vunpack.c.l.b16 %v133
  %v478 = vunpack.c.l.b16 %v134
  %v479 = vunpack.c.l.b16 %v135
  %v480 = vunpack.c.l.b16 %v136
  %v481 = vunpack.c.l.b16 %v137
  %v482 = vpack.c.b16 %v411, %v410
  %v483 = vpack.c.b16 %v413, %v412
  %v484 = vpack.c.b16 %v415, %v414
  %v485 = vpack.c.b16 %v417, %v416
  %v486 = vpack.c.b16 %v419, %v418
  %v487 = vpack.c.b16 %v421, %v420
  %v488 = vpack.c.b16 %v423, %v422
  %v489 = vpack.c.b16 %v425, %v424
  %v490 = vpack.c.b16 %v427, %v426
  %v491 = vpack.c.b16 %v429, %v428
  %v492 = vpack.c.b16 %v431, %v430
  %v493 = vpack.c.b16 %v433, %v432
  %v494 = vpack.c.b16 %v435, %v434
  %v495 = vpack.c.b16 %v437, %v436
  %v496 = vpack.c.b16 %v439, %v438
  %v497 = vpack.c.b16 %v441, %v440
  %v498 = vpack.c.b16 %v443, %v442
  %v499 = vpack.c.b16 %v445, %v444
  %v500 = vpack.c.b16 %v447, %v446
  %v501 = vpack.c.b16 %v449, %v448
  %v502 = vpack.c.b16 %v451, %v450
  %v503 = vpack.c.b16 %v453, %v452
  %v504 = vpack.c.b16 %v455, %v454
  %v505 = vpack.c.b16 %v457, %v456
  %v506 = vpack.c.b16 %v459, %v458
  %v507 = vpack.c.b16 %v461, %v460
  %v508 = vpack.c.b16 %v463, %v462
  %v509 = vpack.c.b16 %v465, %v464
  %v510 = vpack.c.b16 %v467, %v466
  %v511 = vpack.c.b16 %v469, %v468
  %v512 = vpack.c.b16 %v471, %v470
  %v513 = vpack.c.b16 %v473, %v472
  %v514 = vpack.c.b16 %v475, %v474
  %v515 = vpack.c.b16 %v477, %v476
  %v516 = vpack.c.b16 %v479, %v478
  %v517 = vpack.c.b16 %v481, %v480
  %vm554 = vcmask 523264
  %v556 = vsel %vm554, %v270, 0
  %v559 = vsel %vm554, %v275, 0
  %v562 = vsel %vm554, %v280, 0
  %v565 = vsel %vm554, %v285, 0
  %v568 = vsel %vm554, %v290, 0
  %v571 = vsel %vm554, %v295, 0
  %v574 = vsel %vm554, %v300, 0
  %v577 = vsel %vm554, %v305, 0
  %579 = vmatpush.bf16.msra.mxu0 %v489
  %580 = vmatpush.bf16.msra.mxu0 %v488
  %581 = vmatpush.bf16.msra.mxu0 %v487
  %582 = vmatpush.bf16.msra.mxu0 %v486
  %583 = vmatpush.bf16.msra.mxu0 %v485
  %584 = vmatpush.bf16.msra.mxu0 %v484
  %585 = vmatpush.bf16.msra.mxu0 %v483
  %586 = vmatpush.bf16.msra.mxu0 %v482
  %587 = vmatmul.bf16.gmra.mxu0 %v266
  %v588 = vpop.f32.mrf.mxu0
  %v589 = vadd.f32 0.0, %v588
  %v590 = vpop.f32.mrf.mxu0
  %v591 = vadd.f32 0.0, %v590
  %592 = vmatmul.bf16.gmra.mxu0 %v271
  %v593 = vpop.f32.mrf.mxu0
  %v594 = vadd.f32 0.0, %v593
  %v595 = vpop.f32.mrf.mxu0
  %v596 = vadd.f32 0.0, %v595
  %597 = vmatmul.bf16.gmra.mxu0 %v276
  %v598 = vpop.f32.mrf.mxu0
  %v599 = vadd.f32 0.0, %v598
  %v600 = vpop.f32.mrf.mxu0
  %v601 = vadd.f32 0.0, %v600
  %602 = vmatmul.bf16.gmra.mxu0 %v281
  %v603 = vpop.f32.mrf.mxu0
  %v604 = vadd.f32 0.0, %v603
  %v605 = vpop.f32.mrf.mxu0
  %v606 = vadd.f32 0.0, %v605
  %607 = vmatmul.bf16.gmra.mxu0 %v286
  %v608 = vpop.f32.mrf.mxu0
  %v609 = vadd.f32 0.0, %v608
  %v610 = vpop.f32.mrf.mxu0
  %v611 = vadd.f32 0.0, %v610
  %612 = vmatmul.bf16.gmra.mxu0 %v291
  %v613 = vpop.f32.mrf.mxu0
  %v614 = vadd.f32 0.0, %v613
  %v615 = vpop.f32.mrf.mxu0
  %v616 = vadd.f32 0.0, %v615
  %617 = vmatmul.bf16.gmra.mxu0 %v296
  %v618 = vpop.f32.mrf.mxu0
  %v619 = vadd.f32 0.0, %v618
  %v620 = vpop.f32.mrf.mxu0
  %v621 = vadd.f32 0.0, %v620
  %622 = vmatmul.bf16.gmra.mxu0 %v301
  %v623 = vpop.f32.mrf.mxu0
  %v624 = vadd.f32 0.0, %v623
  %v625 = vpop.f32.mrf.mxu0
  %v626 = vadd.f32 0.0, %v625
  %627 = vdwg.mxu0
  %628 = vmatpush.bf16.msra.mxu0 %v497
  %629 = vmatpush.bf16.msra.mxu0 %v496
  %630 = vmatpush.bf16.msra.mxu0 %v495
  %631 = vmatpush.bf16.msra.mxu0 %v494
  %632 = vmatpush.bf16.msra.mxu0 %v493
  %633 = vmatpush.bf16.msra.mxu0 %v492
  %634 = vmatpush.bf16.msra.mxu0 %v491
  %635 = vmatpush.bf16.msra.mxu0 %v490
  %636 = vmatmul.bf16.gmra.mxu0 %v267
  %v637 = vpop.f32.mrf.mxu0
  %v638 = vadd.f32 %v589, %v637
  %v639 = vpop.f32.mrf.mxu0
  %v640 = vadd.f32 %v591, %v639
  %641 = vmatmul.bf16.gmra.mxu0 %v272
  %v642 = vpop.f32.mrf.mxu0
  %v643 = vadd.f32 %v594, %v642
  %v644 = vpop.f32.mrf.mxu0
  %v645 = vadd.f32 %v596, %v644
  %646 = vmatmul.bf16.gmra.mxu0 %v277
  %v647 = vpop.f32.mrf.mxu0
  %v648 = vadd.f32 %v599, %v647
  %v649 = vpop.f32.mrf.mxu0
  %v650 = vadd.f32 %v601, %v649
  %651 = vmatmul.bf16.gmra.mxu0 %v282
  %v652 = vpop.f32.mrf.mxu0
  %v653 = vadd.f32 %v604, %v652
  %v654 = vpop.f32.mrf.mxu0
  %v655 = vadd.f32 %v606, %v654
  %656 = vmatmul.bf16.gmra.mxu0 %v287
  %v657 = vpop.f32.mrf.mxu0
  %v658 = vadd.f32 %v609, %v657
  %v659 = vpop.f32.mrf.mxu0
  %v660 = vadd.f32 %v611, %v659
  %661 = vmatmul.bf16.gmra.mxu0 %v292
  %v662 = vpop.f32.mrf.mxu0
  %v663 = vadd.f32 %v614, %v662
  %v664 = vpop.f32.mrf.mxu0
  %v665 = vadd.f32 %v616, %v664
  %666 = vmatmul.bf16.gmra.mxu0 %v297
  %v667 = vpop.f32.mrf.mxu0
  %v668 = vadd.f32 %v619, %v667
  %v669 = vpop.f32.mrf.mxu0
  %v670 = vadd.f32 %v621, %v669
  %671 = vmatmul.bf16.gmra.mxu0 %v302
  %v672 = vpop.f32.mrf.mxu0
  %v673 = vadd.f32 %v624, %v672
  %v674 = vpop.f32.mrf.mxu0
  %v675 = vadd.f32 %v626, %v674
  %676 = vdwg.mxu0
  %677 = vmatpush.bf16.msra.mxu0 %v505
  %678 = vmatpush.bf16.msra.mxu0 %v504
  %679 = vmatpush.bf16.msra.mxu0 %v503
  %680 = vmatpush.bf16.msra.mxu0 %v502
  %681 = vmatpush.bf16.msra.mxu0 %v501
  %682 = vmatpush.bf16.msra.mxu0 %v500
  %683 = vmatpush.bf16.msra.mxu0 %v499
  %684 = vmatpush.bf16.msra.mxu0 %v498
  %685 = vmatmul.bf16.gmra.mxu0 %v268
  %v686 = vpop.f32.mrf.mxu0
  %v687 = vadd.f32 %v638, %v686
  %v688 = vpop.f32.mrf.mxu0
  %v689 = vadd.f32 %v640, %v688
  %690 = vmatmul.bf16.gmra.mxu0 %v273
  %v691 = vpop.f32.mrf.mxu0
  %v692 = vadd.f32 %v643, %v691
  %v693 = vpop.f32.mrf.mxu0
  %v694 = vadd.f32 %v645, %v693
  %695 = vmatmul.bf16.gmra.mxu0 %v278
  %v696 = vpop.f32.mrf.mxu0
  %v697 = vadd.f32 %v648, %v696
  %v698 = vpop.f32.mrf.mxu0
  %v699 = vadd.f32 %v650, %v698
  %700 = vmatmul.bf16.gmra.mxu0 %v283
  %v701 = vpop.f32.mrf.mxu0
  %v702 = vadd.f32 %v653, %v701
  %v703 = vpop.f32.mrf.mxu0
  %v704 = vadd.f32 %v655, %v703
  %705 = vmatmul.bf16.gmra.mxu0 %v288
  %v706 = vpop.f32.mrf.mxu0
  %v707 = vadd.f32 %v658, %v706
  %v708 = vpop.f32.mrf.mxu0
  %v709 = vadd.f32 %v660, %v708
  %710 = vmatmul.bf16.gmra.mxu0 %v293
  %v711 = vpop.f32.mrf.mxu0
  %v712 = vadd.f32 %v663, %v711
  %v713 = vpop.f32.mrf.mxu0
  %v714 = vadd.f32 %v665, %v713
  %715 = vmatmul.bf16.gmra.mxu0 %v298
  %v716 = vpop.f32.mrf.mxu0
  %v717 = vadd.f32 %v668, %v716
  %v718 = vpop.f32.mrf.mxu0
  %v719 = vadd.f32 %v670, %v718
  %720 = vmatmul.bf16.gmra.mxu0 %v303
  %v721 = vpop.f32.mrf.mxu0
  %v722 = vadd.f32 %v673, %v721
  %v723 = vpop.f32.mrf.mxu0
  %v724 = vadd.f32 %v675, %v723
  %725 = vdwg.mxu0
  %726 = vmatpush.bf16.msra.mxu0 %v513
  %727 = vmatpush.bf16.msra.mxu0 %v512
  %728 = vmatpush.bf16.msra.mxu0 %v511
  %729 = vmatpush.bf16.msra.mxu0 %v510
  %730 = vmatpush.bf16.msra.mxu0 %v509
  %731 = vmatpush.bf16.msra.mxu0 %v508
  %732 = vmatpush.bf16.msra.mxu0 %v507
  %733 = vmatpush.bf16.msra.mxu0 %v506
  %734 = vmatmul.bf16.gmra.mxu0 %v269
  %v735 = vpop.f32.mrf.mxu0
  %v736 = vadd.f32 %v687, %v735
  %v737 = vpop.f32.mrf.mxu0
  %v738 = vadd.f32 %v689, %v737
  %739 = vmatmul.bf16.gmra.mxu0 %v274
  %v740 = vpop.f32.mrf.mxu0
  %v741 = vadd.f32 %v692, %v740
  %v742 = vpop.f32.mrf.mxu0
  %v743 = vadd.f32 %v694, %v742
  %744 = vmatmul.bf16.gmra.mxu0 %v279
  %v745 = vpop.f32.mrf.mxu0
  %v746 = vadd.f32 %v697, %v745
  %v747 = vpop.f32.mrf.mxu0
  %v748 = vadd.f32 %v699, %v747
  %749 = vmatmul.bf16.gmra.mxu0 %v284
  %v750 = vpop.f32.mrf.mxu0
  %v751 = vadd.f32 %v702, %v750
  %v752 = vpop.f32.mrf.mxu0
  %v753 = vadd.f32 %v704, %v752
  %754 = vmatmul.bf16.gmra.mxu0 %v289
  %v755 = vpop.f32.mrf.mxu0
  %v756 = vadd.f32 %v707, %v755
  %v757 = vpop.f32.mrf.mxu0
  %v758 = vadd.f32 %v709, %v757
  %759 = vmatmul.bf16.gmra.mxu0 %v294
  %v760 = vpop.f32.mrf.mxu0
  %v761 = vadd.f32 %v712, %v760
  %v762 = vpop.f32.mrf.mxu0
  %v763 = vadd.f32 %v714, %v762
  %764 = vmatmul.bf16.gmra.mxu0 %v299
  %v765 = vpop.f32.mrf.mxu0
  %v766 = vadd.f32 %v717, %v765
  %v767 = vpop.f32.mrf.mxu0
  %v768 = vadd.f32 %v719, %v767
  %769 = vmatmul.bf16.gmra.mxu0 %v304
  %v770 = vpop.f32.mrf.mxu0
  %v771 = vadd.f32 %v722, %v770
  %v772 = vpop.f32.mrf.mxu0
  %v773 = vadd.f32 %v724, %v772
  %774 = vdwg.mxu0
  %775 = vmatpush.bf16.msra.mxu0 0
  %776 = vmatpush.bf16.msra.mxu0 0
  %777 = vmatpush.bf16.msra.mxu0 0
  %778 = vmatpush.bf16.msra.mxu0 0
  %779 = vmatpush.bf16.msra.mxu0 %v517
  %780 = vmatpush.bf16.msra.mxu0 %v516
  %781 = vmatpush.bf16.msra.mxu0 %v515
  %782 = vmatpush.bf16.msra.mxu0 %v514
  %783 = vmatmul.bf16.gmra.mxu0 %v556
  %v784 = vpop.f32.mrf.mxu0
  %v785 = vadd.f32 %v736, %v784
  %v786 = vpop.f32.mrf.mxu0
  %v787 = vadd.f32 %v738, %v786
  %788 = vmatmul.bf16.gmra.mxu0 %v559
  %v789 = vpop.f32.mrf.mxu0
  %v790 = vadd.f32 %v741, %v789
  %v791 = vpop.f32.mrf.mxu0
  %v792 = vadd.f32 %v743, %v791
  %793 = vmatmul.bf16.gmra.mxu0 %v562
  %v794 = vpop.f32.mrf.mxu0
  %v795 = vadd.f32 %v746, %v794
  %v796 = vpop.f32.mrf.mxu0
  %v797 = vadd.f32 %v748, %v796
  %798 = vmatmul.bf16.gmra.mxu0 %v565
  %v799 = vpop.f32.mrf.mxu0
  %v800 = vadd.f32 %v751, %v799
  %v801 = vpop.f32.mrf.mxu0
  %v802 = vadd.f32 %v753, %v801
  %803 = vmatmul.bf16.gmra.mxu0 %v568
  %v804 = vpop.f32.mrf.mxu0
  %v805 = vadd.f32 %v756, %v804
  %v806 = vpop.f32.mrf.mxu0
  %v807 = vadd.f32 %v758, %v806
  %808 = vmatmul.bf16.gmra.mxu0 %v571
  %v809 = vpop.f32.mrf.mxu0
  %v810 = vadd.f32 %v761, %v809
  %v811 = vpop.f32.mrf.mxu0
  %v812 = vadd.f32 %v763, %v811
  %813 = vmatmul.bf16.gmra.mxu0 %v574
  %v814 = vpop.f32.mrf.mxu0
  %v815 = vadd.f32 %v766, %v814
  %v816 = vpop.f32.mrf.mxu0
  %v817 = vadd.f32 %v768, %v816
  %818 = vmatmul.bf16.gmra.mxu0 %v577
  %v819 = vpop.f32.mrf.mxu0
  %v820 = vadd.f32 %v771, %v819
  %v821 = vpop.f32.mrf.mxu0
  %v822 = vadd.f32 %v773, %v821
  %823 = vdwg.mxu0
  %v824 = vld [vmem:[%s2] sm:$0x1]
  %v826 = vperm.slane %v824, 0
  %v828 = vmul.f32 %v785, %v826
  %v829 = vmul.f32 %v787, %v826
  %v830 = vmul.f32 %v790, %v826
  %v831 = vmul.f32 %v792, %v826
  %v832 = vmul.f32 %v795, %v826
  %v833 = vmul.f32 %v797, %v826
  %v834 = vmul.f32 %v800, %v826
  %v835 = vmul.f32 %v802, %v826
  %v836 = vmul.f32 %v805, %v826
  %v837 = vmul.f32 %v807, %v826
  %v838 = vmul.f32 %v810, %v826
  %v839 = vmul.f32 %v812, %v826
  %v840 = vmul.f32 %v815, %v826
  %v841 = vmul.f32 %v817, %v826
  %v842 = vmul.f32 %v820, %v826
  %v843 = vmul.f32 %v822, %v826
  %v844 = vld [vmem:[%s3] sm:$0x1]
  %v846 = vperm.slane %v844, 0
  %v848 = vadd.f32 %v828, %v846
  %v849 = vadd.f32 %v829, %v846
  %v850 = vadd.f32 %v830, %v846
  %v851 = vadd.f32 %v831, %v846
  %v852 = vadd.f32 %v832, %v846
  %v853 = vadd.f32 %v833, %v846
  %v854 = vadd.f32 %v834, %v846
  %v855 = vadd.f32 %v835, %v846
  %v856 = vadd.f32 %v836, %v846
  %v857 = vadd.f32 %v837, %v846
  %v858 = vadd.f32 %v838, %v846
  %v859 = vadd.f32 %v839, %v846
  %v860 = vadd.f32 %v840, %v846
  %v861 = vadd.f32 %v841, %v846
  %v862 = vadd.f32 %v842, %v846
  %v863 = vadd.f32 %v843, %v846
  %v864 = vmax.f32 %v848, 0.0
  %v865 = vmax.f32 %v849, 0.0
  %v866 = vmax.f32 %v850, 0.0
  %v867 = vmax.f32 %v851, 0.0
  %v868 = vmax.f32 %v852, 0.0
  %v869 = vmax.f32 %v853, 0.0
  %v870 = vmax.f32 %v854, 0.0
  %v871 = vmax.f32 %v855, 0.0
  %v872 = vmax.f32 %v856, 0.0
  %v873 = vmax.f32 %v857, 0.0
  %v874 = vmax.f32 %v858, 0.0
  %v875 = vmax.f32 %v859, 0.0
  %v876 = vmax.f32 %v860, 0.0
  %v877 = vmax.f32 %v861, 0.0
  %v878 = vmax.f32 %v862, 0.0
  %v879 = vmax.f32 %v863, 0.0
  %880 = vst.msk [vmem:[%s4] sm:$0xff] %vm554, %v864
  %881 = vst.msk [vmem:[%s4 + $0x8] sm:$0xff] %vm554, %v865
  %882 = vst.msk [vmem:[%s4 + $0x10] sm:$0xff] %vm554, %v866
  %883 = vst.msk [vmem:[%s4 + $0x18] sm:$0xff] %vm554, %v867
  %884 = vst.msk [vmem:[%s4 + $0x20] sm:$0xff] %vm554, %v868
  %885 = vst.msk [vmem:[%s4 + $0x28] sm:$0xff] %vm554, %v869
  %886 = vst.msk [vmem:[%s4 + $0x30] sm:$0xff] %vm554, %v870
  %887 = vst.msk [vmem:[%s4 + $0x38] sm:$0xff] %vm554, %v871
  %888 = vst.msk [vmem:[%s4 + $0x40] sm:$0xff] %vm554, %v872
  %889 = vst.msk [vmem:[%s4 + $0x48] sm:$0xff] %vm554, %v873
  %890 = vst.msk [vmem:[%s4 + $0x50] sm:$0xff] %vm554, %v874
  %891 = vst.msk [vmem:[%s4 + $0x58] sm:$0xff] %vm554, %v875
  %892 = vst.msk [vmem:[%s4 + $0x60] sm:$0xff] %vm554, %v876
  %893 = vst.msk [vmem:[%s4 + $0x68] sm:$0xff] %vm554, %v877
  %894 = vst.msk [vmem:[%s4 + $0x70] sm:$0xff] %vm554, %v878
  %895 = vst.msk [vmem:[%s4 + $0x78] sm:$0xff] %vm554, %v879
  // Predicated region
  $region18: #{resnet_forward.11} parent=0 // pred_check
    _
  $region19: #{resnet_forward.11} parent=0 // pred_check_branch
    %897 = sbr.rel (0) target = $region21
  $region20: #{resnet_forward.11} parent=0 // pred_region
    _
  $region21: #{resnet_forward.11} parent=0 // pred_fallthru
    _
  // Predicated region
  $region22: #{resnet_forward.11} parent=0 // pred_check
    _
  $region23: #{resnet_forward.11} parent=0 // pred_check_branch
    %899 = sbr.rel (0) target = $region25
  $region24: #{resnet_forward.11} parent=0 // pred_region
    _
  $region25: #{resnet_forward.11} parent=0 // pred_fallthru
    _

// kernel: resnet_forward.12
$region0: #{resnet_forward.12}
  #allocation0 [shape = 'u32[]', space=smem, size = 0x4, offset = 0x4, fixed_abs, tag = 'smem constant byte address 0x4 - core index']
  #allocation1 [shape = 'u32[72,128]{1,0:T(1,128)}', space=vmem, size = 0x9000, scoped, tag = 'internal scratch']
  %s0 = inlined_call_operand.vmem [shape: bf16[128,576], index: 0, kind: input, shape index: {}]
  %s1 = inlined_call_operand.vmem [shape: bf16[576,64], index: 1, kind: input, shape index: {}]
  %s2 = inlined_call_operand.vmem [shape: f32[1,64], index: 2, kind: input, shape index: {}]
  %s3 = inlined_call_operand.vmem [shape: f32[1,64], index: 3, kind: input, shape index: {}]
  %s4 = inlined_call_operand.vmem [shape: f32[128,64], index: 4, kind: input, shape index: {}]
  %s5 = inlined_call_operand.vmem [shape: f32[128,64], index: 5, kind: output, shape index: {}]
  %s6 = sld [smem:[#allocation0]]
  $region30: #{resnet_forward.12} parent=0
    _
  %s8 = ssub.s32 1, %s6
  %s9 = scalar_select 0, %s8, %s6
  // Predicated region
  $region2: #{resnet_forward.12} parent=0 // pred_check
    _
  $region3: #{resnet_forward.12} parent=0 // pred_check_branch
    %11 = sbr.rel (0) target = $region5
  $region4: #{resnet_forward.12} parent=0 // pred_region
    _
  $region5: #{resnet_forward.12} parent=0 // pred_fallthru
    _
  // Predicated region
  $region6: #{resnet_forward.12} parent=0 // pred_check
    _
  $region7: #{resnet_forward.12} parent=0 // pred_check_branch
    %13 = sbr.rel (0) target = $region9
  $region8: #{resnet_forward.12} parent=0 // pred_region
    _
  $region9: #{resnet_forward.12} parent=0 // pred_fallthru
    _
  // Predicated region
  $region10: #{resnet_forward.12} parent=0 // pred_check
    _
  $region11: #{resnet_forward.12} parent=0 // pred_check_branch
    %15 = sbr.rel (0) target = $region13
  $region12: #{resnet_forward.12} parent=0 // pred_region
    _
  $region13: #{resnet_forward.12} parent=0 // pred_fallthru
    _
  // Predicated region
  $region14: #{resnet_forward.12} parent=0 // pred_check
    _
  $region15: #{resnet_forward.12} parent=0 // pred_check_branch
    %17 = sbr.rel (0) target = $region17
  $region16: #{resnet_forward.12} parent=0 // pred_region
    _
  $region17: #{resnet_forward.12} parent=0 // pred_fallthru
    _
  // Predicated region
  $region18: #{resnet_forward.12} parent=0 // pred_check
    _
  $region19: #{resnet_forward.12} parent=0 // pred_check_branch
    %19 = sbr.rel (0) target = $region21
  $region20: #{resnet_forward.12} parent=0 // pred_region
    _
  $region21: #{resnet_forward.12} parent=0 // pred_fallthru
    _
  %v21 = vld [vmem:[%s0] sm:$0xff]
  %v22 = vld [vmem:[%s0 + $0x8] sm:$0xff]
  %v23 = vld [vmem:[%s0 + $0x10] sm:$0xf]
  %v24 = vld [vmem:[%s0 + $0x14] sm:$0xff]
  %v25 = vld [vmem:[%s0 + $0x1c] sm:$0xff]
  %v26 = vld [vmem:[%s0 + $0x24] sm:$0xf]
  %v27 = vld [vmem:[%s0 + $0x28] sm:$0xff]
  %v28 = vld [vmem:[%s0 + $0x30] sm:$0xff]
  %v29 = vld [vmem:[%s0 + $0x38] sm:$0xf]
  %v30 = vld [vmem:[%s0 + $0x3c] sm:$0xff]
  %v31 = vld [vmem:[%s0 + $0x44] sm:$0xff]
  %v32 = vld [vmem:[%s0 + $0x4c] sm:$0xf]
  %v33 = vld [vmem:[%s0 + $0x50] sm:$0xff]
  %v34 = vld [vmem:[%s0 + $0x58] sm:$0xff]
  %v35 = vld [vmem:[%s0 + $0x60] sm:$0xf]
  %v36 = vld [vmem:[%s0 + $0x64] sm:$0xff]
  %v37 = vld [vmem:[%s0 + $0x6c] sm:$0xff]
  %v38 = vld [vmem:[%s0 + $0x74] sm:$0xf]
  %v39 = vld [vmem:[%s0 + $0x78] sm:$0xff]
  %v40 = vld [vmem:[%s0 + $0x80] sm:$0xff]
  %v41 = vld [vmem:[%s0 + $0x88] sm:$0xf]
  %v42 = vld [vmem:[%s0 + $0x8c] sm:$0xff]
  %v43 = vld [vmem:[%s0 + $0x94] sm:$0xff]
  %v44 = vld [vmem:[%s0 + $0x9c] sm:$0xf]
  %v45 = vld [vmem:[%s0 + $0xa0] sm:$0xff]
  %v46 = vld [vmem:[%s0 + $0xa8] sm:$0xff]
  %v47 = vld [vmem:[%s0 + $0xb0] sm:$0xf]
  %v48 = vld [vmem:[%s0 + $0xb4] sm:$0xff]
  %v49 = vld [vmem:[%s0 + $0xbc] sm:$0xff]
  %v50 = vld [vmem:[%s0 + $0xc4] sm:$0xf]
  %v51 = vld [vmem:[%s0 + $0xc8] sm:$0xff]
  %v52 = vld [vmem:[%s0 + $0xd0] sm:$0xff]
  %v53 = vld [vmem:[%s0 + $0xd8] sm:$0xf]
  %v54 = vld [vmem:[%s0 + $0xdc] sm:$0xff]
  %v55 = vld [vmem:[%s0 + $0xe4] sm:$0xff]
  %v56 = vld [vmem:[%s0 + $0xec] sm:$0xf]
  %v57 = vld [vmem:[%s0 + $0xf0] sm:$0xff]
  %v58 = vld [vmem:[%s0 + $0xf8] sm:$0xff]
  %v59 = vld [vmem:[%s0 + $0x100] sm:$0xf]
  %v60 = vld [vmem:[%s0 + $0x104] sm:$0xff]
  %v61 = vld [vmem:[%s0 + $0x10c] sm:$0xff]
  %v62 = vld [vmem:[%s0 + $0x114] sm:$0xf]
  %v63 = vld [vmem:[%s0 + $0x118] sm:$0xff]
  %v64 = vld [vmem:[%s0 + $0x120] sm:$0xff]
  %v65 = vld [vmem:[%s0 + $0x128] sm:$0xf]
  %v66 = vld [vmem:[%s0 + $0x12c] sm:$0xff]
  %v67 = vld [vmem:[%s0 + $0x134] sm:$0xff]
  %v68 = vld [vmem:[%s0 + $0x13c] sm:$0xf]
  %v69 = vld [vmem:[%s1] sm:$0xf]
  %v70 = vld [vmem:[%s1 + $0x4] sm:$0xf]
  %v71 = vld [vmem:[%s1 + $0x8] sm:$0xf]
  %v72 = vld [vmem:[%s1 + $0xc] sm:$0xf]
  %v73 = vld [vmem:[%s1 + $0x10] sm:$0xf]
  %v74 = vld [vmem:[%s1 + $0x14] sm:$0xf]
  %v75 = vld [vmem:[%s1 + $0x18] sm:$0xf]
  %v76 = vld [vmem:[%s1 + $0x1c] sm:$0xf]
  %v77 = vld [vmem:[%s1 + $0x20] sm:$0xf]
  %v78 = vld [vmem:[%s1 + $0x24] sm:$0xf]
  %v79 = vld [vmem:[%s1 + $0x28] sm:$0xf]
  %v80 = vld [vmem:[%s1 + $0x2c] sm:$0xf]
  %v81 = vld [vmem:[%s1 + $0x30] sm:$0xf]
  %v82 = vld [vmem:[%s1 + $0x34] sm:$0xf]
  %v83 = vld [vmem:[%s1 + $0x38] sm:$0xf]
  %v84 = vld [vmem:[%s1 + $0x3c] sm:$0xf]
  %v85 = vld [vmem:[%s1 + $0x40] sm:$0xf]
  %v86 = vld [vmem:[%s1 + $0x44] sm:$0xf]
  %v87 = vld [vmem:[%s1 + $0x48] sm:$0xf]
  %v88 = vld [vmem:[%s1 + $0x4c] sm:$0xf]
  %v89 = vld [vmem:[%s1 + $0x50] sm:$0xf]
  %v90 = vld [vmem:[%s1 + $0x54] sm:$0xf]
  %v91 = vld [vmem:[%s1 + $0x58] sm:$0xf]
  %v92 = vld [vmem:[%s1 + $0x5c] sm:$0xf]
  %v93 = vld [vmem:[%s1 + $0x60] sm:$0xf]
  %v94 = vld [vmem:[%s1 + $0x64] sm:$0xf]
  %v95 = vld [vmem:[%s1 + $0x68] sm:$0xf]
  %v96 = vld [vmem:[%s1 + $0x6c] sm:$0xf]
  %v97 = vld [vmem:[%s1 + $0x70] sm:$0xf]
  %v98 = vld [vmem:[%s1 + $0x74] sm:$0xf]
  %v99 = vld [vmem:[%s1 + $0x78] sm:$0xf]
  %v100 = vld [vmem:[%s1 + $0x7c] sm:$0xf]
  %v101 = vld [vmem:[%s1 + $0x80] sm:$0xf]
  %v102 = vld [vmem:[%s1 + $0x84] sm:$0xf]
  %v103 = vld [vmem:[%s1 + $0x88] sm:$0xf]
  %v104 = vld [vmem:[%s1 + $0x8c] sm:$0xf]
  %v105 = vld [vmem:[%s1 + $0x90] sm:$0xf]
  %v106 = vld [vmem:[%s1 + $0x94] sm:$0xf]
  %v107 = vld [vmem:[%s1 + $0x98] sm:$0xf]
  %v108 = vld [vmem:[%s1 + $0x9c] sm:$0xf]
  %v109 = vld [vmem:[%s1 + $0xa0] sm:$0xf]
  %v110 = vld [vmem:[%s1 + $0xa4] sm:$0xf]
  %v111 = vld [vmem:[%s1 + $0xa8] sm:$0xf]
  %v112 = vld [vmem:[%s1 + $0xac] sm:$0xf]
  %v113 = vld [vmem:[%s1 + $0xb0] sm:$0xf]
  %v114 = vld [vmem:[%s1 + $0xb4] sm:$0xf]
  %v115 = vld [vmem:[%s1 + $0xb8] sm:$0xf]
  %v116 = vld [vmem:[%s1 + $0xbc] sm:$0xf]
  %v117 = vld [vmem:[%s1 + $0xc0] sm:$0xf]
  %v118 = vld [vmem:[%s1 + $0xc4] sm:$0xf]
  %v119 = vld [vmem:[%s1 + $0xc8] sm:$0xf]
  %v120 = vld [vmem:[%s1 + $0xcc] sm:$0xf]
  %v121 = vld [vmem:[%s1 + $0xd0] sm:$0xf]
  %v122 = vld [vmem:[%s1 + $0xd4] sm:$0xf]
  %v123 = vld [vmem:[%s1 + $0xd8] sm:$0xf]
  %v124 = vld [vmem:[%s1 + $0xdc] sm:$0xf]
  %v125 = vld [vmem:[%s1 + $0xe0] sm:$0xf]
  %v126 = vld [vmem:[%s1 + $0xe4] sm:$0xf]
  %v127 = vld [vmem:[%s1 + $0xe8] sm:$0xf]
  %v128 = vld [vmem:[%s1 + $0xec] sm:$0xf]
  %v129 = vld [vmem:[%s1 + $0xf0] sm:$0xf]
  %v130 = vld [vmem:[%s1 + $0xf4] sm:$0xf]
  %v131 = vld [vmem:[%s1 + $0xf8] sm:$0xf]
  %v132 = vld [vmem:[%s1 + $0xfc] sm:$0xf]
  %v133 = vld [vmem:[%s1 + $0x100] sm:$0xf]
  %v134 = vld [vmem:[%s1 + $0x104] sm:$0xf]
  %v135 = vld [vmem:[%s1 + $0x108] sm:$0xf]
  %v136 = vld [vmem:[%s1 + $0x10c] sm:$0xf]
  %v137 = vld [vmem:[%s1 + $0x110] sm:$0xf]
  %v138 = vld [vmem:[%s1 + $0x114] sm:$0xf]
  %v139 = vld [vmem:[%s1 + $0x118] sm:$0xf]
  %v140 = vld [vmem:[%s1 + $0x11c] sm:$0xf]
  %v189 = vunpack.c.l.b16 %v21
  %v190 = vunpack.c.h.b16 %v21
  %v191 = vunpack.c.l.b16 %v22
  %v192 = vunpack.c.h.b16 %v22
  %v193 = vunpack.c.l.b16 %v23
  %v194 = vunpack.c.l.b16 %v24
  %v195 = vunpack.c.h.b16 %v24
  %v196 = vunpack.c.l.b16 %v25
  %v197 = vunpack.c.h.b16 %v25
  %v198 = vunpack.c.l.b16 %v26
  %v199 = vunpack.c.l.b16 %v27
  %v200 = vunpack.c.h.b16 %v27
  %v201 = vunpack.c.l.b16 %v28
  %v202 = vunpack.c.h.b16 %v28
  %v203 = vunpack.c.l.b16 %v29
  %v204 = vunpack.c.l.b16 %v30
  %v205 = vunpack.c.h.b16 %v30
  %v206 = vunpack.c.l.b16 %v31
  %v207 = vunpack.c.h.b16 %v31
  %v208 = vunpack.c.l.b16 %v32
  %v209 = vunpack.c.l.b16 %v33
  %v210 = vunpack.c.h.b16 %v33
  %v211 = vunpack.c.l.b16 %v34
  %v212 = vunpack.c.h.b16 %v34
  %v213 = vunpack.c.l.b16 %v35
  %v214 = vunpack.c.l.b16 %v36
  %v215 = vunpack.c.h.b16 %v36
  %v216 = vunpack.c.l.b16 %v37
  %v217 = vunpack.c.h.b16 %v37
  %v218 = vunpack.c.l.b16 %v38
  %v219 = vunpack.c.l.b16 %v39
  %v220 = vunpack.c.h.b16 %v39
  %v221 = vunpack.c.l.b16 %v40
  %v222 = vunpack.c.h.b16 %v40
  %v223 = vunpack.c.l.b16 %v41
  %v224 = vunpack.c.l.b16 %v42
  %v225 = vunpack.c.h.b16 %v42
  %v226 = vunpack.c.l.b16 %v43
  %v227 = vunpack.c.h.b16 %v43
  %v228 = vunpack.c.l.b16 %v44
  %v229 = vunpack.c.l.b16 %v45
  %v230 = vunpack.c.h.b16 %v45
  %v231 = vunpack.c.l.b16 %v46
  %v232 = vunpack.c.h.b16 %v46
  %v233 = vunpack.c.l.b16 %v47
  %v234 = vunpack.c.l.b16 %v48
  %v235 = vunpack.c.h.b16 %v48
  %v236 = vunpack.c.l.b16 %v49
  %v237 = vunpack.c.h.b16 %v49
  %v238 = vunpack.c.l.b16 %v50
  %v239 = vunpack.c.l.b16 %v51
  %v240 = vunpack.c.h.b16 %v51
  %v241 = vunpack.c.l.b16 %v52
  %v242 = vunpack.c.h.b16 %v52
  %v243 = vunpack.c.l.b16 %v53
  %v244 = vunpack.c.l.b16 %v54
  %v245 = vunpack.c.h.b16 %v54
  %v246 = vunpack.c.l.b16 %v55
  %v247 = vunpack.c.h.b16 %v55
  %v248 = vunpack.c.l.b16 %v56
  %v249 = vunpack.c.l.b16 %v57
  %v250 = vunpack.c.h.b16 %v57
  %v251 = vunpack.c.l.b16 %v58
  %v252 = vunpack.c.h.b16 %v58
  %v253 = vunpack.c.l.b16 %v59
  %v254 = vunpack.c.l.b16 %v60
  %v255 = vunpack.c.h.b16 %v60
  %v256 = vunpack.c.l.b16 %v61
  %v257 = vunpack.c.h.b16 %v61
  %v258 = vunpack.c.l.b16 %v62
  %v259 = vunpack.c.l.b16 %v63
  %v260 = vunpack.c.h.b16 %v63
  %v261 = vunpack.c.l.b16 %v64
  %v262 = vunpack.c.h.b16 %v64
  %v263 = vunpack.c.l.b16 %v65
  %v264 = vunpack.c.l.b16 %v66
  %v265 = vunpack.c.h.b16 %v66
  %v266 = vunpack.c.l.b16 %v67
  %v267 = vunpack.c.h.b16 %v67
  %v268 = vunpack.c.l.b16 %v68
  %v269 = vpack.c.b16 %v194, %v189
  %v270 = vpack.c.b16 %v195, %v190
  %v271 = vpack.c.b16 %v196, %v191
  %v272 = vpack.c.b16 %v197, %v192
  %v273 = vpack.c.b16 %v198, %v193
  %v274 = vpack.c.b16 %v204, %v199
  %v275 = vpack.c.b16 %v205, %v200
  %v276 = vpack.c.b16 %v206, %v201
  %v277 = vpack.c.b16 %v207, %v202
  %v278 = vpack.c.b16 %v208, %v203
  %v279 = vpack.c.b16 %v214, %v209
  %v280 = vpack.c.b16 %v215, %v210
  %v281 = vpack.c.b16 %v216, %v211
  %v282 = vpack.c.b16 %v217, %v212
  %v283 = vpack.c.b16 %v218, %v213
  %v284 = vpack.c.b16 %v224, %v219
  %v285 = vpack.c.b16 %v225, %v220
  %v286 = vpack.c.b16 %v226, %v221
  %v287 = vpack.c.b16 %v227, %v222
  %v288 = vpack.c.b16 %v228, %v223
  %v289 = vpack.c.b16 %v234, %v229
  %v290 = vpack.c.b16 %v235, %v230
  %v291 = vpack.c.b16 %v236, %v231
  %v292 = vpack.c.b16 %v237, %v232
  %v293 = vpack.c.b16 %v238, %v233
  %v294 = vpack.c.b16 %v244, %v239
  %v295 = vpack.c.b16 %v245, %v240
  %v296 = vpack.c.b16 %v246, %v241
  %v297 = vpack.c.b16 %v247, %v242
  %v298 = vpack.c.b16 %v248, %v243
  %v299 = vpack.c.b16 %v254, %v249
  %v300 = vpack.c.b16 %v255, %v250
  %v301 = vpack.c.b16 %v256, %v251
  %v302 = vpack.c.b16 %v257, %v252
  %v303 = vpack.c.b16 %v258, %v253
  %v304 = vpack.c.b16 %v264, %v259
  %v305 = vpack.c.b16 %v265, %v260
  %v306 = vpack.c.b16 %v266, %v261
  %v307 = vpack.c.b16 %v267, %v262
  %v308 = vpack.c.b16 %v268, %v263
  %v413 = vunpack.c.l.b16 %v69
  %v414 = vunpack.c.l.b16 %v70
  %v415 = vunpack.c.l.b16 %v71
  %v416 = vunpack.c.l.b16 %v72
  %v417 = vunpack.c.l.b16 %v73
  %v418 = vunpack.c.l.b16 %v74
  %v419 = vunpack.c.l.b16 %v75
  %v420 = vunpack.c.l.b16 %v76
  %v421 = vunpack.c.l.b16 %v77
  %v422 = vunpack.c.l.b16 %v78
  %v423 = vunpack.c.l.b16 %v79
  %v424 = vunpack.c.l.b16 %v80
  %v425 = vunpack.c.l.b16 %v81
  %v426 = vunpack.c.l.b16 %v82
  %v427 = vunpack.c.l.b16 %v83
  %v428 = vunpack.c.l.b16 %v84
  %v429 = vunpack.c.l.b16 %v85
  %v430 = vunpack.c.l.b16 %v86
  %v431 = vunpack.c.l.b16 %v87
  %v432 = vunpack.c.l.b16 %v88
  %v433 = vunpack.c.l.b16 %v89
  %v434 = vunpack.c.l.b16 %v90
  %v435 = vunpack.c.l.b16 %v91
  %v436 = vunpack.c.l.b16 %v92
  %v437 = vunpack.c.l.b16 %v93
  %v438 = vunpack.c.l.b16 %v94
  %v439 = vunpack.c.l.b16 %v95
  %v440 = vunpack.c.l.b16 %v96
  %v441 = vunpack.c.l.b16 %v97
  %v442 = vunpack.c.l.b16 %v98
  %v443 = vunpack.c.l.b16 %v99
  %v444 = vunpack.c.l.b16 %v100
  %v445 = vunpack.c.l.b16 %v101
  %v446 = vunpack.c.l.b16 %v102
  %v447 = vunpack.c.l.b16 %v103
  %v448 = vunpack.c.l.b16 %v104
  %v449 = vunpack.c.l.b16 %v105
  %v450 = vunpack.c.l.b16 %v106
  %v451 = vunpack.c.l.b16 %v107
  %v452 = vunpack.c.l.b16 %v108
  %v453 = vunpack.c.l.b16 %v109
  %v454 = vunpack.c.l.b16 %v110
  %v455 = vunpack.c.l.b16 %v111
  %v456 = vunpack.c.l.b16 %v112
  %v457 = vunpack.c.l.b16 %v113
  %v458 = vunpack.c.l.b16 %v114
  %v459 = vunpack.c.l.b16 %v115
  %v460 = vunpack.c.l.b16 %v116
  %v461 = vunpack.c.l.b16 %v117
  %v462 = vunpack.c.l.b16 %v118
  %v463 = vunpack.c.l.b16 %v119
  %v464 = vunpack.c.l.b16 %v120
  %v465 = vunpack.c.l.b16 %v121
  %v466 = vunpack.c.l.b16 %v122
  %v467 = vunpack.c.l.b16 %v123
  %v468 = vunpack.c.l.b16 %v124
  %v469 = vunpack.c.l.b16 %v125
  %v470 = vunpack.c.l.b16 %v126
  %v471 = vunpack.c.l.b16 %v127
  %v472 = vunpack.c.l.b16 %v128
  %v473 = vunpack.c.l.b16 %v129
  %v474 = vunpack.c.l.b16 %v130
  %v475 = vunpack.c.l.b16 %v131
  %v476 = vunpack.c.l.b16 %v132
  %v477 = vunpack.c.l.b16 %v133
  %v478 = vunpack.c.l.b16 %v134
  %v479 = vunpack.c.l.b16 %v135
  %v480 = vunpack.c.l.b16 %v136
  %v481 = vunpack.c.l.b16 %v137
  %v482 = vunpack.c.l.b16 %v138
  %v483 = vunpack.c.l.b16 %v139
  %v484 = vunpack.c.l.b16 %v140
  %v485 = vpack.c.b16 %v414, %v413
  %v486 = vpack.c.b16 %v416, %v415
  %v487 = vpack.c.b16 %v418, %v417
  %v488 = vpack.c.b16 %v420, %v419
  %v489 = vpack.c.b16 %v422, %v421
  %v490 = vpack.c.b16 %v424, %v423
  %v491 = vpack.c.b16 %v426, %v425
  %v492 = vpack.c.b16 %v428, %v427
  %v493 = vpack.c.b16 %v430, %v429
  %v494 = vpack.c.b16 %v432, %v431
  %v495 = vpack.c.b16 %v434, %v433
  %v496 = vpack.c.b16 %v436, %v435
  %v497 = vpack.c.b16 %v438, %v437
  %v498 = vpack.c.b16 %v440, %v439
  %v499 = vpack.c.b16 %v442, %v441
  %v500 = vpack.c.b16 %v444, %v443
  %v501 = vpack.c.b16 %v446, %v445
  %v502 = vpack.c.b16 %v448, %v447
  %v503 = vpack.c.b16 %v450, %v449
  %v504 = vpack.c.b16 %v452, %v451
  %v505 = vpack.c.b16 %v454, %v453
  %v506 = vpack.c.b16 %v456, %v455
  %v507 = vpack.c.b16 %v458, %v457
  %v508 = vpack.c.b16 %v460, %v459
  %v509 = vpack.c.b16 %v462, %v461
  %v510 = vpack.c.b16 %v464, %v463
  %v511 = vpack.c.b16 %v466, %v465
  %v512 = vpack.c.b16 %v468, %v467
  %v513 = vpack.c.b16 %v470, %v469
  %v514 = vpack.c.b16 %v472, %v471
  %v515 = vpack.c.b16 %v474, %v473
  %v516 = vpack.c.b16 %v476, %v475
  %v517 = vpack.c.b16 %v478, %v477
  %v518 = vpack.c.b16 %v480, %v479
  %v519 = vpack.c.b16 %v482, %v481
  %v520 = vpack.c.b16 %v484, %v483
  %vm557 = vcmask 523264
  %v559 = vsel %vm557, %v273, 0
  %v562 = vsel %vm557, %v278, 0
  %v565 = vsel %vm557, %v283, 0
  %v568 = vsel %vm557, %v288, 0
  %v571 = vsel %vm557, %v293, 0
  %v574 = vsel %vm557, %v298, 0
  %v577 = vsel %vm557, %v303, 0
  %v580 = vsel %vm557, %v308, 0
  %582 = vmatpush.bf16.msra.mxu0 %v492
  %583 = vmatpush.bf16.msra.mxu0 %v491
  %584 = vmatpush.bf16.msra.mxu0 %v490
  %585 = vmatpush.bf16.msra.mxu0 %v489
  %586 = vmatpush.bf16.msra.mxu0 %v488
  %587 = vmatpush.bf16.msra.mxu0 %v487
  %588 = vmatpush.bf16.msra.mxu0 %v486
  %589 = vmatpush.bf16.msra.mxu0 %v485
  %590 = vmatmul.bf16.gmra.mxu0 %v269
  %v591 = vpop.f32.mrf.mxu0
  %v592 = vadd.f32 0.0, %v591
  %v593 = vpop.f32.mrf.mxu0
  %v594 = vadd.f32 0.0, %v593
  %595 = vmatmul.bf16.gmra.mxu0 %v274
  %v596 = vpop.f32.mrf.mxu0
  %v597 = vadd.f32 0.0, %v596
  %v598 = vpop.f32.mrf.mxu0
  %v599 = vadd.f32 0.0, %v598
  %600 = vmatmul.bf16.gmra.mxu0 %v279
  %v601 = vpop.f32.mrf.mxu0
  %v602 = vadd.f32 0.0, %v601
  %v603 = vpop.f32.mrf.mxu0
  %v604 = vadd.f32 0.0, %v603
  %605 = vmatmul.bf16.gmra.mxu0 %v284
  %v606 = vpop.f32.mrf.mxu0
  %v607 = vadd.f32 0.0, %v606
  %v608 = vpop.f32.mrf.mxu0
  %v609 = vadd.f32 0.0, %v608
  %610 = vmatmul.bf16.gmra.mxu0 %v289
  %v611 = vpop.f32.mrf.mxu0
  %v612 = vadd.f32 0.0, %v611
  %v613 = vpop.f32.mrf.mxu0
  %v614 = vadd.f32 0.0, %v613
  %615 = vmatmul.bf16.gmra.mxu0 %v294
  %v616 = vpop.f32.mrf.mxu0
  %v617 = vadd.f32 0.0, %v616
  %v618 = vpop.f32.mrf.mxu0
  %v619 = vadd.f32 0.0, %v618
  %620 = vmatmul.bf16.gmra.mxu0 %v299
  %v621 = vpop.f32.mrf.mxu0
  %v622 = vadd.f32 0.0, %v621
  %v623 = vpop.f32.mrf.mxu0
  %v624 = vadd.f32 0.0, %v623
  %625 = vmatmul.bf16.gmra.mxu0 %v304
  %v626 = vpop.f32.mrf.mxu0
  %v627 = vadd.f32 0.0, %v626
  %v628 = vpop.f32.mrf.mxu0
  %v629 = vadd.f32 0.0, %v628
  %630 = vdwg.mxu0
  %631 = vmatpush.bf16.msra.mxu0 %v500
  %632 = vmatpush.bf16.msra.mxu0 %v499
  %633 = vmatpush.bf16.msra.mxu0 %v498
  %634 = vmatpush.bf16.msra.mxu0 %v497
  %635 = vmatpush.bf16.msra.mxu0 %v496
  %636 = vmatpush.bf16.msra.mxu0 %v495
  %637 = vmatpush.bf16.msra.mxu0 %v494
  %638 = vmatpush.bf16.msra.mxu0 %v493
  %639 = vmatmul.bf16.gmra.mxu0 %v270
  %v640 = vpop.f32.mrf.mxu0
  %v641 = vadd.f32 %v592, %v640
  %v642 = vpop.f32.mrf.mxu0
  %v643 = vadd.f32 %v594, %v642
  %644 = vmatmul.bf16.gmra.mxu0 %v275
  %v645 = vpop.f32.mrf.mxu0
  %v646 = vadd.f32 %v597, %v645
  %v647 = vpop.f32.mrf.mxu0
  %v648 = vadd.f32 %v599, %v647
  %649 = vmatmul.bf16.gmra.mxu0 %v280
  %v650 = vpop.f32.mrf.mxu0
  %v651 = vadd.f32 %v602, %v650
  %v652 = vpop.f32.mrf.mxu0
  %v653 = vadd.f32 %v604, %v652
  %654 = vmatmul.bf16.gmra.mxu0 %v285
  %v655 = vpop.f32.mrf.mxu0
  %v656 = vadd.f32 %v607, %v655
  %v657 = vpop.f32.mrf.mxu0
  %v658 = vadd.f32 %v609, %v657
  %659 = vmatmul.bf16.gmra.mxu0 %v290
  %v660 = vpop.f32.mrf.mxu0
  %v661 = vadd.f32 %v612, %v660
  %v662 = vpop.f32.mrf.mxu0
  %v663 = vadd.f32 %v614, %v662
  %664 = vmatmul.bf16.gmra.mxu0 %v295
  %v665 = vpop.f32.mrf.mxu0
  %v666 = vadd.f32 %v617, %v665
  %v667 = vpop.f32.mrf.mxu0
  %v668 = vadd.f32 %v619, %v667
  %669 = vmatmul.bf16.gmra.mxu0 %v300
  %v670 = vpop.f32.mrf.mxu0
  %v671 = vadd.f32 %v622, %v670
  %v672 = vpop.f32.mrf.mxu0
  %v673 = vadd.f32 %v624, %v672
  %674 = vmatmul.bf16.gmra.mxu0 %v305
  %v675 = vpop.f32.mrf.mxu0
  %v676 = vadd.f32 %v627, %v675
  %v677 = vpop.f32.mrf.mxu0
  %v678 = vadd.f32 %v629, %v677
  %679 = vdwg.mxu0
  %680 = vmatpush.bf16.msra.mxu0 %v508
  %681 = vmatpush.bf16.msra.mxu0 %v507
  %682 = vmatpush.bf16.msra.mxu0 %v506
  %683 = vmatpush.bf16.msra.mxu0 %v505
  %684 = vmatpush.bf16.msra.mxu0 %v504
  %685 = vmatpush.bf16.msra.mxu0 %v503
  %686 = vmatpush.bf16.msra.mxu0 %v502
  %687 = vmatpush.bf16.msra.mxu0 %v501
  %688 = vmatmul.bf16.gmra.mxu0 %v271
  %v689 = vpop.f32.mrf.mxu0
  %v690 = vadd.f32 %v641, %v689
  %v691 = vpop.f32.mrf.mxu0
  %v692 = vadd.f32 %v643, %v691
  %693 = vmatmul.bf16.gmra.mxu0 %v276
  %v694 = vpop.f32.mrf.mxu0
  %v695 = vadd.f32 %v646, %v694
  %v696 = vpop.f32.mrf.mxu0
  %v697 = vadd.f32 %v648, %v696
  %698 = vmatmul.bf16.gmra.mxu0 %v281
  %v699 = vpop.f32.mrf.mxu0
  %v700 = vadd.f32 %v651, %v699
  %v701 = vpop.f32.mrf.mxu0
  %v702 = vadd.f32 %v653, %v701
  %703 = vmatmul.bf16.gmra.mxu0 %v286
  %v704 = vpop.f32.mrf.mxu0
  %v705 = vadd.f32 %v656, %v704
  %v706 = vpop.f32.mrf.mxu0
  %v707 = vadd.f32 %v658, %v706
  %708 = vmatmul.bf16.gmra.mxu0 %v291
  %v709 = vpop.f32.mrf.mxu0
  %v710 = vadd.f32 %v661, %v709
  %v711 = vpop.f32.mrf.mxu0
  %v712 = vadd.f32 %v663, %v711
  %713 = vmatmul.bf16.gmra.mxu0 %v296
  %v714 = vpop.f32.mrf.mxu0
  %v715 = vadd.f32 %v666, %v714
  %v716 = vpop.f32.mrf.mxu0
  %v717 = vadd.f32 %v668, %v716
  %718 = vmatmul.bf16.gmra.mxu0 %v301
  %v719 = vpop.f32.mrf.mxu0
  %v720 = vadd.f32 %v671, %v719
  %v721 = vpop.f32.mrf.mxu0
  %v722 = vadd.f32 %v673, %v721
  %723 = vmatmul.bf16.gmra.mxu0 %v306
  %v724 = vpop.f32.mrf.mxu0
  %v725 = vadd.f32 %v676, %v724
  %v726 = vpop.f32.mrf.mxu0
  %v727 = vadd.f32 %v678, %v726
  %728 = vdwg.mxu0
  %729 = vmatpush.bf16.msra.mxu0 %v516
  %730 = vmatpush.bf16.msra.mxu0 %v515
  %731 = vmatpush.bf16.msra.mxu0 %v514
  %732 = vmatpush.bf16.msra.mxu0 %v513
  %733 = vmatpush.bf16.msra.mxu0 %v512
  %734 = vmatpush.bf16.msra.mxu0 %v511
  %735 = vmatpush.bf16.msra.mxu0 %v510
  %736 = vmatpush.bf16.msra.mxu0 %v509
  %737 = vmatmul.bf16.gmra.mxu0 %v272
  %v738 = vpop.f32.mrf.mxu0
  %v739 = vadd.f32 %v690, %v738
  %v740 = vpop.f32.mrf.mxu0
  %v741 = vadd.f32 %v692, %v740
  %742 = vmatmul.bf16.gmra.mxu0 %v277
  %v743 = vpop.f32.mrf.mxu0
  %v744 = vadd.f32 %v695, %v743
  %v745 = vpop.f32.mrf.mxu0
  %v746 = vadd.f32 %v697, %v745
  %747 = vmatmul.bf16.gmra.mxu0 %v282
  %v748 = vpop.f32.mrf.mxu0
  %v749 = vadd.f32 %v700, %v748
  %v750 = vpop.f32.mrf.mxu0
  %v751 = vadd.f32 %v702, %v750
  %752 = vmatmul.bf16.gmra.mxu0 %v287
  %v753 = vpop.f32.mrf.mxu0
  %v754 = vadd.f32 %v705, %v753
  %v755 = vpop.f32.mrf.mxu0
  %v756 = vadd.f32 %v707, %v755
  %757 = vmatmul.bf16.gmra.mxu0 %v292
  %v758 = vpop.f32.mrf.mxu0
  %v759 = vadd.f32 %v710, %v758
  %v760 = vpop.f32.mrf.mxu0
  %v761 = vadd.f32 %v712, %v760
  %762 = vmatmul.bf16.gmra.mxu0 %v297
  %v763 = vpop.f32.mrf.mxu0
  %v764 = vadd.f32 %v715, %v763
  %v765 = vpop.f32.mrf.mxu0
  %v766 = vadd.f32 %v717, %v765
  %767 = vmatmul.bf16.gmra.mxu0 %v302
  %v768 = vpop.f32.mrf.mxu0
  %v769 = vadd.f32 %v720, %v768
  %v770 = vpop.f32.mrf.mxu0
  %v771 = vadd.f32 %v722, %v770
  %772 = vmatmul.bf16.gmra.mxu0 %v307
  %v773 = vpop.f32.mrf.mxu0
  %v774 = vadd.f32 %v725, %v773
  %v775 = vpop.f32.mrf.mxu0
  %v776 = vadd.f32 %v727, %v775
  %777 = vdwg.mxu0
  %778 = vmatpush.bf16.msra.mxu0 0
  %779 = vmatpush.bf16.msra.mxu0 0
  %780 = vmatpush.bf16.msra.mxu0 0
  %781 = vmatpush.bf16.msra.mxu0 0
  %782 = vmatpush.bf16.msra.mxu0 %v520
  %783 = vmatpush.bf16.msra.mxu0 %v519
  %784 = vmatpush.bf16.msra.mxu0 %v518
  %785 = vmatpush.bf16.msra.mxu0 %v517
  %786 = vmatmul.bf16.gmra.mxu0 %v559
  %v787 = vpop.f32.mrf.mxu0
  %v788 = vadd.f32 %v739, %v787
  %v789 = vpop.f32.mrf.mxu0
  %v790 = vadd.f32 %v741, %v789
  %791 = vmatmul.bf16.gmra.mxu0 %v562
  %v792 = vpop.f32.mrf.mxu0
  %v793 = vadd.f32 %v744, %v792
  %v794 = vpop.f32.mrf.mxu0
  %v795 = vadd.f32 %v746, %v794
  %796 = vmatmul.bf16.gmra.mxu0 %v565
  %v797 = vpop.f32.mrf.mxu0
  %v798 = vadd.f32 %v749, %v797
  %v799 = vpop.f32.mrf.mxu0
  %v800 = vadd.f32 %v751, %v799
  %801 = vmatmul.bf16.gmra.mxu0 %v568
  %v802 = vpop.f32.mrf.mxu0
  %v803 = vadd.f32 %v754, %v802
  %v804 = vpop.f32.mrf.mxu0
  %v805 = vadd.f32 %v756, %v804
  %806 = vmatmul.bf16.gmra.mxu0 %v571
  %v807 = vpop.f32.mrf.mxu0
  %v808 = vadd.f32 %v759, %v807
  %v809 = vpop.f32.mrf.mxu0
  %v810 = vadd.f32 %v761, %v809
  %811 = vmatmul.bf16.gmra.mxu0 %v574
  %v812 = vpop.f32.mrf.mxu0
  %v813 = vadd.f32 %v764, %v812
  %v814 = vpop.f32.mrf.mxu0
  %v815 = vadd.f32 %v766, %v814
  %816 = vmatmul.bf16.gmra.mxu0 %v577
  %v817 = vpop.f32.mrf.mxu0
  %v818 = vadd.f32 %v769, %v817
  %v819 = vpop.f32.mrf.mxu0
  %v820 = vadd.f32 %v771, %v819
  %821 = vmatmul.bf16.gmra.mxu0 %v580
  %v822 = vpop.f32.mrf.mxu0
  %v823 = vadd.f32 %v774, %v822
  %v824 = vpop.f32.mrf.mxu0
  %v825 = vadd.f32 %v776, %v824
  %826 = vdwg.mxu0
  %v827 = vld [vmem:[%s2] sm:$0x1]
  %v829 = vperm.slane %v827, 0
  %v831 = vmul.f32 %v788, %v829
  %v832 = vmul.f32 %v790, %v829
  %v833 = vmul.f32 %v793, %v829
  %v834 = vmul.f32 %v795, %v829
  %v835 = vmul.f32 %v798, %v829
  %v836 = vmul.f32 %v800, %v829
  %v837 = vmul.f32 %v803, %v829
  %v838 = vmul.f32 %v805, %v829
  %v839 = vmul.f32 %v808, %v829
  %v840 = vmul.f32 %v810, %v829
  %v841 = vmul.f32 %v813, %v829
  %v842 = vmul.f32 %v815, %v829
  %v843 = vmul.f32 %v818, %v829
  %v844 = vmul.f32 %v820, %v829
  %v845 = vmul.f32 %v823, %v829
  %v846 = vmul.f32 %v825, %v829
  %v847 = vld [vmem:[%s3] sm:$0x1]
  %v849 = vperm.slane %v847, 0
  %v851 = vadd.f32 %v831, %v849
  %v852 = vadd.f32 %v832, %v849
  %v853 = vadd.f32 %v833, %v849
  %v854 = vadd.f32 %v834, %v849
  %v855 = vadd.f32 %v835, %v849
  %v856 = vadd.f32 %v836, %v849
  %v857 = vadd.f32 %v837, %v849
  %v858 = vadd.f32 %v838, %v849
  %v859 = vadd.f32 %v839, %v849
  %v860 = vadd.f32 %v840, %v849
  %v861 = vadd.f32 %v841, %v849
  %v862 = vadd.f32 %v842, %v849
  %v863 = vadd.f32 %v843, %v849
  %v864 = vadd.f32 %v844, %v849
  %v865 = vadd.f32 %v845, %v849
  %v866 = vadd.f32 %v846, %v849
  %v867 = vld [vmem:[%s4] sm:$0xff]
  %v868 = vld [vmem:[%s4 + $0x8] sm:$0xff]
  %v869 = vld [vmem:[%s4 + $0x10] sm:$0xff]
  %v870 = vld [vmem:[%s4 + $0x18] sm:$0xff]
  %v871 = vld [vmem:[%s4 + $0x20] sm:$0xff]
  %v872 = vld [vmem:[%s4 + $0x28] sm:$0xff]
  %v873 = vld [vmem:[%s4 + $0x30] sm:$0xff]
  %v874 = vld [vmem:[%s4 + $0x38] sm:$0xff]
  %v875 = vld [vmem:[%s4 + $0x40] sm:$0xff]
  %v876 = vld [vmem:[%s4 + $0x48] sm:$0xff]
  %v877 = vld [vmem:[%s4 + $0x50] sm:$0xff]
  %v878 = vld [vmem:[%s4 + $0x58] sm:$0xff]
  %v879 = vld [vmem:[%s4 + $0x60] sm:$0xff]
  %v880 = vld [vmem:[%s4 + $0x68] sm:$0xff]
  %v881 = vld [vmem:[%s4 + $0x70] sm:$0xff]
  %v882 = vld [vmem:[%s4 + $0x78] sm:$0xff]
  %v883 = vadd.f32 %v851, %v867
  %v884 = vadd.f32 %v852, %v868
  %v885 = vadd.f32 %v853, %v869
  %v886 = vadd.f32 %v854, %v870
  %v887 = vadd.f32 %v855, %v871
  %v888 = vadd.f32 %v856, %v872
  %v889 = vadd.f32 %v857, %v873
  %v890 = vadd.f32 %v858, %v874
  %v891 = vadd.f32 %v859, %v875
  %v892 = vadd.f32 %v860, %v876
  %v893 = vadd.f32 %v861, %v877
  %v894 = vadd.f32 %v862, %v878
  %v895 = vadd.f32 %v863, %v879
  %v896 = vadd.f32 %v864, %v880
  %v897 = vadd.f32 %v865, %v881
  %v898 = vadd.f32 %v866, %v882
  %v899 = vmax.f32 %v883, 0.0
  %v900 = vmax.f32 %v884, 0.0
  %v901 = vmax.f32 %v885, 0.0
  %v902 = vmax.f32 %v886, 0.0
  %v903 = vmax.f32 %v887, 0.0
  %v904 = vmax.f32 %v888, 0.0
  %v905 = vmax.f32 %v889, 0.0
  %v906 = vmax.f32 %v890, 0.0
  %v907 = vmax.f32 %v891, 0.0
  %v908 = vmax.f32 %v892, 0.0
  %v909 = vmax.f32 %v893, 0.0
  %v910 = vmax.f32 %v894, 0.0
  %v911 = vmax.f32 %v895, 0.0
  %v912 = vmax.f32 %v896, 0.0
  %v913 = vmax.f32 %v897, 0.0
  %v914 = vmax.f32 %v898, 0.0
  %915 = vst.msk [vmem:[%s5] sm:$0xff] %vm557, %v899
  %916 = vst.msk [vmem:[%s5 + $0x8] sm:$0xff] %vm557, %v900
  %917 = vst.msk [vmem:[%s5 + $0x10] sm:$0xff] %vm557, %v901
  %918 = vst.msk [vmem:[%s5 + $0x18] sm:$0xff] %vm557, %v902
  %919 = vst.msk [vmem:[%s5 + $0x20] sm:$0xff] %vm557, %v903
  %920 = vst.msk [vmem:[%s5 + $0x28] sm:$0xff] %vm557, %v904
  %921 = vst.msk [vmem:[%s5 + $0x30] sm:$0xff] %vm557, %v905
  %922 = vst.msk [vmem:[%s5 + $0x38] sm:$0xff] %vm557, %v906
  %923 = vst.msk [vmem:[%s5 + $0x40] sm:$0xff] %vm557, %v907
  %924 = vst.msk [vmem:[%s5 + $0x48] sm:$0xff] %vm557, %v908
  %925 = vst.msk [vmem:[%s5 + $0x50] sm:$0xff] %vm557, %v909
  %926 = vst.msk [vmem:[%s5 + $0x58] sm:$0xff] %vm557, %v910
  %927 = vst.msk [vmem:[%s5 + $0x60] sm:$0xff] %vm557, %v911
  %928 = vst.msk [vmem:[%s5 + $0x68] sm:$0xff] %vm557, %v912
  %929 = vst.msk [vmem:[%s5 + $0x70] sm:$0xff] %vm557, %v913
  %930 = vst.msk [vmem:[%s5 + $0x78] sm:$0xff] %vm557, %v914
  // Predicated region
  $region22: #{resnet_forward.12} parent=0 // pred_check
    _
  $region23: #{resnet_forward.12} parent=0 // pred_check_branch
    %932 = sbr.rel (0) target = $region25
  $region24: #{resnet_forward.12} parent=0 // pred_region
    _
  $region25: #{resnet_forward.12} parent=0 // pred_fallthru
    _
  // Predicated region
  $region26: #{resnet_forward.12} parent=0 // pred_check
    _
  $region27: #{resnet_forward.12} parent=0 // pred_check_branch
    %934 = sbr.rel (0) target = $region29
  $region28: #{resnet_forward.12} parent=0 // pred_region
    _
  $region29: #{resnet_forward.12} parent=0 // pred_fallthru
    _

// kernel: resnet_forward.16
$region0: #{resnet_forward.16}
  #allocation0 [shape = 'u32[]', space=smem, size = 0x4, offset = 0x4, fixed_abs, tag = 'smem constant byte address 0x4 - core index']
  #allocation1 [shape = 'u32[72,128]{1,0:T(1,128)}', space=vmem, size = 0x9000, scoped, tag = 'internal scratch']
  %s0 = inlined_call_operand.vmem [shape: bf16[32,576], index: 0, kind: input, shape index: {}]
  %s1 = inlined_call_operand.vmem [shape: bf16[576,128], index: 1, kind: input, shape index: {}]
  %s2 = inlined_call_operand.vmem [shape: f32[1,128], index: 2, kind: input, shape index: {}]
  %s3 = inlined_call_operand.vmem [shape: f32[1,128], index: 3, kind: input, shape index: {}]
  %s4 = inlined_call_operand.vmem [shape: f32[32,128], index: 4, kind: output, shape index: {}]
  %s5 = sld [smem:[#allocation0]]
  $region26: #{resnet_forward.16} parent=0
    _
  %s7 = ssub.s32 1, %s5
  %s8 = scalar_select 0, %s7, %s5
  // Predicated region
  $region2: #{resnet_forward.16} parent=0 // pred_check
    _
  $region3: #{resnet_forward.16} parent=0 // pred_check_branch
    %10 = sbr.rel (0) target = $region5
  $region4: #{resnet_forward.16} parent=0 // pred_region
    _
  $region5: #{resnet_forward.16} parent=0 // pred_fallthru
    _
  // Predicated region
  $region6: #{resnet_forward.16} parent=0 // pred_check
    _
  $region7: #{resnet_forward.16} parent=0 // pred_check_branch
    %12 = sbr.rel (0) target = $region9
  $region8: #{resnet_forward.16} parent=0 // pred_region
    _
  $region9: #{resnet_forward.16} parent=0 // pred_fallthru
    _
  // Predicated region
  $region10: #{resnet_forward.16} parent=0 // pred_check
    _
  $region11: #{resnet_forward.16} parent=0 // pred_check_branch
    %14 = sbr.rel (0) target = $region13
  $region12: #{resnet_forward.16} parent=0 // pred_region
    _
  $region13: #{resnet_forward.16} parent=0 // pred_fallthru
    _
  // Predicated region
  $region14: #{resnet_forward.16} parent=0 // pred_check
    _
  $region15: #{resnet_forward.16} parent=0 // pred_check_branch
    %16 = sbr.rel (0) target = $region17
  $region16: #{resnet_forward.16} parent=0 // pred_region
    _
  $region17: #{resnet_forward.16} parent=0 // pred_fallthru
    _
  %v18 = vld [vmem:[%s0] sm:$0xff]
  %v19 = vld [vmem:[%s0 + $0x8] sm:$0xff]
  %v20 = vld [vmem:[%s0 + $0x10] sm:$0xf]
  %v21 = vld [vmem:[%s0 + $0x14] sm:$0xff]
  %v22 = vld [vmem:[%s0 + $0x1c] sm:$0xff]
  %v23 = vld [vmem:[%s0 + $0x24] sm:$0xf]
  %v24 = vld [vmem:[%s0 + $0x28] sm:$0xff]
  %v25 = vld [vmem:[%s0 + $0x30] sm:$0xff]
  %v26 = vld [vmem:[%s0 + $0x38] sm:$0xf]
  %v27 = vld [vmem:[%s0 + $0x3c] sm:$0xff]
  %v28 = vld [vmem:[%s0 + $0x44] sm:$0xff]
  %v29 = vld [vmem:[%s0 + $0x4c] sm:$0xf]
  %v30 = vld [vmem:[%s1] sm:$0xf]
  %v31 = vld [vmem:[%s1 + $0x4] sm:$0xf]
  %v32 = vld [vmem:[%s1 + $0x8] sm:$0xf]
  %v33 = vld [vmem:[%s1 + $0xc] sm:$0xf]
  %v34 = vld [vmem:[%s1 + $0x10] sm:$0xf]
  %v35 = vld [vmem:[%s1 + $0x14] sm:$0xf]
  %v36 = vld [vmem:[%s1 + $0x18] sm:$0xf]
  %v37 = vld [vmem:[%s1 + $0x1c] sm:$0xf]
  %v38 = vld [vmem:[%s1 + $0x20] sm:$0xf]
  %v39 = vld [vmem:[%s1 + $0x24] sm:$0xf]
  %v40 = vld [vmem:[%s1 + $0x28] sm:$0xf]
  %v41 = vld [vmem:[%s1 + $0x2c] sm:$0xf]
  %v42 = vld [vmem:[%s1 + $0x30] sm:$0xf]
  %v43 = vld [vmem:[%s1 + $0x34] sm:$0xf]
  %v44 = vld [vmem:[%s1 + $0x38] sm:$0xf]
  %v45 = vld [vmem:[%s1 + $0x3c] sm:$0xf]
  %v46 = vld [vmem:[%s1 + $0x40] sm:$0xf]
  %v47 = vld [vmem:[%s1 + $0x44] sm:$0xf]
  %v48 = vld [vmem:[%s1 + $0x48] sm:$0xf]
  %v49 = vld [vmem:[%s1 + $0x4c] sm:$0xf]
  %v50 = vld [vmem:[%s1 + $0x50] sm:$0xf]
  %v51 = vld [vmem:[%s1 + $0x54] sm:$0xf]
  %v52 = vld [vmem:[%s1 + $0x58] sm:$0xf]
  %v53 = vld [vmem:[%s1 + $0x5c] sm:$0xf]
  %v54 = vld [vmem:[%s1 + $0x60] sm:$0xf]
  %v55 = vld [vmem:[%s1 + $0x64] sm:$0xf]
  %v56 = vld [vmem:[%s1 + $0x68] sm:$0xf]
  %v57 = vld [vmem:[%s1 + $0x6c] sm:$0xf]
  %v58 = vld [vmem:[%s1 + $0x70] sm:$0xf]
  %v59 = vld [vmem:[%s1 + $0x74] sm:$0xf]
  %v60 = vld [vmem:[%s1 + $0x78] sm:$0xf]
  %v61 = vld [vmem:[%s1 + $0x7c] sm:$0xf]
  %v62 = vld [vmem:[%s1 + $0x80] sm:$0xf]
  %v63 = vld [vmem:[%s1 + $0x84] sm:$0xf]
  %v64 = vld [vmem:[%s1 + $0x88] sm:$0xf]
  %v65 = vld [vmem:[%s1 + $0x8c] sm:$0xf]
  %v66 = vld [vmem:[%s1 + $0x90] sm:$0xf]
  %v67 = vld [vmem:[%s1 + $0x94] sm:$0xf]
  %v68 = vld [vmem:[%s1 + $0x98] sm:$0xf]
  %v69 = vld [vmem:[%s1 + $0x9c] sm:$0xf]
  %v70 = vld [vmem:[%s1 + $0xa0] sm:$0xf]
  %v71 = vld [vmem:[%s1 + $0xa4] sm:$0xf]
  %v72 = vld [vmem:[%s1 + $0xa8] sm:$0xf]
  %v73 = vld [vmem:[%s1 + $0xac] sm:$0xf]
  %v74 = vld [vmem:[%s1 + $0xb0] sm:$0xf]
  %v75 = vld [vmem:[%s1 + $0xb4] sm:$0xf]
  %v76 = vld [vmem:[%s1 + $0xb8] sm:$0xf]
  %v77 = vld [vmem:[%s1 + $0xbc] sm:$0xf]
  %v78 = vld [vmem:[%s1 + $0xc0] sm:$0xf]
  %v79 = vld [vmem:[%s1 + $0xc4] sm:$0xf]
  %v80 = vld [vmem:[%s1 + $0xc8] sm:$0xf]
  %v81 = vld [vmem:[%s1 + $0xcc] sm:$0xf]
  %v82 = vld [vmem:[%s1 + $0xd0] sm:$0xf]
  %v83 = vld [vmem:[%s1 + $0xd4] sm:$0xf]
  %v84 = vld [vmem:[%s1 + $0xd8] sm:$0xf]
  %v85 = vld [vmem:[%s1 + $0xdc] sm:$0xf]
  %v86 = vld [vmem:[%s1 + $0xe0] sm:$0xf]
  %v87 = vld [vmem:[%s1 + $0xe4] sm:$0xf]
  %v88 = vld [vmem:[%s1 + $0xe8] sm:$0xf]
  %v89 = vld [vmem:[%s1 + $0xec] sm:$0xf]
  %v90 = vld [vmem:[%s1 + $0xf0] sm:$0xf]
  %v91 = vld [vmem:[%s1 + $0xf4] sm:$0xf]
  %v92 = vld [vmem:[%s1 + $0xf8] sm:$0xf]
  %v93 = vld [vmem:[%s1 + $0xfc] sm:$0xf]
  %v94 = vld [vmem:[%s1 + $0x100] sm:$0xf]
  %v95 = vld [vmem:[%s1 + $0x104] sm:$0xf]
  %v96 = vld [vmem:[%s1 + $0x108] sm:$0xf]
  %v97 = vld [vmem:[%s1 + $0x10c] sm:$0xf]
  %v98 = vld [vmem:[%s1 + $0x110] sm:$0xf]
  %v99 = vld [vmem:[%s1 + $0x114] sm:$0xf]
  %v100 = vld [vmem:[%s1 + $0x118] sm:$0xf]
  %v101 = vld [vmem:[%s1 + $0x11c] sm:$0xf]
  %v114 = vunpack.c.l.b16 %v18
  %v115 = vunpack.c.h.b16 %v18
  %v116 = vunpack.c.l.b16 %v19
  %v117 = vunpack.c.h.b16 %v19
  %v118 = vunpack.c.l.b16 %v20
  %v119 = vunpack.c.l.b16 %v21
  %v120 = vunpack.c.h.b16 %v21
  %v121 = vunpack.c.l.b16 %v22
  %v122 = vunpack.c.h.b16 %v22
  %v123 = vunpack.c.l.b16 %v23
  %v124 = vunpack.c.l.b16 %v24
  %v125 = vunpack.c.h.b16 %v24
  %v126 = vunpack.c.l.b16 %v25
  %v127 = vunpack.c.h.b16 %v25
  %v128 = vunpack.c.l.b16 %v26
  %v129 = vunpack.c.l.b16 %v27
  %v130 = vunpack.c.h.b16 %v27
  %v131 = vunpack.c.l.b16 %v28
  %v132 = vunpack.c.h.b16 %v28
  %v133 = vunpack.c.l.b16 %v29
  %v134 = vpack.c.b16 %v119, %v114
  %v135 = vpack.c.b16 %v120, %v115
  %v136 = vpack.c.b16 %v121, %v116
  %v137 = vpack.c.b16 %v122, %v117
  %v138 = vpack.c.b16 %v123, %v118
  %v139 = vpack.c.b16 %v129, %v124
  %v140 = vpack.c.b16 %v130, %v125
  %v141 = vpack.c.b16 %v131, %v126
  %v142 = vpack.c.b16 %v132, %v127
  %v143 = vpack.c.b16 %v133, %v128
  %v224 = vunpack.c.l.b16 %v30
  %v225 = vunpack.c.l.b16 %v31
  %v226 = vunpack.c.l.b16 %v32
  %v227 = vunpack.c.l.b16 %v33
  %v228 = vunpack.c.l.b16 %v34
  %v229 = vunpack.c.l.b16 %v35
  %v230 = vunpack.c.l.b16 %v36
  %v231 = vunpack.c.l.b16 %v37
  %v232 = vunpack.c.l.b16 %v38
  %v233 = vunpack.c.l.b16 %v39
  %v234 = vunpack.c.l.b16 %v40
  %v235 = vunpack.c.l.b16 %v41
  %v236 = vunpack.c.l.b16 %v42
  %v237 = vunpack.c.l.b16 %v43
  %v238 = vunpack.c.l.b16 %v44
  %v239 = vunpack.c.l.b16 %v45
  %v240 = vunpack.c.l.b16 %v46
  %v241 = vunpack.c.l.b16 %v47
  %v242 = vunpack.c.l.b16 %v48
  %v243 = vunpack.c.l.b16 %v49
  %v244 = vunpack.c.l.b16 %v50
  %v245 = vunpack.c.l.b16 %v51
  %v246 = vunpack.c.l.b16 %v52
  %v247 = vunpack.c.l.b16 %v53
  %v248 = vunpack.c.l.b16 %v54
  %v249 = vunpack.c.l.b16 %v55
  %v250 = vunpack.c.l.b16 %v56
  %v251 = vunpack.c.l.b16 %v57
  %v252 = vunpack.c.l.b16 %v58
  %v253 = vunpack.c.l.b16 %v59
  %v254 = vunpack.c.l.b16 %v60
  %v255 = vunpack.c.l.b16 %v61
  %v256 = vunpack.c.l.b16 %v62
  %v257 = vunpack.c.l.b16 %v63
  %v258 = vunpack.c.l.b16 %v64
  %v259 = vunpack.c.l.b16 %v65
  %v260 = vunpack.c.l.b16 %v66
  %v261 = vunpack.c.l.b16 %v67
  %v262 = vunpack.c.l.b16 %v68
  %v263 = vunpack.c.l.b16 %v69
  %v264 = vunpack.c.l.b16 %v70
  %v265 = vunpack.c.l.b16 %v71
  %v266 = vunpack.c.l.b16 %v72
  %v267 = vunpack.c.l.b16 %v73
  %v268 = vunpack.c.l.b16 %v74
  %v269 = vunpack.c.l.b16 %v75
  %v270 = vunpack.c.l.b16 %v76
  %v271 = vunpack.c.l.b16 %v77
  %v272 = vunpack.c.l.b16 %v78
  %v273 = vunpack.c.l.b16 %v79
  %v274 = vunpack.c.l.b16 %v80
  %v275 = vunpack.c.l.b16 %v81
  %v276 = vunpack.c.l.b16 %v82
  %v277 = vunpack.c.l.b16 %v83
  %v278 = vunpack.c.l.b16 %v84
  %v279 = vunpack.c.l.b16 %v85
  %v280 = vunpack.c.l.b16 %v86
  %v281 = vunpack.c.l.b16 %v87
  %v282 = vunpack.c.l.b16 %v88
  %v283 = vunpack.c.l.b16 %v89
  %v284 = vunpack.c.l.b16 %v90
  %v285 = vunpack.c.l.b16 %v91
  %v286 = vunpack.c.l.b16 %v92
  %v287 = vunpack.c.l.b16 %v93
  %v288 = vunpack.c.l.b16 %v94
  %v289 = vunpack.c.l.b16 %v95
  %v290 = vunpack.c.l.b16 %v96
  %v291 = vunpack.c.l.b16 %v97
  %v292 = vunpack.c.l.b16 %v98
  %v293 = vunpack.c.l.b16 %v99
  %v294 = vunpack.c.l.b16 %v100
  %v295 = vunpack.c.l.b16 %v101
  %v296 = vpack.c.b16 %v225, %v224
  %v297 = vpack.c.b16 %v227, %v226
  %v298 = vpack.c.b16 %v229, %v228
  %v299 = vpack.c.b16 %v231, %v230
  %v300 = vpack.c.b16 %v233, %v232
  %v301 = vpack.c.b16 %v235, %v234
  %v302 = vpack.c.b16 %v237, %v236
  %v303 = vpack.c.b16 %v239, %v238
  %v304 = vpack.c.b16 %v241, %v240
  %v305 = vpack.c.b16 %v243, %v242
  %v306 = vpack.c.b16 %v245, %v244
  %v307 = vpack.c.b16 %v247, %v246
  %v308 = vpack.c.b16 %v249, %v248
  %v309 = vpack.c.b16 %v251, %v250
  %v310 = vpack.c.b16 %v253, %v252
  %v311 = vpack.c.b16 %v255, %v254
  %v312 = vpack.c.b16 %v257, %v256
  %v313 = vpack.c.b16 %v259, %v258
  %v314 = vpack.c.b16 %v261, %v260
  %v315 = vpack.c.b16 %v263, %v262
  %v316 = vpack.c.b16 %v265, %v264
  %v317 = vpack.c.b16 %v267, %v266
  %v318 = vpack.c.b16 %v269, %v268
  %v319 = vpack.c.b16 %v271, %v270
  %v320 = vpack.c.b16 %v273, %v272
  %v321 = vpack.c.b16 %v275, %v274
  %v322 = vpack.c.b16 %v277, %v276
  %v323 = vpack.c.b16 %v279, %v278
  %v324 = vpack.c.b16 %v281, %v280
  %v325 = vpack.c.b16 %v283, %v282
  %v326 = vpack.c.b16 %v285, %v284
  %v327 = vpack.c.b16 %v287, %v286
  %v328 = vpack.c.b16 %v289, %v288
  %v329 = vpack.c.b16 %v291, %v290
  %v330 = vpack.c.b16 %v293, %v292
  %v331 = vpack.c.b16 %v295, %v294
  %vm368 = vcmask 523264
  %v370 = vsel %vm368, %v138, 0
  %v373 = vsel %vm368, %v143, 0
  %375 = vmatpush.bf16.msra.mxu0 %v303
  %376 = vmatpush.bf16.msra.mxu0 %v302
  %377 = vmatpush.bf16.msra.mxu0 %v301
  %378 = vmatpush.bf16.msra.mxu0 %v300
  %379 = vmatpush.bf16.msra.mxu0 %v299
  %380 = vmatpush.bf16.msra.mxu0 %v298
  %381 = vmatpush.bf16.msra.mxu0 %v297
  %382 = vmatpush.bf16.msra.mxu0 %v296
  %383 = vmatmul.bf16.gmra.mxu0 %v134
  %v384 = vpop.f32.mrf.mxu0
  %v385 = vadd.f32 0.0, %v384
  %v386 = vpop.f32.mrf.mxu0
  %v387 = vadd.f32 0.0, %v386
  %388 = vmatmul.bf16.gmra.mxu0 %v139
  %v389 = vpop.f32.mrf.mxu0
  %v390 = vadd.f32 0.0, %v389
  %v391 = vpop.f32.mrf.mxu0
  %v392 = vadd.f32 0.0, %v391
  %393 = vdwg.mxu0
  %394 = vmatpush.bf16.msra.mxu0 %v311
  %395 = vmatpush.bf16.msra.mxu0 %v310
  %396 = vmatpush.bf16.msra.mxu0 %v309
  %397 = vmatpush.bf16.msra.mxu0 %v308
  %398 = vmatpush.bf16.msra.mxu0 %v307
  %399 = vmatpush.bf16.msra.mxu0 %v306
  %400 = vmatpush.bf16.msra.mxu0 %v305
  %401 = vmatpush.bf16.msra.mxu0 %v304
  %402 = vmatmul.bf16.gmra.mxu0 %v135
  %v403 = vpop.f32.mrf.mxu0
  %v404 = vadd.f32 %v385, %v403
  %v405 = vpop.f32.mrf.mxu0
  %v406 = vadd.f32 %v387, %v405
  %407 = vmatmul.bf16.gmra.mxu0 %v140
  %v408 = vpop.f32.mrf.mxu0
  %v409 = vadd.f32 %v390, %v408
  %v410 = vpop.f32.mrf.mxu0
  %v411 = vadd.f32 %v392, %v410
  %412 = vdwg.mxu0
  %413 = vmatpush.bf16.msra.mxu0 %v319
  %414 = vmatpush.bf16.msra.mxu0 %v318
  %415 = vmatpush.bf16.msra.mxu0 %v317
  %416 = vmatpush.bf16.msra.mxu0 %v316
  %417 = vmatpush.bf16.msra.mxu0 %v315
  %418 = vmatpush.bf16.msra.mxu0 %v314
  %419 = vmatpush.bf16.msra.mxu0 %v313
  %420 = vmatpush.bf16.msra.mxu0 %v312
  %421 = vmatmul.bf16.gmra.mxu0 %v136
  %v422 = vpop.f32.mrf.mxu0
  %v423 = vadd.f32 %v404, %v422
  %v424 = vpop.f32.mrf.mxu0
  %v425 = vadd.f32 %v406, %v424
  %426 = vmatmul.bf16.gmra.mxu0 %v141
  %v427 = vpop.f32.mrf.mxu0
  %v428 = vadd.f32 %v409, %v427
  %v429 = vpop.f32.mrf.mxu0
  %v430 = vadd.f32 %v411, %v429
  %431 = vdwg.mxu0
  %432 = vmatpush.bf16.msra.mxu0 %v327
  %433 = vmatpush.bf16.msra.mxu0 %v326
  %434 = vmatpush.bf16.msra.mxu0 %v325
  %435 = vmatpush.bf16.msra.mxu0 %v324
  %436 = vmatpush.bf16.msra.mxu0 %v323
  %437 = vmatpush.bf16.msra.mxu0 %v322
  %438 = vmatpush.bf16.msra.mxu0 %v321
  %439 = vmatpush.bf16.msra.mxu0 %v320
  %440 = vmatmul.bf16.gmra.mxu0 %v137
  %v441 = vpop.f32.mrf.mxu0
  %v442 = vadd.f32 %v423, %v441
  %v443 = vpop.f32.mrf.mxu0
  %v444 = vadd.f32 %v425, %v443
  %445 = vmatmul.bf16.gmra.mxu0 %v142
  %v446 = vpop.f32.mrf.mxu0
  %v447 = vadd.f32 %v428, %v446
  %v448 = vpop.f32.mrf.mxu0
  %v449 = vadd.f32 %v430, %v448
  %450 = vdwg.mxu0
  %451 = vmatpush.bf16.msra.mxu0 0
  %452 = vmatpush.bf16.msra.mxu0 0
  %453 = vmatpush.bf16.msra.mxu0 0
  %454 = vmatpush.bf16.msra.mxu0 0
  %455 = vmatpush.bf16.msra.mxu0 %v331
  %456 = vmatpush.bf16.msra.mxu0 %v330
  %457 = vmatpush.bf16.msra.mxu0 %v329
  %458 = vmatpush.bf16.msra.mxu0 %v328
  %459 = vmatmul.bf16.gmra.mxu0 %v370
  %v460 = vpop.f32.mrf.mxu0
  %v461 = vadd.f32 %v442, %v460
  %v462 = vpop.f32.mrf.mxu0
  %v463 = vadd.f32 %v444, %v462
  %464 = vmatmul.bf16.gmra.mxu0 %v373
  %v465 = vpop.f32.mrf.mxu0
  %v466 = vadd.f32 %v447, %v465
  %v467 = vpop.f32.mrf.mxu0
  %v468 = vadd.f32 %v449, %v467
  %469 = vdwg.mxu0
  %v470 = vld [vmem:[%s2] sm:$0x1]
  %v472 = vperm.slane %v470, 0
  %v474 = vmul.f32 %v461, %v472
  %v475 = vmul.f32 %v463, %v472
  %v476 = vmul.f32 %v466, %v472
  %v477 = vmul.f32 %v468, %v472
  %v478 = vld [vmem:[%s3] sm:$0x1]
  %v480 = vperm.slane %v478, 0
  %v482 = vadd.f32 %v474, %v480
  %v483 = vadd.f32 %v475, %v480
  %v484 = vadd.f32 %v476, %v480
  %v485 = vadd.f32 %v477, %v480
  %v486 = vmax.f32 %v482, 0.0
  %v487 = vmax.f32 %v483, 0.0
  %v488 = vmax.f32 %v484, 0.0
  %v489 = vmax.f32 %v485, 0.0
  %490 = vst [vmem:[%s4] sm:$0xff] %v486
  %491 = vst [vmem:[%s4 + $0x8] sm:$0xff] %v487
  %492 = vst [vmem:[%s4 + $0x10] sm:$0xff] %v488
  %493 = vst [vmem:[%s4 + $0x18] sm:$0xff] %v489
  // Predicated region
  $region18: #{resnet_forward.16} parent=0 // pred_check
    _
  $region19: #{resnet_forward.16} parent=0 // pred_check_branch
    %495 = sbr.rel (0) target = $region21
  $region20: #{resnet_forward.16} parent=0 // pred_region
    _
  $region21: #{resnet_forward.16} parent=0 // pred_fallthru
    _
  // Predicated region
  $region22: #{resnet_forward.16} parent=0 // pred_check
    _
  $region23: #{resnet_forward.16} parent=0 // pred_check_branch
    %497 = sbr.rel (0) target = $region25
  $region24: #{resnet_forward.16} parent=0 // pred_region
    _
  $region25: #{resnet_forward.16} parent=0 // pred_fallthru
    _

// kernel: resnet_forward.15
$region0: #{resnet_forward.15}
  #allocation0 [shape = 'u32[]', space=smem, size = 0x4, offset = 0x4, fixed_abs, tag = 'smem constant byte address 0x4 - core index']
  #allocation1 [shape = 'u32[72,128]{1,0:T(1,128)}', space=vmem, size = 0x9000, scoped, tag = 'internal scratch']
  %s0 = inlined_call_operand.vmem [shape: bf16[32,64], index: 0, kind: input, shape index: {}]
  %s1 = inlined_call_operand.vmem [shape: bf16[64,128], index: 1, kind: input, shape index: {}]
  %s2 = inlined_call_operand.vmem [shape: f32[1,128], index: 2, kind: input, shape index: {}]
  %s3 = inlined_call_operand.vmem [shape: f32[1,128], index: 3, kind: input, shape index: {}]
  %s4 = inlined_call_operand.vmem [shape: f32[32,128], index: 4, kind: output, shape index: {}]
  %s5 = sld [smem:[#allocation0]]
  $region26: #{resnet_forward.15} parent=0
    _
  %s7 = ssub.s32 1, %s5
  %s8 = scalar_select 0, %s7, %s5
  // Predicated region
  $region2: #{resnet_forward.15} parent=0 // pred_check
    _
  $region3: #{resnet_forward.15} parent=0 // pred_check_branch
    %10 = sbr.rel (0) target = $region5
  $region4: #{resnet_forward.15} parent=0 // pred_region
    _
  $region5: #{resnet_forward.15} parent=0 // pred_fallthru
    _
  // Predicated region
  $region6: #{resnet_forward.15} parent=0 // pred_check
    _
  $region7: #{resnet_forward.15} parent=0 // pred_check_branch
    %12 = sbr.rel (0) target = $region9
  $region8: #{resnet_forward.15} parent=0 // pred_region
    _
  $region9: #{resnet_forward.15} parent=0 // pred_fallthru
    _
  // Predicated region
  $region10: #{resnet_forward.15} parent=0 // pred_check
    _
  $region11: #{resnet_forward.15} parent=0 // pred_check_branch
    %14 = sbr.rel (0) target = $region13
  $region12: #{resnet_forward.15} parent=0 // pred_region
    _
  $region13: #{resnet_forward.15} parent=0 // pred_fallthru
    _
  // Predicated region
  $region14: #{resnet_forward.15} parent=0 // pred_check
    _
  $region15: #{resnet_forward.15} parent=0 // pred_check_branch
    %16 = sbr.rel (0) target = $region17
  $region16: #{resnet_forward.15} parent=0 // pred_region
    _
  $region17: #{resnet_forward.15} parent=0 // pred_fallthru
    _
  %v18 = vld [vmem:[%s0] sm:$0xf]
  %v19 = vld [vmem:[%s0 + $0x4] sm:$0xf]
  %v20 = vld [vmem:[%s0 + $0x8] sm:$0xf]
  %v21 = vld [vmem:[%s0 + $0xc] sm:$0xf]
  %v22 = vld [vmem:[%s1] sm:$0xf]
  %v23 = vld [vmem:[%s1 + $0x4] sm:$0xf]
  %v24 = vld [vmem:[%s1 + $0x8] sm:$0xf]
  %v25 = vld [vmem:[%s1 + $0xc] sm:$0xf]
  %v26 = vld [vmem:[%s1 + $0x10] sm:$0xf]
  %v27 = vld [vmem:[%s1 + $0x14] sm:$0xf]
  %v28 = vld [vmem:[%s1 + $0x18] sm:$0xf]
  %v29 = vld [vmem:[%s1 + $0x1c] sm:$0xf]
  %v34 = vunpack.c.l.b16 %v18
  %v35 = vunpack.c.l.b16 %v19
  %v36 = vunpack.c.l.b16 %v20
  %v37 = vunpack.c.l.b16 %v21
  %v38 = vpack.c.b16 %v35, %v34
  %v39 = vpack.c.b16 %v37, %v36
  %v48 = vunpack.c.l.b16 %v22
  %v49 = vunpack.c.l.b16 %v23
  %v50 = vunpack.c.l.b16 %v24
  %v51 = vunpack.c.l.b16 %v25
  %v52 = vunpack.c.l.b16 %v26
  %v53 = vunpack.c.l.b16 %v27
  %v54 = vunpack.c.l.b16 %v28
  %v55 = vunpack.c.l.b16 %v29
  %v56 = vpack.c.b16 %v49, %v48
  %v57 = vpack.c.b16 %v51, %v50
  %v58 = vpack.c.b16 %v53, %v52
  %v59 = vpack.c.b16 %v55, %v54
  %vm64 = vcmask 523264
  %v66 = vsel %vm64, %v38, 0
  %v69 = vsel %vm64, %v39, 0
  %71 = vmatpush.bf16.msra.mxu0 0
  %72 = vmatpush.bf16.msra.mxu0 0
  %73 = vmatpush.bf16.msra.mxu0 0
  %74 = vmatpush.bf16.msra.mxu0 0
  %75 = vmatpush.bf16.msra.mxu0 %v59
  %76 = vmatpush.bf16.msra.mxu0 %v58
  %77 = vmatpush.bf16.msra.mxu0 %v57
  %78 = vmatpush.bf16.msra.mxu0 %v56
  %79 = vmatmul.bf16.gmra.mxu0 %v66
  %v80 = vpop.f32.mrf.mxu0
  %v81 = vadd.f32 0.0, %v80
  %v82 = vpop.f32.mrf.mxu0
  %v83 = vadd.f32 0.0, %v82
  %84 = vmatmul.bf16.gmra.mxu0 %v69
  %v85 = vpop.f32.mrf.mxu0
  %v86 = vadd.f32 0.0, %v85
  %v87 = vpop.f32.mrf.mxu0
  %v88 = vadd.f32 0.0, %v87
  %89 = vdwg.mxu0
  %v90 = vld [vmem:[%s2] sm:$0x1]
  %v92 = vperm.slane %v90, 0
  %v94 = vmul.f32 %v81, %v92
  %v95 = vmul.f32 %v83, %v92
  %v96 = vmul.f32 %v86, %v92
  %v97 = vmul.f32 %v88, %v92
  %v98 = vld [vmem:[%s3] sm:$0x1]
  %v100 = vperm.slane %v98, 0
  %v102 = vadd.f32 %v94, %v100
  %v103 = vadd.f32 %v95, %v100
  %v104 = vadd.f32 %v96, %v100
  %v105 = vadd.f32 %v97, %v100
  %106 = vst [vmem:[%s4] sm:$0xff] %v102
  %107 = vst [vmem:[%s4 + $0x8] sm:$0xff] %v103
  %108 = vst [vmem:[%s4 + $0x10] sm:$0xff] %v104
  %109 = vst [vmem:[%s4 + $0x18] sm:$0xff] %v105
  // Predicated region
  $region18: #{resnet_forward.15} parent=0 // pred_check
    _
  $region19: #{resnet_forward.15} parent=0 // pred_check_branch
    %111 = sbr.rel (0) target = $region21
  $region20: #{resnet_forward.15} parent=0 // pred_region
    _
  $region21: #{resnet_forward.15} parent=0 // pred_fallthru
    _
  // Predicated region
  $region22: #{resnet_forward.15} parent=0 // pred_check
    _
  $region23: #{resnet_forward.15} parent=0 // pred_check_branch
    %113 = sbr.rel (0) target = $region25
  $region24: #{resnet_forward.15} parent=0 // pred_region
    _
  $region25: #{resnet_forward.15} parent=0 // pred_fallthru
    _

// kernel: resnet_forward.18
$region0: #{resnet_forward.18}
  #allocation0 [shape = 'u32[]', space=smem, size = 0x4, offset = 0x4, fixed_abs, tag = 'smem constant byte address 0x4 - core index']
  #allocation1 [shape = 'u32[72,128]{1,0:T(1,128)}', space=vmem, size = 0x9000, scoped, tag = 'internal scratch']
  %s0 = inlined_call_operand.vmem [shape: bf16[32,1152], index: 0, kind: input, shape index: {}]
  %s1 = inlined_call_operand.vmem [shape: bf16[1152,128], index: 1, kind: input, shape index: {}]
  %s2 = inlined_call_operand.vmem [shape: f32[1,128], index: 2, kind: input, shape index: {}]
  %s3 = inlined_call_operand.vmem [shape: f32[1,128], index: 3, kind: input, shape index: {}]
  %s4 = inlined_call_operand.vmem [shape: f32[32,128], index: 4, kind: output, shape index: {}]
  %s5 = sld [smem:[#allocation0]]
  $region26: #{resnet_forward.18} parent=0
    _
  %s7 = ssub.s32 1, %s5
  %s8 = scalar_select 0, %s7, %s5
  // Predicated region
  $region2: #{resnet_forward.18} parent=0 // pred_check
    _
  $region3: #{resnet_forward.18} parent=0 // pred_check_branch
    %10 = sbr.rel (0) target = $region5
  $region4: #{resnet_forward.18} parent=0 // pred_region
    _
  $region5: #{resnet_forward.18} parent=0 // pred_fallthru
    _
  // Predicated region
  $region6: #{resnet_forward.18} parent=0 // pred_check
    _
  $region7: #{resnet_forward.18} parent=0 // pred_check_branch
    %12 = sbr.rel (0) target = $region9
  $region8: #{resnet_forward.18} parent=0 // pred_region
    _
  $region9: #{resnet_forward.18} parent=0 // pred_fallthru
    _
  // Predicated region
  $region10: #{resnet_forward.18} parent=0 // pred_check
    _
  $region11: #{resnet_forward.18} parent=0 // pred_check_branch
    %14 = sbr.rel (0) target = $region13
  $region12: #{resnet_forward.18} parent=0 // pred_region
    _
  $region13: #{resnet_forward.18} parent=0 // pred_fallthru
    _
  // Predicated region
  $region14: #{resnet_forward.18} parent=0 // pred_check
    _
  $region15: #{resnet_forward.18} parent=0 // pred_check_branch
    %16 = sbr.rel (0) target = $region17
  $region16: #{resnet_forward.18} parent=0 // pred_region
    _
  $region17: #{resnet_forward.18} parent=0 // pred_fallthru
    _
  %v17 = vld [vmem:[%s0] sm:$0xff]
  %v18 = vld [vmem:[%s0 + $0x8] sm:$0xff]
  %v19 = vld [vmem:[%s0 + $0x10] sm:$0xff]
  %v20 = vld [vmem:[%s0 + $0x18] sm:$0xff]
  %v21 = vld [vmem:[%s0 + $0x20] sm:$0xf]
  %v22 = vld [vmem:[%s0 + $0x24] sm:$0xff]
  %v23 = vld [vmem:[%s0 + $0x2c] sm:$0xff]
  %v24 = vld [vmem:[%s0 + $0x34] sm:$0xff]
  %v25 = vld [vmem:[%s0 + $0x3c] sm:$0xff]
  %v26 = vld [vmem:[%s0 + $0x44] sm:$0xf]
  %v27 = vld [vmem:[%s0 + $0x48] sm:$0xff]
  %v28 = vld [vmem:[%s0 + $0x50] sm:$0xff]
  %v29 = vld [vmem:[%s0 + $0x58] sm:$0xff]
  %v30 = vld [vmem:[%s0 + $0x60] sm:$0xff]
  %v31 = vld [vmem:[%s0 + $0x68] sm:$0xf]
  %v32 = vld [vmem:[%s0 + $0x6c] sm:$0xff]
  %v33 = vld [vmem:[%s0 + $0x74] sm:$0xff]
  %v34 = vld [vmem:[%s0 + $0x7c] sm:$0xff]
  %v35 = vld [vmem:[%s0 + $0x84] sm:$0xff]
  %v36 = vld [vmem:[%s0 + $0x8c] sm:$0xf]
  %v37 = vld [vmem:[%s1] sm:$0xf]
  %v38 = vld [vmem:[%s1 + $0x4] sm:$0xf]
  %v39 = vld [vmem:[%s1 + $0x8] sm:$0xf]
  %v40 = vld [vmem:[%s1 + $0xc] sm:$0xf]
  %v41 = vld [vmem:[%s1 + $0x10] sm:$0xf]
  %v42 = vld [vmem:[%s1 + $0x14] sm:$0xf]
  %v43 = vld [vmem:[%s1 + $0x18] sm:$0xf]
  %v44 = vld [vmem:[%s1 + $0x1c] sm:$0xf]
  %v45 = vld [vmem:[%s1 + $0x20] sm:$0xf]
  %v46 = vld [vmem:[%s1 + $0x24] sm:$0xf]
  %v47 = vld [vmem:[%s1 + $0x28] sm:$0xf]
  %v48 = vld [vmem:[%s1 + $0x2c] sm:$0xf]
  %v49 = vld [vmem:[%s1 + $0x30] sm:$0xf]
  %v50 = vld [vmem:[%s1 + $0x34] sm:$0xf]
  %v51 = vld [vmem:[%s1 + $0x38] sm:$0xf]
  %v52 = vld [vmem:[%s1 + $0x3c] sm:$0xf]
  %v53 = vld [vmem:[%s1 + $0x40] sm:$0xf]
  %v54 = vld [vmem:[%s1 + $0x44] sm:$0xf]
  %v55 = vld [vmem:[%s1 + $0x48] sm:$0xf]
  %v56 = vld [vmem:[%s1 + $0x4c] sm:$0xf]
  %v57 = vld [vmem:[%s1 + $0x50] sm:$0xf]
  %v58 = vld [vmem:[%s1 + $0x54] sm:$0xf]
  %v59 = vld [vmem:[%s1 + $0x58] sm:$0xf]
  %v60 = vld [vmem:[%s1 + $0x5c] sm:$0xf]
  %v61 = vld [vmem:[%s1 + $0x60] sm:$0xf]
  %v62 = vld [vmem:[%s1 + $0x64] sm:$0xf]
  %v63 = vld [vmem:[%s1 + $0x68] sm:$0xf]
  %v64 = vld [vmem:[%s1 + $0x6c] sm:$0xf]
  %v65 = vld [vmem:[%s1 + $0x70] sm:$0xf]
  %v66 = vld [vmem:[%s1 + $0x74] sm:$0xf]
  %v67 = vld [vmem:[%s1 + $0x78] sm:$0xf]
  %v68 = vld [vmem:[%s1 + $0x7c] sm:$0xf]
  %v69 = vld [vmem:[%s1 + $0x80] sm:$0xf]
  %v70 = vld [vmem:[%s1 + $0x84] sm:$0xf]
  %v71 = vld [vmem:[%s1 + $0x88] sm:$0xf]
  %v72 = vld [vmem:[%s1 + $0x8c] sm:$0xf]
  %v73 = vld [vmem:[%s1 + $0x90] sm:$0xf]
  %v74 = vld [vmem:[%s1 + $0x94] sm:$0xf]
  %v75 = vld [vmem:[%s1 + $0x98] sm:$0xf]
  %v76 = vld [vmem:[%s1 + $0x9c] sm:$0xf]
  %v77 = vld [vmem:[%s1 + $0xa0] sm:$0xf]
  %v78 = vld [vmem:[%s1 + $0xa4] sm:$0xf]
  %v79 = vld [vmem:[%s1 + $0xa8] sm:$0xf]
  %v80 = vld [vmem:[%s1 + $0xac] sm:$0xf]
  %v81 = vld [vmem:[%s1 + $0xb0] sm:$0xf]
  %v82 = vld [vmem:[%s1 + $0xb4] sm:$0xf]
  %v83 = vld [vmem:[%s1 + $0xb8] sm:$0xf]
  %v84 = vld [vmem:[%s1 + $0xbc] sm:$0xf]
  %v85 = vld [vmem:[%s1 + $0xc0] sm:$0xf]
  %v86 = vld [vmem:[%s1 + $0xc4] sm:$0xf]
  %v87 = vld [vmem:[%s1 + $0xc8] sm:$0xf]
  %v88 = vld [vmem:[%s1 + $0xcc] sm:$0xf]
  %v89 = vld [vmem:[%s1 + $0xd0] sm:$0xf]
  %v90 = vld [vmem:[%s1 + $0xd4] sm:$0xf]
  %v91 = vld [vmem:[%s1 + $0xd8] sm:$0xf]
  %v92 = vld [vmem:[%s1 + $0xdc] sm:$0xf]
  %v93 = vld [vmem:[%s1 + $0xe0] sm:$0xf]
  %v94 = vld [vmem:[%s1 + $0xe4] sm:$0xf]
  %v95 = vld [vmem:[%s1 + $0xe8] sm:$0xf]
  %v96 = vld [vmem:[%s1 + $0xec] sm:$0xf]
  %v97 = vld [vmem:[%s1 + $0xf0] sm:$0xf]
  %v98 = vld [vmem:[%s1 + $0xf4] sm:$0xf]
  %v99 = vld [vmem:[%s1 + $0xf8] sm:$0xf]
  %v100 = vld [vmem:[%s1 + $0xfc] sm:$0xf]
  %v101 = vld [vmem:[%s1 + $0x100] sm:$0xf]
  %v102 = vld [vmem:[%s1 + $0x104] sm:$0xf]
  %v103 = vld [vmem:[%s1 + $0x108] sm:$0xf]
  %v104 = vld [vmem:[%s1 + $0x10c] sm:$0xf]
  %v105 = vld [vmem:[%s1 + $0x110] sm:$0xf]
  %v106 = vld [vmem:[%s1 + $0x114] sm:$0xf]
  %v107 = vld [vmem:[%s1 + $0x118] sm:$0xf]
  %v108 = vld [vmem:[%s1 + $0x11c] sm:$0xf]
  %v109 = vld [vmem:[%s1 + $0x120] sm:$0xf]
  %v110 = vld [vmem:[%s1 + $0x124] sm:$0xf]
  %v111 = vld [vmem:[%s1 + $0x128] sm:$0xf]
  %v112 = vld [vmem:[%s1 + $0x12c] sm:$0xf]
  %v113 = vld [vmem:[%s1 + $0x130] sm:$0xf]
  %v114 = vld [vmem:[%s1 + $0x134] sm:$0xf]
  %v115 = vld [vmem:[%s1 + $0x138] sm:$0xf]
  %v116 = vld [vmem:[%s1 + $0x13c] sm:$0xf]
  %v117 = vld [vmem:[%s1 + $0x140] sm:$0xf]
  %v118 = vld [vmem:[%s1 + $0x144] sm:$0xf]
  %v119 = vld [vmem:[%s1 + $0x148] sm:$0xf]
  %v120 = vld [vmem:[%s1 + $0x14c] sm:$0xf]
  %v121 = vld [vmem:[%s1 + $0x150] sm:$0xf]
  %v122 = vld [vmem:[%s1 + $0x154] sm:$0xf]
  %v123 = vld [vmem:[%s1 + $0x158] sm:$0xf]
  %v124 = vld [vmem:[%s1 + $0x15c] sm:$0xf]
  %v125 = vld [vmem:[%s1 + $0x160] sm:$0xf]
  %v126 = vld [vmem:[%s1 + $0x164] sm:$0xf]
  %v127 = vld [vmem:[%s1 + $0x168] sm:$0xf]
  %v128 = vld [vmem:[%s1 + $0x16c] sm:$0xf]
  %v129 = vld [vmem:[%s1 + $0x170] sm:$0xf]
  %v130 = vld [vmem:[%s1 + $0x174] sm:$0xf]
  %v131 = vld [vmem:[%s1 + $0x178] sm:$0xf]
  %v132 = vld [vmem:[%s1 + $0x17c] sm:$0xf]
  %v133 = vld [vmem:[%s1 + $0x180] sm:$0xf]
  %v134 = vld [vmem:[%s1 + $0x184] sm:$0xf]
  %v135 = vld [vmem:[%s1 + $0x188] sm:$0xf]
  %v136 = vld [vmem:[%s1 + $0x18c] sm:$0xf]
  %v137 = vld [vmem:[%s1 + $0x190] sm:$0xf]
  %v138 = vld [vmem:[%s1 + $0x194] sm:$0xf]
  %v139 = vld [vmem:[%s1 + $0x198] sm:$0xf]
  %v140 = vld [vmem:[%s1 + $0x19c] sm:$0xf]
  %v141 = vld [vmem:[%s1 + $0x1a0] sm:$0xf]
  %v142 = vld [vmem:[%s1 + $0x1a4] sm:$0xf]
  %v143 = vld [vmem:[%s1 + $0x1a8] sm:$0xf]
  %v144 = vld [vmem:[%s1 + $0x1ac] sm:$0xf]
  %v145 = vld [vmem:[%s1 + $0x1b0] sm:$0xf]
  %v146 = vld [vmem:[%s1 + $0x1b4] sm:$0xf]
  %v147 = vld [vmem:[%s1 + $0x1b8] sm:$0xf]
  %v148 = vld [vmem:[%s1 + $0x1bc] sm:$0xf]
  %v149 = vld [vmem:[%s1 + $0x1c0] sm:$0xf]
  %v150 = vld [vmem:[%s1 + $0x1c4] sm:$0xf]
  %v151 = vld [vmem:[%s1 + $0x1c8] sm:$0xf]
  %v152 = vld [vmem:[%s1 + $0x1cc] sm:$0xf]
  %v153 = vld [vmem:[%s1 + $0x1d0] sm:$0xf]
  %v154 = vld [vmem:[%s1 + $0x1d4] sm:$0xf]
  %v155 = vld [vmem:[%s1 + $0x1d8] sm:$0xf]
  %v156 = vld [vmem:[%s1 + $0x1dc] sm:$0xf]
  %v157 = vld [vmem:[%s1 + $0x1e0] sm:$0xf]
  %v158 = vld [vmem:[%s1 + $0x1e4] sm:$0xf]
  %v159 = vld [vmem:[%s1 + $0x1e8] sm:$0xf]
  %v160 = vld [vmem:[%s1 + $0x1ec] sm:$0xf]
  %v161 = vld [vmem:[%s1 + $0x1f0] sm:$0xf]
  %v162 = vld [vmem:[%s1 + $0x1f4] sm:$0xf]
  %v163 = vld [vmem:[%s1 + $0x1f8] sm:$0xf]
  %v164 = vld [vmem:[%s1 + $0x1fc] sm:$0xf]
  %v165 = vld [vmem:[%s1 + $0x200] sm:$0xf]
  %v166 = vld [vmem:[%s1 + $0x204] sm:$0xf]
  %v167 = vld [vmem:[%s1 + $0x208] sm:$0xf]
  %v168 = vld [vmem:[%s1 + $0x20c] sm:$0xf]
  %v169 = vld [vmem:[%s1 + $0x210] sm:$0xf]
  %v170 = vld [vmem:[%s1 + $0x214] sm:$0xf]
  %v171 = vld [vmem:[%s1 + $0x218] sm:$0xf]
  %v172 = vld [vmem:[%s1 + $0x21c] sm:$0xf]
  %v173 = vld [vmem:[%s1 + $0x220] sm:$0xf]
  %v174 = vld [vmem:[%s1 + $0x224] sm:$0xf]
  %v175 = vld [vmem:[%s1 + $0x228] sm:$0xf]
  %v176 = vld [vmem:[%s1 + $0x22c] sm:$0xf]
  %v177 = vld [vmem:[%s1 + $0x230] sm:$0xf]
  %v178 = vld [vmem:[%s1 + $0x234] sm:$0xf]
  %v179 = vld [vmem:[%s1 + $0x238] sm:$0xf]
  %v180 = vld [vmem:[%s1 + $0x23c] sm:$0xf]
  %v201 = vunpack.c.l.b16 %v17
  %v202 = vunpack.c.h.b16 %v17
  %v203 = vunpack.c.l.b16 %v18
  %v204 = vunpack.c.h.b16 %v18
  %v205 = vunpack.c.l.b16 %v19
  %v206 = vunpack.c.h.b16 %v19
  %v207 = vunpack.c.l.b16 %v20
  %v208 = vunpack.c.h.b16 %v20
  %v209 = vunpack.c.l.b16 %v21
  %v210 = vunpack.c.l.b16 %v22
  %v211 = vunpack.c.h.b16 %v22
  %v212 = vunpack.c.l.b16 %v23
  %v213 = vunpack.c.h.b16 %v23
  %v214 = vunpack.c.l.b16 %v24
  %v215 = vunpack.c.h.b16 %v24
  %v216 = vunpack.c.l.b16 %v25
  %v217 = vunpack.c.h.b16 %v25
  %v218 = vunpack.c.l.b16 %v26
  %v219 = vunpack.c.l.b16 %v27
  %v220 = vunpack.c.h.b16 %v27
  %v221 = vunpack.c.l.b16 %v28
  %v222 = vunpack.c.h.b16 %v28
  %v223 = vunpack.c.l.b16 %v29
  %v224 = vunpack.c.h.b16 %v29
  %v225 = vunpack.c.l.b16 %v30
  %v226 = vunpack.c.h.b16 %v30
  %v227 = vunpack.c.l.b16 %v31
  %v228 = vunpack.c.l.b16 %v32
  %v229 = vunpack.c.h.b16 %v32
  %v230 = vunpack.c.l.b16 %v33
  %v231 = vunpack.c.h.b16 %v33
  %v232 = vunpack.c.l.b16 %v34
  %v233 = vunpack.c.h.b16 %v34
  %v234 = vunpack.c.l.b16 %v35
  %v235 = vunpack.c.h.b16 %v35
  %v236 = vunpack.c.l.b16 %v36
  %v237 = vpack.c.b16 %v210, %v201
  %v238 = vpack.c.b16 %v211, %v202
  %v239 = vpack.c.b16 %v212, %v203
  %v240 = vpack.c.b16 %v213, %v204
  %v241 = vpack.c.b16 %v214, %v205
  %v242 = vpack.c.b16 %v215, %v206
  %v243 = vpack.c.b16 %v216, %v207
  %v244 = vpack.c.b16 %v217, %v208
  %v245 = vpack.c.b16 %v218, %v209
  %v246 = vpack.c.b16 %v228, %v219
  %v247 = vpack.c.b16 %v229, %v220
  %v248 = vpack.c.b16 %v230, %v221
  %v249 = vpack.c.b16 %v231, %v222
  %v250 = vpack.c.b16 %v232, %v223
  %v251 = vpack.c.b16 %v233, %v224
  %v252 = vpack.c.b16 %v234, %v225
  %v253 = vpack.c.b16 %v235, %v226
  %v254 = vpack.c.b16 %v236, %v227
  %v417 = vunpack.c.l.b16 %v37
  %v418 = vunpack.c.l.b16 %v38
  %v419 = vunpack.c.l.b16 %v39
  %v420 = vunpack.c.l.b16 %v40
  %v421 = vunpack.c.l.b16 %v41
  %v422 = vunpack.c.l.b16 %v42
  %v423 = vunpack.c.l.b16 %v43
  %v424 = vunpack.c.l.b16 %v44
  %v425 = vunpack.c.l.b16 %v45
  %v426 = vunpack.c.l.b16 %v46
  %v427 = vunpack.c.l.b16 %v47
  %v428 = vunpack.c.l.b16 %v48
  %v429 = vunpack.c.l.b16 %v49
  %v430 = vunpack.c.l.b16 %v50
  %v431 = vunpack.c.l.b16 %v51
  %v432 = vunpack.c.l.b16 %v52
  %v433 = vunpack.c.l.b16 %v53
  %v434 = vunpack.c.l.b16 %v54
  %v435 = vunpack.c.l.b16 %v55
  %v436 = vunpack.c.l.b16 %v56
  %v437 = vunpack.c.l.b16 %v57
  %v438 = vunpack.c.l.b16 %v58
  %v439 = vunpack.c.l.b16 %v59
  %v440 = vunpack.c.l.b16 %v60
  %v441 = vunpack.c.l.b16 %v61
  %v442 = vunpack.c.l.b16 %v62
  %v443 = vunpack.c.l.b16 %v63
  %v444 = vunpack.c.l.b16 %v64
  %v445 = vunpack.c.l.b16 %v65
  %v446 = vunpack.c.l.b16 %v66
  %v447 = vunpack.c.l.b16 %v67
  %v448 = vunpack.c.l.b16 %v68
  %v449 = vunpack.c.l.b16 %v69
  %v450 = vunpack.c.l.b16 %v70
  %v451 = vunpack.c.l.b16 %v71
  %v452 = vunpack.c.l.b16 %v72
  %v453 = vunpack.c.l.b16 %v73
  %v454 = vunpack.c.l.b16 %v74
  %v455 = vunpack.c.l.b16 %v75
  %v456 = vunpack.c.l.b16 %v76
  %v457 = vunpack.c.l.b16 %v77
  %v458 = vunpack.c.l.b16 %v78
  %v459 = vunpack.c.l.b16 %v79
  %v460 = vunpack.c.l.b16 %v80
  %v461 = vunpack.c.l.b16 %v81
  %v462 = vunpack.c.l.b16 %v82
  %v463 = vunpack.c.l.b16 %v83
  %v464 = vunpack.c.l.b16 %v84
  %v465 = vunpack.c.l.b16 %v85
  %v466 = vunpack.c.l.b16 %v86
  %v467 = vunpack.c.l.b16 %v87
  %v468 = vunpack.c.l.b16 %v88
  %v469 = vunpack.c.l.b16 %v89
  %v470 = vunpack.c.l.b16 %v90
  %v471 = vunpack.c.l.b16 %v91
  %v472 = vunpack.c.l.b16 %v92
  %v473 = vunpack.c.l.b16 %v93
  %v474 = vunpack.c.l.b16 %v94
  %v475 = vunpack.c.l.b16 %v95
  %v476 = vunpack.c.l.b16 %v96
  %v477 = vunpack.c.l.b16 %v97
  %v478 = vunpack.c.l.b16 %v98
  %v479 = vunpack.c.l.b16 %v99
  %v480 = vunpack.c.l.b16 %v100
  %v481 = vunpack.c.l.b16 %v101
  %v482 = vunpack.c.l.b16 %v102
  %v483 = vunpack.c.l.b16 %v103
  %v484 = vunpack.c.l.b16 %v104
  %v485 = vunpack.c.l.b16 %v105
  %v486 = vunpack.c.l.b16 %v106
  %v487 = vunpack.c.l.b16 %v107
  %v488 = vunpack.c.l.b16 %v108
  %v489 = vunpack.c.l.b16 %v109
  %v490 = vunpack.c.l.b16 %v110
  %v491 = vunpack.c.l.b16 %v111
  %v492 = vunpack.c.l.b16 %v112
  %v493 = vunpack.c.l.b16 %v113
  %v494 = vunpack.c.l.b16 %v114
  %v495 = vunpack.c.l.b16 %v115
  %v496 = vunpack.c.l.b16 %v116
  %v497 = vunpack.c.l.b16 %v117
  %v498 = vunpack.c.l.b16 %v118
  %v499 = vunpack.c.l.b16 %v119
  %v500 = vunpack.c.l.b16 %v120
  %v501 = vunpack.c.l.b16 %v121
  %v502 = vunpack.c.l.b16 %v122
  %v503 = vunpack.c.l.b16 %v123
  %v504 = vunpack.c.l.b16 %v124
  %v505 = vunpack.c.l.b16 %v125
  %v506 = vunpack.c.l.b16 %v126
  %v507 = vunpack.c.l.b16 %v127
  %v508 = vunpack.c.l.b16 %v128
  %v509 = vunpack.c.l.b16 %v129
  %v510 = vunpack.c.l.b16 %v130
  %v511 = vunpack.c.l.b16 %v131
  %v512 = vunpack.c.l.b16 %v132
  %v513 = vunpack.c.l.b16 %v133
  %v514 = vunpack.c.l.b16 %v134
  %v515 = vunpack.c.l.b16 %v135
  %v516 = vunpack.c.l.b16 %v136
  %v517 = vunpack.c.l.b16 %v137
  %v518 = vunpack.c.l.b16 %v138
  %v519 = vunpack.c.l.b16 %v139
  %v520 = vunpack.c.l.b16 %v140
  %v521 = vunpack.c.l.b16 %v141
  %v522 = vunpack.c.l.b16 %v142
  %v523 = vunpack.c.l.b16 %v143
  %v524 = vunpack.c.l.b16 %v144
  %v525 = vunpack.c.l.b16 %v145
  %v526 = vunpack.c.l.b16 %v146
  %v527 = vunpack.c.l.b16 %v147
  %v528 = vunpack.c.l.b16 %v148
  %v529 = vunpack.c.l.b16 %v149
  %v530 = vunpack.c.l.b16 %v150
  %v531 = vunpack.c.l.b16 %v151
  %v532 = vunpack.c.l.b16 %v152
  %v533 = vunpack.c.l.b16 %v153
  %v534 = vunpack.c.l.b16 %v154
  %v535 = vunpack.c.l.b16 %v155
  %v536 = vunpack.c.l.b16 %v156
  %v537 = vunpack.c.l.b16 %v157
  %v538 = vunpack.c.l.b16 %v158
  %v539 = vunpack.c.l.b16 %v159
  %v540 = vunpack.c.l.b16 %v160
  %v541 = vunpack.c.l.b16 %v161
  %v542 = vunpack.c.l.b16 %v162
  %v543 = vunpack.c.l.b16 %v163
  %v544 = vunpack.c.l.b16 %v164
  %v545 = vunpack.c.l.b16 %v165
  %v546 = vunpack.c.l.b16 %v166
  %v547 = vunpack.c.l.b16 %v167
  %v548 = vunpack.c.l.b16 %v168
  %v549 = vunpack.c.l.b16 %v169
  %v550 = vunpack.c.l.b16 %v170
  %v551 = vunpack.c.l.b16 %v171
  %v552 = vunpack.c.l.b16 %v172
  %v553 = vunpack.c.l.b16 %v173
  %v554 = vunpack.c.l.b16 %v174
  %v555 = vunpack.c.l.b16 %v175
  %v556 = vunpack.c.l.b16 %v176
  %v557 = vunpack.c.l.b16 %v177
  %v558 = vunpack.c.l.b16 %v178
  %v559 = vunpack.c.l.b16 %v179
  %v560 = vunpack.c.l.b16 %v180
  %v561 = vpack.c.b16 %v418, %v417
  %v562 = vpack.c.b16 %v420, %v419
  %v563 = vpack.c.b16 %v422, %v421
  %v564 = vpack.c.b16 %v424, %v423
  %v565 = vpack.c.b16 %v426, %v425
  %v566 = vpack.c.b16 %v428, %v427
  %v567 = vpack.c.b16 %v430, %v429
  %v568 = vpack.c.b16 %v432, %v431
  %v569 = vpack.c.b16 %v434, %v433
  %v570 = vpack.c.b16 %v436, %v435
  %v571 = vpack.c.b16 %v438, %v437
  %v572 = vpack.c.b16 %v440, %v439
  %v573 = vpack.c.b16 %v442, %v441
  %v574 = vpack.c.b16 %v444, %v443
  %v575 = vpack.c.b16 %v446, %v445
  %v576 = vpack.c.b16 %v448, %v447
  %v577 = vpack.c.b16 %v450, %v449
  %v578 = vpack.c.b16 %v452, %v451
  %v579 = vpack.c.b16 %v454, %v453
  %v580 = vpack.c.b16 %v456, %v455
  %v581 = vpack.c.b16 %v458, %v457
  %v582 = vpack.c.b16 %v460, %v459
  %v583 = vpack.c.b16 %v462, %v461
  %v584 = vpack.c.b16 %v464, %v463
  %v585 = vpack.c.b16 %v466, %v465
  %v586 = vpack.c.b16 %v468, %v467
  %v587 = vpack.c.b16 %v470, %v469
  %v588 = vpack.c.b16 %v472, %v471
  %v589 = vpack.c.b16 %v474, %v473
  %v590 = vpack.c.b16 %v476, %v475
  %v591 = vpack.c.b16 %v478, %v477
  %v592 = vpack.c.b16 %v480, %v479
  %v593 = vpack.c.b16 %v482, %v481
  %v594 = vpack.c.b16 %v484, %v483
  %v595 = vpack.c.b16 %v486, %v485
  %v596 = vpack.c.b16 %v488, %v487
  %v597 = vpack.c.b16 %v490, %v489
  %v598 = vpack.c.b16 %v492, %v491
  %v599 = vpack.c.b16 %v494, %v493
  %v600 = vpack.c.b16 %v496, %v495
  %v601 = vpack.c.b16 %v498, %v497
  %v602 = vpack.c.b16 %v500, %v499
  %v603 = vpack.c.b16 %v502, %v501
  %v604 = vpack.c.b16 %v504, %v503
  %v605 = vpack.c.b16 %v506, %v505
  %v606 = vpack.c.b16 %v508, %v507
  %v607 = vpack.c.b16 %v510, %v509
  %v608 = vpack.c.b16 %v512, %v511
  %v609 = vpack.c.b16 %v514, %v513
  %v610 = vpack.c.b16 %v516, %v515
  %v611 = vpack.c.b16 %v518, %v517
  %v612 = vpack.c.b16 %v520, %v519
  %v613 = vpack.c.b16 %v522, %v521
  %v614 = vpack.c.b16 %v524, %v523
  %v615 = vpack.c.b16 %v526, %v525
  %v616 = vpack.c.b16 %v528, %v527
  %v617 = vpack.c.b16 %v530, %v529
  %v618 = vpack.c.b16 %v532, %v531
  %v619 = vpack.c.b16 %v534, %v533
  %v620 = vpack.c.b16 %v536, %v535
  %v621 = vpack.c.b16 %v538, %v537
  %v622 = vpack.c.b16 %v540, %v539
  %v623 = vpack.c.b16 %v542, %v541
  %v624 = vpack.c.b16 %v544, %v543
  %v625 = vpack.c.b16 %v546, %v545
  %v626 = vpack.c.b16 %v548, %v547
  %v627 = vpack.c.b16 %v550, %v549
  %v628 = vpack.c.b16 %v552, %v551
  %v629 = vpack.c.b16 %v554, %v553
  %v630 = vpack.c.b16 %v556, %v555
  %v631 = vpack.c.b16 %v558, %v557
  %v632 = vpack.c.b16 %v560, %v559
  %705 = vmatpush.bf16.msra.mxu0 %v568
  %706 = vmatpush.bf16.msra.mxu0 %v567
  %707 = vmatpush.bf16.msra.mxu0 %v566
  %708 = vmatpush.bf16.msra.mxu0 %v565
  %709 = vmatpush.bf16.msra.mxu0 %v564
  %710 = vmatpush.bf16.msra.mxu0 %v563
  %711 = vmatpush.bf16.msra.mxu0 %v562
  %712 = vmatpush.bf16.msra.mxu0 %v561
  %713 = vmatmul.bf16.gmra.mxu0 %v237
  %v714 = vpop.f32.mrf.mxu0
  %v715 = vadd.f32 0.0, %v714
  %v716 = vpop.f32.mrf.mxu0
  %v717 = vadd.f32 0.0, %v716
  %718 = vmatmul.bf16.gmra.mxu0 %v246
  %v719 = vpop.f32.mrf.mxu0
  %v720 = vadd.f32 0.0, %v719
  %v721 = vpop.f32.mrf.mxu0
  %v722 = vadd.f32 0.0, %v721
  %723 = vdwg.mxu0
  %724 = vmatpush.bf16.msra.mxu0 %v576
  %725 = vmatpush.bf16.msra.mxu0 %v575
  %726 = vmatpush.bf16.msra.mxu0 %v574
  %727 = vmatpush.bf16.msra.mxu0 %v573
  %728 = vmatpush.bf16.msra.mxu0 %v572
  %729 = vmatpush.bf16.msra.mxu0 %v571
  %730 = vmatpush.bf16.msra.mxu0 %v570
  %731 = vmatpush.bf16.msra.mxu0 %v569
  %732 = vmatmul.bf16.gmra.mxu0 %v238
  %v733 = vpop.f32.mrf.mxu0
  %v734 = vadd.f32 %v715, %v733
  %v735 = vpop.f32.mrf.mxu0
  %v736 = vadd.f32 %v717, %v735
  %737 = vmatmul.bf16.gmra.mxu0 %v247
  %v738 = vpop.f32.mrf.mxu0
  %v739 = vadd.f32 %v720, %v738
  %v740 = vpop.f32.mrf.mxu0
  %v741 = vadd.f32 %v722, %v740
  %742 = vdwg.mxu0
  %743 = vmatpush.bf16.msra.mxu0 %v584
  %744 = vmatpush.bf16.msra.mxu0 %v583
  %745 = vmatpush.bf16.msra.mxu0 %v582
  %746 = vmatpush.bf16.msra.mxu0 %v581
  %747 = vmatpush.bf16.msra.mxu0 %v580
  %748 = vmatpush.bf16.msra.mxu0 %v579
  %749 = vmatpush.bf16.msra.mxu0 %v578
  %750 = vmatpush.bf16.msra.mxu0 %v577
  %751 = vmatmul.bf16.gmra.mxu0 %v239
  %v752 = vpop.f32.mrf.mxu0
  %v753 = vadd.f32 %v734, %v752
  %v754 = vpop.f32.mrf.mxu0
  %v755 = vadd.f32 %v736, %v754
  %756 = vmatmul.bf16.gmra.mxu0 %v248
  %v757 = vpop.f32.mrf.mxu0
  %v758 = vadd.f32 %v739, %v757
  %v759 = vpop.f32.mrf.mxu0
  %v760 = vadd.f32 %v741, %v759
  %761 = vdwg.mxu0
  %762 = vmatpush.bf16.msra.mxu0 %v592
  %763 = vmatpush.bf16.msra.mxu0 %v591
  %764 = vmatpush.bf16.msra.mxu0 %v590
  %765 = vmatpush.bf16.msra.mxu0 %v589
  %766 = vmatpush.bf16.msra.mxu0 %v588
  %767 = vmatpush.bf16.msra.mxu0 %v587
  %768 = vmatpush.bf16.msra.mxu0 %v586
  %769 = vmatpush.bf16.msra.mxu0 %v585
  %770 = vmatmul.bf16.gmra.mxu0 %v240
  %v771 = vpop.f32.mrf.mxu0
  %v772 = vadd.f32 %v753, %v771
  %v773 = vpop.f32.mrf.mxu0
  %v774 = vadd.f32 %v755, %v773
  %775 = vmatmul.bf16.gmra.mxu0 %v249
  %v776 = vpop.f32.mrf.mxu0
  %v777 = vadd.f32 %v758, %v776
  %v778 = vpop.f32.mrf.mxu0
  %v779 = vadd.f32 %v760, %v778
  %780 = vdwg.mxu0
  %781 = vmatpush.bf16.msra.mxu0 %v600
  %782 = vmatpush.bf16.msra.mxu0 %v599
  %783 = vmatpush.bf16.msra.mxu0 %v598
  %784 = vmatpush.bf16.msra.mxu0 %v597
  %785 = vmatpush.bf16.msra.mxu0 %v596
  %786 = vmatpush.bf16.msra.mxu0 %v595
  %787 = vmatpush.bf16.msra.mxu0 %v594
  %788 = vmatpush.bf16.msra.mxu0 %v593
  %789 = vmatmul.bf16.gmra.mxu0 %v241
  %v790 = vpop.f32.mrf.mxu0
  %v791 = vadd.f32 %v772, %v790
  %v792 = vpop.f32.mrf.mxu0
  %v793 = vadd.f32 %v774, %v792
  %794 = vmatmul.bf16.gmra.mxu0 %v250
  %v795 = vpop.f32.mrf.mxu0
  %v796 = vadd.f32 %v777, %v795
  %v797 = vpop.f32.mrf.mxu0
  %v798 = vadd.f32 %v779, %v797
  %799 = vdwg.mxu0
  %800 = vmatpush.bf16.msra.mxu0 %v608
  %801 = vmatpush.bf16.msra.mxu0 %v607
  %802 = vmatpush.bf16.msra.mxu0 %v606
  %803 = vmatpush.bf16.msra.mxu0 %v605
  %804 = vmatpush.bf16.msra.mxu0 %v604
  %805 = vmatpush.bf16.msra.mxu0 %v603
  %806 = vmatpush.bf16.msra.mxu0 %v602
  %807 = vmatpush.bf16.msra.mxu0 %v601
  %808 = vmatmul.bf16.gmra.mxu0 %v242
  %v809 = vpop.f32.mrf.mxu0
  %v810 = vadd.f32 %v791, %v809
  %v811 = vpop.f32.mrf.mxu0
  %v812 = vadd.f32 %v793, %v811
  %813 = vmatmul.bf16.gmra.mxu0 %v251
  %v814 = vpop.f32.mrf.mxu0
  %v815 = vadd.f32 %v796, %v814
  %v816 = vpop.f32.mrf.mxu0
  %v817 = vadd.f32 %v798, %v816
  %818 = vdwg.mxu0
  %819 = vmatpush.bf16.msra.mxu0 %v616
  %820 = vmatpush.bf16.msra.mxu0 %v615
  %821 = vmatpush.bf16.msra.mxu0 %v614
  %822 = vmatpush.bf16.msra.mxu0 %v613
  %823 = vmatpush.bf16.msra.mxu0 %v612
  %824 = vmatpush.bf16.msra.mxu0 %v611
  %825 = vmatpush.bf16.msra.mxu0 %v610
  %826 = vmatpush.bf16.msra.mxu0 %v609
  %827 = vmatmul.bf16.gmra.mxu0 %v243
  %v828 = vpop.f32.mrf.mxu0
  %v829 = vadd.f32 %v810, %v828
  %v830 = vpop.f32.mrf.mxu0
  %v831 = vadd.f32 %v812, %v830
  %832 = vmatmul.bf16.gmra.mxu0 %v252
  %v833 = vpop.f32.mrf.mxu0
  %v834 = vadd.f32 %v815, %v833
  %v835 = vpop.f32.mrf.mxu0
  %v836 = vadd.f32 %v817, %v835
  %837 = vdwg.mxu0
  %838 = vmatpush.bf16.msra.mxu0 %v624
  %839 = vmatpush.bf16.msra.mxu0 %v623
  %840 = vmatpush.bf16.msra.mxu0 %v622
  %841 = vmatpush.bf16.msra.mxu0 %v621
  %842 = vmatpush.bf16.msra.mxu0 %v620
  %843 = vmatpush.bf16.msra.mxu0 %v619
  %844 = vmatpush.bf16.msra.mxu0 %v618
  %845 = vmatpush.bf16.msra.mxu0 %v617
  %846 = vmatmul.bf16.gmra.mxu0 %v244
  %v847 = vpop.f32.mrf.mxu0
  %v848 = vadd.f32 %v829, %v847
  %v849 = vpop.f32.mrf.mxu0
  %v850 = vadd.f32 %v831, %v849
  %851 = vmatmul.bf16.gmra.mxu0 %v253
  %v852 = vpop.f32.mrf.mxu0
  %v853 = vadd.f32 %v834, %v852
  %v854 = vpop.f32.mrf.mxu0
  %v855 = vadd.f32 %v836, %v854
  %856 = vdwg.mxu0
  %857 = vmatpush.bf16.msra.mxu0 %v632
  %858 = vmatpush.bf16.msra.mxu0 %v631
  %859 = vmatpush.bf16.msra.mxu0 %v630
  %860 = vmatpush.bf16.msra.mxu0 %v629
  %861 = vmatpush.bf16.msra.mxu0 %v628
  %862 = vmatpush.bf16.msra.mxu0 %v627
  %863 = vmatpush.bf16.msra.mxu0 %v626
  %864 = vmatpush.bf16.msra.mxu0 %v625
  %865 = vmatmul.bf16.gmra.mxu0 %v245
  %v866 = vpop.f32.mrf.mxu0
  %v867 = vadd.f32 %v848, %v866
  %v868 = vpop.f32.mrf.mxu0
  %v869 = vadd.f32 %v850, %v868
  %870 = vmatmul.bf16.gmra.mxu0 %v254
  %v871 = vpop.f32.mrf.mxu0
  %v872 = vadd.f32 %v853, %v871
  %v873 = vpop.f32.mrf.mxu0
  %v874 = vadd.f32 %v855, %v873
  %875 = vdwg.mxu0
  %v876 = vld [vmem:[%s2] sm:$0x1]
  %v878 = vperm.slane %v876, 0
  %v880 = vmul.f32 %v867, %v878
  %v881 = vmul.f32 %v869, %v878
  %v882 = vmul.f32 %v872, %v878
  %v883 = vmul.f32 %v874, %v878
  %v884 = vld [vmem:[%s3] sm:$0x1]
  %v886 = vperm.slane %v884, 0
  %v888 = vadd.f32 %v880, %v886
  %v889 = vadd.f32 %v881, %v886
  %v890 = vadd.f32 %v882, %v886
  %v891 = vadd.f32 %v883, %v886
  %v892 = vmax.f32 %v888, 0.0
  %v893 = vmax.f32 %v889, 0.0
  %v894 = vmax.f32 %v890, 0.0
  %v895 = vmax.f32 %v891, 0.0
  %896 = vst [vmem:[%s4] sm:$0xff] %v892
  %897 = vst [vmem:[%s4 + $0x8] sm:$0xff] %v893
  %898 = vst [vmem:[%s4 + $0x10] sm:$0xff] %v894
  %899 = vst [vmem:[%s4 + $0x18] sm:$0xff] %v895
  // Predicated region
  $region18: #{resnet_forward.18} parent=0 // pred_check
    _
  $region19: #{resnet_forward.18} parent=0 // pred_check_branch
    %901 = sbr.rel (0) target = $region21
  $region20: #{resnet_forward.18} parent=0 // pred_region
    _
  $region21: #{resnet_forward.18} parent=0 // pred_fallthru
    _
  // Predicated region
  $region22: #{resnet_forward.18} parent=0 // pred_check
    _
  $region23: #{resnet_forward.18} parent=0 // pred_check_branch
    %903 = sbr.rel (0) target = $region25
  $region24: #{resnet_forward.18} parent=0 // pred_region
    _
  $region25: #{resnet_forward.18} parent=0 // pred_fallthru
    _

// kernel: resnet_forward.17
$region0: #{resnet_forward.17}
  #allocation0 [shape = 'u32[]', space=smem, size = 0x4, offset = 0x4, fixed_abs, tag = 'smem constant byte address 0x4 - core index']
  #allocation1 [shape = 'u32[72,128]{1,0:T(1,128)}', space=vmem, size = 0x9000, scoped, tag = 'internal scratch']
  %s0 = inlined_call_operand.vmem [shape: bf16[32,1152], index: 0, kind: input, shape index: {}]
  %s1 = inlined_call_operand.vmem [shape: bf16[1152,128], index: 1, kind: input, shape index: {}]
  %s2 = inlined_call_operand.vmem [shape: f32[1,128], index: 2, kind: input, shape index: {}]
  %s3 = inlined_call_operand.vmem [shape: f32[1,128], index: 3, kind: input, shape index: {}]
  %s4 = inlined_call_operand.vmem [shape: f32[32,128], index: 4, kind: input, shape index: {}]
  %s5 = inlined_call_operand.vmem [shape: f32[32,128], index: 5, kind: output, shape index: {}]
  %s6 = sld [smem:[#allocation0]]
  $region30: #{resnet_forward.17} parent=0
    _
  %s8 = ssub.s32 1, %s6
  %s9 = scalar_select 0, %s8, %s6
  // Predicated region
  $region2: #{resnet_forward.17} parent=0 // pred_check
    _
  $region3: #{resnet_forward.17} parent=0 // pred_check_branch
    %11 = sbr.rel (0) target = $region5
  $region4: #{resnet_forward.17} parent=0 // pred_region
    _
  $region5: #{resnet_forward.17} parent=0 // pred_fallthru
    _
  // Predicated region
  $region6: #{resnet_forward.17} parent=0 // pred_check
    _
  $region7: #{resnet_forward.17} parent=0 // pred_check_branch
    %13 = sbr.rel (0) target = $region9
  $region8: #{resnet_forward.17} parent=0 // pred_region
    _
  $region9: #{resnet_forward.17} parent=0 // pred_fallthru
    _
  // Predicated region
  $region10: #{resnet_forward.17} parent=0 // pred_check
    _
  $region11: #{resnet_forward.17} parent=0 // pred_check_branch
    %15 = sbr.rel (0) target = $region13
  $region12: #{resnet_forward.17} parent=0 // pred_region
    _
  $region13: #{resnet_forward.17} parent=0 // pred_fallthru
    _
  // Predicated region
  $region14: #{resnet_forward.17} parent=0 // pred_check
    _
  $region15: #{resnet_forward.17} parent=0 // pred_check_branch
    %17 = sbr.rel (0) target = $region17
  $region16: #{resnet_forward.17} parent=0 // pred_region
    _
  $region17: #{resnet_forward.17} parent=0 // pred_fallthru
    _
  // Predicated region
  $region18: #{resnet_forward.17} parent=0 // pred_check
    _
  $region19: #{resnet_forward.17} parent=0 // pred_check_branch
    %19 = sbr.rel (0) target = $region21
  $region20: #{resnet_forward.17} parent=0 // pred_region
    _
  $region21: #{resnet_forward.17} parent=0 // pred_fallthru
    _
  %v20 = vld [vmem:[%s0] sm:$0xff]
  %v21 = vld [vmem:[%s0 + $0x8] sm:$0xff]
  %v22 = vld [vmem:[%s0 + $0x10] sm:$0xff]
  %v23 = vld [vmem:[%s0 + $0x18] sm:$0xff]
  %v24 = vld [vmem:[%s0 + $0x20] sm:$0xf]
  %v25 = vld [vmem:[%s0 + $0x24] sm:$0xff]
  %v26 = vld [vmem:[%s0 + $0x2c] sm:$0xff]
  %v27 = vld [vmem:[%s0 + $0x34] sm:$0xff]
  %v28 = vld [vmem:[%s0 + $0x3c] sm:$0xff]
  %v29 = vld [vmem:[%s0 + $0x44] sm:$0xf]
  %v30 = vld [vmem:[%s0 + $0x48] sm:$0xff]
  %v31 = vld [vmem:[%s0 + $0x50] sm:$0xff]
  %v32 = vld [vmem:[%s0 + $0x58] sm:$0xff]
  %v33 = vld [vmem:[%s0 + $0x60] sm:$0xff]
  %v34 = vld [vmem:[%s0 + $0x68] sm:$0xf]
  %v35 = vld [vmem:[%s0 + $0x6c] sm:$0xff]
  %v36 = vld [vmem:[%s0 + $0x74] sm:$0xff]
  %v37 = vld [vmem:[%s0 + $0x7c] sm:$0xff]
  %v38 = vld [vmem:[%s0 + $0x84] sm:$0xff]
  %v39 = vld [vmem:[%s0 + $0x8c] sm:$0xf]
  %v40 = vld [vmem:[%s1] sm:$0xf]
  %v41 = vld [vmem:[%s1 + $0x4] sm:$0xf]
  %v42 = vld [vmem:[%s1 + $0x8] sm:$0xf]
  %v43 = vld [vmem:[%s1 + $0xc] sm:$0xf]
  %v44 = vld [vmem:[%s1 + $0x10] sm:$0xf]
  %v45 = vld [vmem:[%s1 + $0x14] sm:$0xf]
  %v46 = vld [vmem:[%s1 + $0x18] sm:$0xf]
  %v47 = vld [vmem:[%s1 + $0x1c] sm:$0xf]
  %v48 = vld [vmem:[%s1 + $0x20] sm:$0xf]
  %v49 = vld [vmem:[%s1 + $0x24] sm:$0xf]
  %v50 = vld [vmem:[%s1 + $0x28] sm:$0xf]
  %v51 = vld [vmem:[%s1 + $0x2c] sm:$0xf]
  %v52 = vld [vmem:[%s1 + $0x30] sm:$0xf]
  %v53 = vld [vmem:[%s1 + $0x34] sm:$0xf]
  %v54 = vld [vmem:[%s1 + $0x38] sm:$0xf]
  %v55 = vld [vmem:[%s1 + $0x3c] sm:$0xf]
  %v56 = vld [vmem:[%s1 + $0x40] sm:$0xf]
  %v57 = vld [vmem:[%s1 + $0x44] sm:$0xf]
  %v58 = vld [vmem:[%s1 + $0x48] sm:$0xf]
  %v59 = vld [vmem:[%s1 + $0x4c] sm:$0xf]
  %v60 = vld [vmem:[%s1 + $0x50] sm:$0xf]
  %v61 = vld [vmem:[%s1 + $0x54] sm:$0xf]
  %v62 = vld [vmem:[%s1 + $0x58] sm:$0xf]
  %v63 = vld [vmem:[%s1 + $0x5c] sm:$0xf]
  %v64 = vld [vmem:[%s1 + $0x60] sm:$0xf]
  %v65 = vld [vmem:[%s1 + $0x64] sm:$0xf]
  %v66 = vld [vmem:[%s1 + $0x68] sm:$0xf]
  %v67 = vld [vmem:[%s1 + $0x6c] sm:$0xf]
  %v68 = vld [vmem:[%s1 + $0x70] sm:$0xf]
  %v69 = vld [vmem:[%s1 + $0x74] sm:$0xf]
  %v70 = vld [vmem:[%s1 + $0x78] sm:$0xf]
  %v71 = vld [vmem:[%s1 + $0x7c] sm:$0xf]
  %v72 = vld [vmem:[%s1 + $0x80] sm:$0xf]
  %v73 = vld [vmem:[%s1 + $0x84] sm:$0xf]
  %v74 = vld [vmem:[%s1 + $0x88] sm:$0xf]
  %v75 = vld [vmem:[%s1 + $0x8c] sm:$0xf]
  %v76 = vld [vmem:[%s1 + $0x90] sm:$0xf]
  %v77 = vld [vmem:[%s1 + $0x94] sm:$0xf]
  %v78 = vld [vmem:[%s1 + $0x98] sm:$0xf]
  %v79 = vld [vmem:[%s1 + $0x9c] sm:$0xf]
  %v80 = vld [vmem:[%s1 + $0xa0] sm:$0xf]
  %v81 = vld [vmem:[%s1 + $0xa4] sm:$0xf]
  %v82 = vld [vmem:[%s1 + $0xa8] sm:$0xf]
  %v83 = vld [vmem:[%s1 + $0xac] sm:$0xf]
  %v84 = vld [vmem:[%s1 + $0xb0] sm:$0xf]
  %v85 = vld [vmem:[%s1 + $0xb4] sm:$0xf]
  %v86 = vld [vmem:[%s1 + $0xb8] sm:$0xf]
  %v87 = vld [vmem:[%s1 + $0xbc] sm:$0xf]
  %v88 = vld [vmem:[%s1 + $0xc0] sm:$0xf]
  %v89 = vld [vmem:[%s1 + $0xc4] sm:$0xf]
  %v90 = vld [vmem:[%s1 + $0xc8] sm:$0xf]
  %v91 = vld [vmem:[%s1 + $0xcc] sm:$0xf]
  %v92 = vld [vmem:[%s1 + $0xd0] sm:$0xf]
  %v93 = vld [vmem:[%s1 + $0xd4] sm:$0xf]
  %v94 = vld [vmem:[%s1 + $0xd8] sm:$0xf]
  %v95 = vld [vmem:[%s1 + $0xdc] sm:$0xf]
  %v96 = vld [vmem:[%s1 + $0xe0] sm:$0xf]
  %v97 = vld [vmem:[%s1 + $0xe4] sm:$0xf]
  %v98 = vld [vmem:[%s1 + $0xe8] sm:$0xf]
  %v99 = vld [vmem:[%s1 + $0xec] sm:$0xf]
  %v100 = vld [vmem:[%s1 + $0xf0] sm:$0xf]
  %v101 = vld [vmem:[%s1 + $0xf4] sm:$0xf]
  %v102 = vld [vmem:[%s1 + $0xf8] sm:$0xf]
  %v103 = vld [vmem:[%s1 + $0xfc] sm:$0xf]
  %v104 = vld [vmem:[%s1 + $0x100] sm:$0xf]
  %v105 = vld [vmem:[%s1 + $0x104] sm:$0xf]
  %v106 = vld [vmem:[%s1 + $0x108] sm:$0xf]
  %v107 = vld [vmem:[%s1 + $0x10c] sm:$0xf]
  %v108 = vld [vmem:[%s1 + $0x110] sm:$0xf]
  %v109 = vld [vmem:[%s1 + $0x114] sm:$0xf]
  %v110 = vld [vmem:[%s1 + $0x118] sm:$0xf]
  %v111 = vld [vmem:[%s1 + $0x11c] sm:$0xf]
  %v112 = vld [vmem:[%s1 + $0x120] sm:$0xf]
  %v113 = vld [vmem:[%s1 + $0x124] sm:$0xf]
  %v114 = vld [vmem:[%s1 + $0x128] sm:$0xf]
  %v115 = vld [vmem:[%s1 + $0x12c] sm:$0xf]
  %v116 = vld [vmem:[%s1 + $0x130] sm:$0xf]
  %v117 = vld [vmem:[%s1 + $0x134] sm:$0xf]
  %v118 = vld [vmem:[%s1 + $0x138] sm:$0xf]
  %v119 = vld [vmem:[%s1 + $0x13c] sm:$0xf]
  %v120 = vld [vmem:[%s1 + $0x140] sm:$0xf]
  %v121 = vld [vmem:[%s1 + $0x144] sm:$0xf]
  %v122 = vld [vmem:[%s1 + $0x148] sm:$0xf]
  %v123 = vld [vmem:[%s1 + $0x14c] sm:$0xf]
  %v124 = vld [vmem:[%s1 + $0x150] sm:$0xf]
  %v125 = vld [vmem:[%s1 + $0x154] sm:$0xf]
  %v126 = vld [vmem:[%s1 + $0x158] sm:$0xf]
  %v127 = vld [vmem:[%s1 + $0x15c] sm:$0xf]
  %v128 = vld [vmem:[%s1 + $0x160] sm:$0xf]
  %v129 = vld [vmem:[%s1 + $0x164] sm:$0xf]
  %v130 = vld [vmem:[%s1 + $0x168] sm:$0xf]
  %v131 = vld [vmem:[%s1 + $0x16c] sm:$0xf]
  %v132 = vld [vmem:[%s1 + $0x170] sm:$0xf]
  %v133 = vld [vmem:[%s1 + $0x174] sm:$0xf]
  %v134 = vld [vmem:[%s1 + $0x178] sm:$0xf]
  %v135 = vld [vmem:[%s1 + $0x17c] sm:$0xf]
  %v136 = vld [vmem:[%s1 + $0x180] sm:$0xf]
  %v137 = vld [vmem:[%s1 + $0x184] sm:$0xf]
  %v138 = vld [vmem:[%s1 + $0x188] sm:$0xf]
  %v139 = vld [vmem:[%s1 + $0x18c] sm:$0xf]
  %v140 = vld [vmem:[%s1 + $0x190] sm:$0xf]
  %v141 = vld [vmem:[%s1 + $0x194] sm:$0xf]
  %v142 = vld [vmem:[%s1 + $0x198] sm:$0xf]
  %v143 = vld [vmem:[%s1 + $0x19c] sm:$0xf]
  %v144 = vld [vmem:[%s1 + $0x1a0] sm:$0xf]
  %v145 = vld [vmem:[%s1 + $0x1a4] sm:$0xf]
  %v146 = vld [vmem:[%s1 + $0x1a8] sm:$0xf]
  %v147 = vld [vmem:[%s1 + $0x1ac] sm:$0xf]
  %v148 = vld [vmem:[%s1 + $0x1b0] sm:$0xf]
  %v149 = vld [vmem:[%s1 + $0x1b4] sm:$0xf]
  %v150 = vld [vmem:[%s1 + $0x1b8] sm:$0xf]
  %v151 = vld [vmem:[%s1 + $0x1bc] sm:$0xf]
  %v152 = vld [vmem:[%s1 + $0x1c0] sm:$0xf]
  %v153 = vld [vmem:[%s1 + $0x1c4] sm:$0xf]
  %v154 = vld [vmem:[%s1 + $0x1c8] sm:$0xf]
  %v155 = vld [vmem:[%s1 + $0x1cc] sm:$0xf]
  %v156 = vld [vmem:[%s1 + $0x1d0] sm:$0xf]
  %v157 = vld [vmem:[%s1 + $0x1d4] sm:$0xf]
  %v158 = vld [vmem:[%s1 + $0x1d8] sm:$0xf]
  %v159 = vld [vmem:[%s1 + $0x1dc] sm:$0xf]
  %v160 = vld [vmem:[%s1 + $0x1e0] sm:$0xf]
  %v161 = vld [vmem:[%s1 + $0x1e4] sm:$0xf]
  %v162 = vld [vmem:[%s1 + $0x1e8] sm:$0xf]
  %v163 = vld [vmem:[%s1 + $0x1ec] sm:$0xf]
  %v164 = vld [vmem:[%s1 + $0x1f0] sm:$0xf]
  %v165 = vld [vmem:[%s1 + $0x1f4] sm:$0xf]
  %v166 = vld [vmem:[%s1 + $0x1f8] sm:$0xf]
  %v167 = vld [vmem:[%s1 + $0x1fc] sm:$0xf]
  %v168 = vld [vmem:[%s1 + $0x200] sm:$0xf]
  %v169 = vld [vmem:[%s1 + $0x204] sm:$0xf]
  %v170 = vld [vmem:[%s1 + $0x208] sm:$0xf]
  %v171 = vld [vmem:[%s1 + $0x20c] sm:$0xf]
  %v172 = vld [vmem:[%s1 + $0x210] sm:$0xf]
  %v173 = vld [vmem:[%s1 + $0x214] sm:$0xf]
  %v174 = vld [vmem:[%s1 + $0x218] sm:$0xf]
  %v175 = vld [vmem:[%s1 + $0x21c] sm:$0xf]
  %v176 = vld [vmem:[%s1 + $0x220] sm:$0xf]
  %v177 = vld [vmem:[%s1 + $0x224] sm:$0xf]
  %v178 = vld [vmem:[%s1 + $0x228] sm:$0xf]
  %v179 = vld [vmem:[%s1 + $0x22c] sm:$0xf]
  %v180 = vld [vmem:[%s1 + $0x230] sm:$0xf]
  %v181 = vld [vmem:[%s1 + $0x234] sm:$0xf]
  %v182 = vld [vmem:[%s1 + $0x238] sm:$0xf]
  %v183 = vld [vmem:[%s1 + $0x23c] sm:$0xf]
  %v204 = vunpack.c.l.b16 %v20
  %v205 = vunpack.c.h.b16 %v20
  %v206 = vunpack.c.l.b16 %v21
  %v207 = vunpack.c.h.b16 %v21
  %v208 = vunpack.c.l.b16 %v22
  %v209 = vunpack.c.h.b16 %v22
  %v210 = vunpack.c.l.b16 %v23
  %v211 = vunpack.c.h.b16 %v23
  %v212 = vunpack.c.l.b16 %v24
  %v213 = vunpack.c.l.b16 %v25
  %v214 = vunpack.c.h.b16 %v25
  %v215 = vunpack.c.l.b16 %v26
  %v216 = vunpack.c.h.b16 %v26
  %v217 = vunpack.c.l.b16 %v27
  %v218 = vunpack.c.h.b16 %v27
  %v219 = vunpack.c.l.b16 %v28
  %v220 = vunpack.c.h.b16 %v28
  %v221 = vunpack.c.l.b16 %v29
  %v222 = vunpack.c.l.b16 %v30
  %v223 = vunpack.c.h.b16 %v30
  %v224 = vunpack.c.l.b16 %v31
  %v225 = vunpack.c.h.b16 %v31
  %v226 = vunpack.c.l.b16 %v32
  %v227 = vunpack.c.h.b16 %v32
  %v228 = vunpack.c.l.b16 %v33
  %v229 = vunpack.c.h.b16 %v33
  %v230 = vunpack.c.l.b16 %v34
  %v231 = vunpack.c.l.b16 %v35
  %v232 = vunpack.c.h.b16 %v35
  %v233 = vunpack.c.l.b16 %v36
  %v234 = vunpack.c.h.b16 %v36
  %v235 = vunpack.c.l.b16 %v37
  %v236 = vunpack.c.h.b16 %v37
  %v237 = vunpack.c.l.b16 %v38
  %v238 = vunpack.c.h.b16 %v38
  %v239 = vunpack.c.l.b16 %v39
  %v240 = vpack.c.b16 %v213, %v204
  %v241 = vpack.c.b16 %v214, %v205
  %v242 = vpack.c.b16 %v215, %v206
  %v243 = vpack.c.b16 %v216, %v207
  %v244 = vpack.c.b16 %v217, %v208
  %v245 = vpack.c.b16 %v218, %v209
  %v246 = vpack.c.b16 %v219, %v210
  %v247 = vpack.c.b16 %v220, %v211
  %v248 = vpack.c.b16 %v221, %v212
  %v249 = vpack.c.b16 %v231, %v222
  %v250 = vpack.c.b16 %v232, %v223
  %v251 = vpack.c.b16 %v233, %v224
  %v252 = vpack.c.b16 %v234, %v225
  %v253 = vpack.c.b16 %v235, %v226
  %v254 = vpack.c.b16 %v236, %v227
  %v255 = vpack.c.b16 %v237, %v228
  %v256 = vpack.c.b16 %v238, %v229
  %v257 = vpack.c.b16 %v239, %v230
  %v420 = vunpack.c.l.b16 %v40
  %v421 = vunpack.c.l.b16 %v41
  %v422 = vunpack.c.l.b16 %v42
  %v423 = vunpack.c.l.b16 %v43
  %v424 = vunpack.c.l.b16 %v44
  %v425 = vunpack.c.l.b16 %v45
  %v426 = vunpack.c.l.b16 %v46
  %v427 = vunpack.c.l.b16 %v47
  %v428 = vunpack.c.l.b16 %v48
  %v429 = vunpack.c.l.b16 %v49
  %v430 = vunpack.c.l.b16 %v50
  %v431 = vunpack.c.l.b16 %v51
  %v432 = vunpack.c.l.b16 %v52
  %v433 = vunpack.c.l.b16 %v53
  %v434 = vunpack.c.l.b16 %v54
  %v435 = vunpack.c.l.b16 %v55
  %v436 = vunpack.c.l.b16 %v56
  %v437 = vunpack.c.l.b16 %v57
  %v438 = vunpack.c.l.b16 %v58
  %v439 = vunpack.c.l.b16 %v59
  %v440 = vunpack.c.l.b16 %v60
  %v441 = vunpack.c.l.b16 %v61
  %v442 = vunpack.c.l.b16 %v62
  %v443 = vunpack.c.l.b16 %v63
  %v444 = vunpack.c.l.b16 %v64
  %v445 = vunpack.c.l.b16 %v65
  %v446 = vunpack.c.l.b16 %v66
  %v447 = vunpack.c.l.b16 %v67
  %v448 = vunpack.c.l.b16 %v68
  %v449 = vunpack.c.l.b16 %v69
  %v450 = vunpack.c.l.b16 %v70
  %v451 = vunpack.c.l.b16 %v71
  %v452 = vunpack.c.l.b16 %v72
  %v453 = vunpack.c.l.b16 %v73
  %v454 = vunpack.c.l.b16 %v74
  %v455 = vunpack.c.l.b16 %v75
  %v456 = vunpack.c.l.b16 %v76
  %v457 = vunpack.c.l.b16 %v77
  %v458 = vunpack.c.l.b16 %v78
  %v459 = vunpack.c.l.b16 %v79
  %v460 = vunpack.c.l.b16 %v80
  %v461 = vunpack.c.l.b16 %v81
  %v462 = vunpack.c.l.b16 %v82
  %v463 = vunpack.c.l.b16 %v83
  %v464 = vunpack.c.l.b16 %v84
  %v465 = vunpack.c.l.b16 %v85
  %v466 = vunpack.c.l.b16 %v86
  %v467 = vunpack.c.l.b16 %v87
  %v468 = vunpack.c.l.b16 %v88
  %v469 = vunpack.c.l.b16 %v89
  %v470 = vunpack.c.l.b16 %v90
  %v471 = vunpack.c.l.b16 %v91
  %v472 = vunpack.c.l.b16 %v92
  %v473 = vunpack.c.l.b16 %v93
  %v474 = vunpack.c.l.b16 %v94
  %v475 = vunpack.c.l.b16 %v95
  %v476 = vunpack.c.l.b16 %v96
  %v477 = vunpack.c.l.b16 %v97
  %v478 = vunpack.c.l.b16 %v98
  %v479 = vunpack.c.l.b16 %v99
  %v480 = vunpack.c.l.b16 %v100
  %v481 = vunpack.c.l.b16 %v101
  %v482 = vunpack.c.l.b16 %v102
  %v483 = vunpack.c.l.b16 %v103
  %v484 = vunpack.c.l.b16 %v104
  %v485 = vunpack.c.l.b16 %v105
  %v486 = vunpack.c.l.b16 %v106
  %v487 = vunpack.c.l.b16 %v107
  %v488 = vunpack.c.l.b16 %v108
  %v489 = vunpack.c.l.b16 %v109
  %v490 = vunpack.c.l.b16 %v110
  %v491 = vunpack.c.l.b16 %v111
  %v492 = vunpack.c.l.b16 %v112
  %v493 = vunpack.c.l.b16 %v113
  %v494 = vunpack.c.l.b16 %v114
  %v495 = vunpack.c.l.b16 %v115
  %v496 = vunpack.c.l.b16 %v116
  %v497 = vunpack.c.l.b16 %v117
  %v498 = vunpack.c.l.b16 %v118
  %v499 = vunpack.c.l.b16 %v119
  %v500 = vunpack.c.l.b16 %v120
  %v501 = vunpack.c.l.b16 %v121
  %v502 = vunpack.c.l.b16 %v122
  %v503 = vunpack.c.l.b16 %v123
  %v504 = vunpack.c.l.b16 %v124
  %v505 = vunpack.c.l.b16 %v125
  %v506 = vunpack.c.l.b16 %v126
  %v507 = vunpack.c.l.b16 %v127
  %v508 = vunpack.c.l.b16 %v128
  %v509 = vunpack.c.l.b16 %v129
  %v510 = vunpack.c.l.b16 %v130
  %v511 = vunpack.c.l.b16 %v131
  %v512 = vunpack.c.l.b16 %v132
  %v513 = vunpack.c.l.b16 %v133
  %v514 = vunpack.c.l.b16 %v134
  %v515 = vunpack.c.l.b16 %v135
  %v516 = vunpack.c.l.b16 %v136
  %v517 = vunpack.c.l.b16 %v137
  %v518 = vunpack.c.l.b16 %v138
  %v519 = vunpack.c.l.b16 %v139
  %v520 = vunpack.c.l.b16 %v140
  %v521 = vunpack.c.l.b16 %v141
  %v522 = vunpack.c.l.b16 %v142
  %v523 = vunpack.c.l.b16 %v143
  %v524 = vunpack.c.l.b16 %v144
  %v525 = vunpack.c.l.b16 %v145
  %v526 = vunpack.c.l.b16 %v146
  %v527 = vunpack.c.l.b16 %v147
  %v528 = vunpack.c.l.b16 %v148
  %v529 = vunpack.c.l.b16 %v149
  %v530 = vunpack.c.l.b16 %v150
  %v531 = vunpack.c.l.b16 %v151
  %v532 = vunpack.c.l.b16 %v152
  %v533 = vunpack.c.l.b16 %v153
  %v534 = vunpack.c.l.b16 %v154
  %v535 = vunpack.c.l.b16 %v155
  %v536 = vunpack.c.l.b16 %v156
  %v537 = vunpack.c.l.b16 %v157
  %v538 = vunpack.c.l.b16 %v158
  %v539 = vunpack.c.l.b16 %v159
  %v540 = vunpack.c.l.b16 %v160
  %v541 = vunpack.c.l.b16 %v161
  %v542 = vunpack.c.l.b16 %v162
  %v543 = vunpack.c.l.b16 %v163
  %v544 = vunpack.c.l.b16 %v164
  %v545 = vunpack.c.l.b16 %v165
  %v546 = vunpack.c.l.b16 %v166
  %v547 = vunpack.c.l.b16 %v167
  %v548 = vunpack.c.l.b16 %v168
  %v549 = vunpack.c.l.b16 %v169
  %v550 = vunpack.c.l.b16 %v170
  %v551 = vunpack.c.l.b16 %v171
  %v552 = vunpack.c.l.b16 %v172
  %v553 = vunpack.c.l.b16 %v173
  %v554 = vunpack.c.l.b16 %v174
  %v555 = vunpack.c.l.b16 %v175
  %v556 = vunpack.c.l.b16 %v176
  %v557 = vunpack.c.l.b16 %v177
  %v558 = vunpack.c.l.b16 %v178
  %v559 = vunpack.c.l.b16 %v179
  %v560 = vunpack.c.l.b16 %v180
  %v561 = vunpack.c.l.b16 %v181
  %v562 = vunpack.c.l.b16 %v182
  %v563 = vunpack.c.l.b16 %v183
  %v564 = vpack.c.b16 %v421, %v420
  %v565 = vpack.c.b16 %v423, %v422
  %v566 = vpack.c.b16 %v425, %v424
  %v567 = vpack.c.b16 %v427, %v426
  %v568 = vpack.c.b16 %v429, %v428
  %v569 = vpack.c.b16 %v431, %v430
  %v570 = vpack.c.b16 %v433, %v432
  %v571 = vpack.c.b16 %v435, %v434
  %v572 = vpack.c.b16 %v437, %v436
  %v573 = vpack.c.b16 %v439, %v438
  %v574 = vpack.c.b16 %v441, %v440
  %v575 = vpack.c.b16 %v443, %v442
  %v576 = vpack.c.b16 %v445, %v444
  %v577 = vpack.c.b16 %v447, %v446
  %v578 = vpack.c.b16 %v449, %v448
  %v579 = vpack.c.b16 %v451, %v450
  %v580 = vpack.c.b16 %v453, %v452
  %v581 = vpack.c.b16 %v455, %v454
  %v582 = vpack.c.b16 %v457, %v456
  %v583 = vpack.c.b16 %v459, %v458
  %v584 = vpack.c.b16 %v461, %v460
  %v585 = vpack.c.b16 %v463, %v462
  %v586 = vpack.c.b16 %v465, %v464
  %v587 = vpack.c.b16 %v467, %v466
  %v588 = vpack.c.b16 %v469, %v468
  %v589 = vpack.c.b16 %v471, %v470
  %v590 = vpack.c.b16 %v473, %v472
  %v591 = vpack.c.b16 %v475, %v474
  %v592 = vpack.c.b16 %v477, %v476
  %v593 = vpack.c.b16 %v479, %v478
  %v594 = vpack.c.b16 %v481, %v480
  %v595 = vpack.c.b16 %v483, %v482
  %v596 = vpack.c.b16 %v485, %v484
  %v597 = vpack.c.b16 %v487, %v486
  %v598 = vpack.c.b16 %v489, %v488
  %v599 = vpack.c.b16 %v491, %v490
  %v600 = vpack.c.b16 %v493, %v492
  %v601 = vpack.c.b16 %v495, %v494
  %v602 = vpack.c.b16 %v497, %v496
  %v603 = vpack.c.b16 %v499, %v498
  %v604 = vpack.c.b16 %v501, %v500
  %v605 = vpack.c.b16 %v503, %v502
  %v606 = vpack.c.b16 %v505, %v504
  %v607 = vpack.c.b16 %v507, %v506
  %v608 = vpack.c.b16 %v509, %v508
  %v609 = vpack.c.b16 %v511, %v510
  %v610 = vpack.c.b16 %v513, %v512
  %v611 = vpack.c.b16 %v515, %v514
  %v612 = vpack.c.b16 %v517, %v516
  %v613 = vpack.c.b16 %v519, %v518
  %v614 = vpack.c.b16 %v521, %v520
  %v615 = vpack.c.b16 %v523, %v522
  %v616 = vpack.c.b16 %v525, %v524
  %v617 = vpack.c.b16 %v527, %v526
  %v618 = vpack.c.b16 %v529, %v528
  %v619 = vpack.c.b16 %v531, %v530
  %v620 = vpack.c.b16 %v533, %v532
  %v621 = vpack.c.b16 %v535, %v534
  %v622 = vpack.c.b16 %v537, %v536
  %v623 = vpack.c.b16 %v539, %v538
  %v624 = vpack.c.b16 %v541, %v540
  %v625 = vpack.c.b16 %v543, %v542
  %v626 = vpack.c.b16 %v545, %v544
  %v627 = vpack.c.b16 %v547, %v546
  %v628 = vpack.c.b16 %v549, %v548
  %v629 = vpack.c.b16 %v551, %v550
  %v630 = vpack.c.b16 %v553, %v552
  %v631 = vpack.c.b16 %v555, %v554
  %v632 = vpack.c.b16 %v557, %v556
  %v633 = vpack.c.b16 %v559, %v558
  %v634 = vpack.c.b16 %v561, %v560
  %v635 = vpack.c.b16 %v563, %v562
  %708 = vmatpush.bf16.msra.mxu0 %v571
  %709 = vmatpush.bf16.msra.mxu0 %v570
  %710 = vmatpush.bf16.msra.mxu0 %v569
  %711 = vmatpush.bf16.msra.mxu0 %v568
  %712 = vmatpush.bf16.msra.mxu0 %v567
  %713 = vmatpush.bf16.msra.mxu0 %v566
  %714 = vmatpush.bf16.msra.mxu0 %v565
  %715 = vmatpush.bf16.msra.mxu0 %v564
  %716 = vmatmul.bf16.gmra.mxu0 %v240
  %v717 = vpop.f32.mrf.mxu0
  %v718 = vadd.f32 0.0, %v717
  %v719 = vpop.f32.mrf.mxu0
  %v720 = vadd.f32 0.0, %v719
  %721 = vmatmul.bf16.gmra.mxu0 %v249
  %v722 = vpop.f32.mrf.mxu0
  %v723 = vadd.f32 0.0, %v722
  %v724 = vpop.f32.mrf.mxu0
  %v725 = vadd.f32 0.0, %v724
  %726 = vdwg.mxu0
  %727 = vmatpush.bf16.msra.mxu0 %v579
  %728 = vmatpush.bf16.msra.mxu0 %v578
  %729 = vmatpush.bf16.msra.mxu0 %v577
  %730 = vmatpush.bf16.msra.mxu0 %v576
  %731 = vmatpush.bf16.msra.mxu0 %v575
  %732 = vmatpush.bf16.msra.mxu0 %v574
  %733 = vmatpush.bf16.msra.mxu0 %v573
  %734 = vmatpush.bf16.msra.mxu0 %v572
  %735 = vmatmul.bf16.gmra.mxu0 %v241
  %v736 = vpop.f32.mrf.mxu0
  %v737 = vadd.f32 %v718, %v736
  %v738 = vpop.f32.mrf.mxu0
  %v739 = vadd.f32 %v720, %v738
  %740 = vmatmul.bf16.gmra.mxu0 %v250
  %v741 = vpop.f32.mrf.mxu0
  %v742 = vadd.f32 %v723, %v741
  %v743 = vpop.f32.mrf.mxu0
  %v744 = vadd.f32 %v725, %v743
  %745 = vdwg.mxu0
  %746 = vmatpush.bf16.msra.mxu0 %v587
  %747 = vmatpush.bf16.msra.mxu0 %v586
  %748 = vmatpush.bf16.msra.mxu0 %v585
  %749 = vmatpush.bf16.msra.mxu0 %v584
  %750 = vmatpush.bf16.msra.mxu0 %v583
  %751 = vmatpush.bf16.msra.mxu0 %v582
  %752 = vmatpush.bf16.msra.mxu0 %v581
  %753 = vmatpush.bf16.msra.mxu0 %v580
  %754 = vmatmul.bf16.gmra.mxu0 %v242
  %v755 = vpop.f32.mrf.mxu0
  %v756 = vadd.f32 %v737, %v755
  %v757 = vpop.f32.mrf.mxu0
  %v758 = vadd.f32 %v739, %v757
  %759 = vmatmul.bf16.gmra.mxu0 %v251
  %v760 = vpop.f32.mrf.mxu0
  %v761 = vadd.f32 %v742, %v760
  %v762 = vpop.f32.mrf.mxu0
  %v763 = vadd.f32 %v744, %v762
  %764 = vdwg.mxu0
  %765 = vmatpush.bf16.msra.mxu0 %v595
  %766 = vmatpush.bf16.msra.mxu0 %v594
  %767 = vmatpush.bf16.msra.mxu0 %v593
  %768 = vmatpush.bf16.msra.mxu0 %v592
  %769 = vmatpush.bf16.msra.mxu0 %v591
  %770 = vmatpush.bf16.msra.mxu0 %v590
  %771 = vmatpush.bf16.msra.mxu0 %v589
  %772 = vmatpush.bf16.msra.mxu0 %v588
  %773 = vmatmul.bf16.gmra.mxu0 %v243
  %v774 = vpop.f32.mrf.mxu0
  %v775 = vadd.f32 %v756, %v774
  %v776 = vpop.f32.mrf.mxu0
  %v777 = vadd.f32 %v758, %v776
  %778 = vmatmul.bf16.gmra.mxu0 %v252
  %v779 = vpop.f32.mrf.mxu0
  %v780 = vadd.f32 %v761, %v779
  %v781 = vpop.f32.mrf.mxu0
  %v782 = vadd.f32 %v763, %v781
  %783 = vdwg.mxu0
  %784 = vmatpush.bf16.msra.mxu0 %v603
  %785 = vmatpush.bf16.msra.mxu0 %v602
  %786 = vmatpush.bf16.msra.mxu0 %v601
  %787 = vmatpush.bf16.msra.mxu0 %v600
  %788 = vmatpush.bf16.msra.mxu0 %v599
  %789 = vmatpush.bf16.msra.mxu0 %v598
  %790 = vmatpush.bf16.msra.mxu0 %v597
  %791 = vmatpush.bf16.msra.mxu0 %v596
  %792 = vmatmul.bf16.gmra.mxu0 %v244
  %v793 = vpop.f32.mrf.mxu0
  %v794 = vadd.f32 %v775, %v793
  %v795 = vpop.f32.mrf.mxu0
  %v796 = vadd.f32 %v777, %v795
  %797 = vmatmul.bf16.gmra.mxu0 %v253
  %v798 = vpop.f32.mrf.mxu0
  %v799 = vadd.f32 %v780, %v798
  %v800 = vpop.f32.mrf.mxu0
  %v801 = vadd.f32 %v782, %v800
  %802 = vdwg.mxu0
  %803 = vmatpush.bf16.msra.mxu0 %v611
  %804 = vmatpush.bf16.msra.mxu0 %v610
  %805 = vmatpush.bf16.msra.mxu0 %v609
  %806 = vmatpush.bf16.msra.mxu0 %v608
  %807 = vmatpush.bf16.msra.mxu0 %v607
  %808 = vmatpush.bf16.msra.mxu0 %v606
  %809 = vmatpush.bf16.msra.mxu0 %v605
  %810 = vmatpush.bf16.msra.mxu0 %v604
  %811 = vmatmul.bf16.gmra.mxu0 %v245
  %v812 = vpop.f32.mrf.mxu0
  %v813 = vadd.f32 %v794, %v812
  %v814 = vpop.f32.mrf.mxu0
  %v815 = vadd.f32 %v796, %v814
  %816 = vmatmul.bf16.gmra.mxu0 %v254
  %v817 = vpop.f32.mrf.mxu0
  %v818 = vadd.f32 %v799, %v817
  %v819 = vpop.f32.mrf.mxu0
  %v820 = vadd.f32 %v801, %v819
  %821 = vdwg.mxu0
  %822 = vmatpush.bf16.msra.mxu0 %v619
  %823 = vmatpush.bf16.msra.mxu0 %v618
  %824 = vmatpush.bf16.msra.mxu0 %v617
  %825 = vmatpush.bf16.msra.mxu0 %v616
  %826 = vmatpush.bf16.msra.mxu0 %v615
  %827 = vmatpush.bf16.msra.mxu0 %v614
  %828 = vmatpush.bf16.msra.mxu0 %v613
  %829 = vmatpush.bf16.msra.mxu0 %v612
  %830 = vmatmul.bf16.gmra.mxu0 %v246
  %v831 = vpop.f32.mrf.mxu0
  %v832 = vadd.f32 %v813, %v831
  %v833 = vpop.f32.mrf.mxu0
  %v834 = vadd.f32 %v815, %v833
  %835 = vmatmul.bf16.gmra.mxu0 %v255
  %v836 = vpop.f32.mrf.mxu0
  %v837 = vadd.f32 %v818, %v836
  %v838 = vpop.f32.mrf.mxu0
  %v839 = vadd.f32 %v820, %v838
  %840 = vdwg.mxu0
  %841 = vmatpush.bf16.msra.mxu0 %v627
  %842 = vmatpush.bf16.msra.mxu0 %v626
  %843 = vmatpush.bf16.msra.mxu0 %v625
  %844 = vmatpush.bf16.msra.mxu0 %v624
  %845 = vmatpush.bf16.msra.mxu0 %v623
  %846 = vmatpush.bf16.msra.mxu0 %v622
  %847 = vmatpush.bf16.msra.mxu0 %v621
  %848 = vmatpush.bf16.msra.mxu0 %v620
  %849 = vmatmul.bf16.gmra.mxu0 %v247
  %v850 = vpop.f32.mrf.mxu0
  %v851 = vadd.f32 %v832, %v850
  %v852 = vpop.f32.mrf.mxu0
  %v853 = vadd.f32 %v834, %v852
  %854 = vmatmul.bf16.gmra.mxu0 %v256
  %v855 = vpop.f32.mrf.mxu0
  %v856 = vadd.f32 %v837, %v855
  %v857 = vpop.f32.mrf.mxu0
  %v858 = vadd.f32 %v839, %v857
  %859 = vdwg.mxu0
  %860 = vmatpush.bf16.msra.mxu0 %v635
  %861 = vmatpush.bf16.msra.mxu0 %v634
  %862 = vmatpush.bf16.msra.mxu0 %v633
  %863 = vmatpush.bf16.msra.mxu0 %v632
  %864 = vmatpush.bf16.msra.mxu0 %v631
  %865 = vmatpush.bf16.msra.mxu0 %v630
  %866 = vmatpush.bf16.msra.mxu0 %v629
  %867 = vmatpush.bf16.msra.mxu0 %v628
  %868 = vmatmul.bf16.gmra.mxu0 %v248
  %v869 = vpop.f32.mrf.mxu0
  %v870 = vadd.f32 %v851, %v869
  %v871 = vpop.f32.mrf.mxu0
  %v872 = vadd.f32 %v853, %v871
  %873 = vmatmul.bf16.gmra.mxu0 %v257
  %v874 = vpop.f32.mrf.mxu0
  %v875 = vadd.f32 %v856, %v874
  %v876 = vpop.f32.mrf.mxu0
  %v877 = vadd.f32 %v858, %v876
  %878 = vdwg.mxu0
  %v879 = vld [vmem:[%s2] sm:$0x1]
  %v881 = vperm.slane %v879, 0
  %v883 = vmul.f32 %v870, %v881
  %v884 = vmul.f32 %v872, %v881
  %v885 = vmul.f32 %v875, %v881
  %v886 = vmul.f32 %v877, %v881
  %v887 = vld [vmem:[%s3] sm:$0x1]
  %v889 = vperm.slane %v887, 0
  %v891 = vadd.f32 %v883, %v889
  %v892 = vadd.f32 %v884, %v889
  %v893 = vadd.f32 %v885, %v889
  %v894 = vadd.f32 %v886, %v889
  %v895 = vld [vmem:[%s4] sm:$0xff]
  %v896 = vld [vmem:[%s4 + $0x8] sm:$0xff]
  %v897 = vld [vmem:[%s4 + $0x10] sm:$0xff]
  %v898 = vld [vmem:[%s4 + $0x18] sm:$0xff]
  %v899 = vadd.f32 %v891, %v895
  %v900 = vadd.f32 %v892, %v896
  %v901 = vadd.f32 %v893, %v897
  %v902 = vadd.f32 %v894, %v898
  %v903 = vmax.f32 %v899, 0.0
  %v904 = vmax.f32 %v900, 0.0
  %v905 = vmax.f32 %v901, 0.0
  %v906 = vmax.f32 %v902, 0.0
  %907 = vst [vmem:[%s5] sm:$0xff] %v903
  %908 = vst [vmem:[%s5 + $0x8] sm:$0xff] %v904
  %909 = vst [vmem:[%s5 + $0x10] sm:$0xff] %v905
  %910 = vst [vmem:[%s5 + $0x18] sm:$0xff] %v906
  // Predicated region
  $region22: #{resnet_forward.17} parent=0 // pred_check
    _
  $region23: #{resnet_forward.17} parent=0 // pred_check_branch
    %912 = sbr.rel (0) target = $region25
  $region24: #{resnet_forward.17} parent=0 // pred_region
    _
  $region25: #{resnet_forward.17} parent=0 // pred_fallthru
    _
  // Predicated region
  $region26: #{resnet_forward.17} parent=0 // pred_check
    _
  $region27: #{resnet_forward.17} parent=0 // pred_check_branch
    %914 = sbr.rel (0) target = $region29
  $region28: #{resnet_forward.17} parent=0 // pred_region
    _
  $region29: #{resnet_forward.17} parent=0 // pred_fallthru
    _

// kernel: resnet_forward.19
$region0: #{resnet_forward.19}
  #allocation0 [shape = 'u32[]', space=smem, size = 0x4, offset = 0x4, fixed_abs, tag = 'smem constant byte address 0x4 - core index']
  #allocation1 [shape = 'u32[72,128]{1,0:T(1,128)}', space=vmem, size = 0x9000, scoped, tag = 'internal scratch']
  %s0 = inlined_call_operand.vmem [shape: bf16[32,1152], index: 0, kind: input, shape index: {}]
  %s1 = inlined_call_operand.vmem [shape: bf16[1152,128], index: 1, kind: input, shape index: {}]
  %s2 = inlined_call_operand.vmem [shape: f32[1,128], index: 2, kind: input, shape index: {}]
  %s3 = inlined_call_operand.vmem [shape: f32[1,128], index: 3, kind: input, shape index: {}]
  %s4 = inlined_call_operand.vmem [shape: f32[32,128], index: 4, kind: input, shape index: {}]
  %s5 = inlined_call_operand.hbm [shape: f32[32,128], index: 5, kind: output, shape index: {}]
  %s6 = sld [smem:[#allocation0]]
  $region30: #{resnet_forward.19} parent=0
    _
  %s8 = ssub.s32 1, %s6
  %s9 = scalar_select 0, %s8, %s6
  $region1: #{resnet_forward.19} parent=0
    #allocation2 [shape = 'u8[16384]{0}', space=vmem, size = 0x4000, scoped, tag = 'output window, operand 0, single buffered']
    #allocation3 [shape = 's32[1]{0}', space=sflag, size = 0x4, scoped, tag = 'scoped memory for resnet_forward.19']
    %10 = vsyncpa [#allocation3], 0
    // Predicated region
    $region2: #{resnet_forward.19} parent=1 // pred_check
      _
    $region3: #{resnet_forward.19} parent=1 // pred_check_branch
      %12 = sbr.rel (0) target = $region5
    $region4: #{resnet_forward.19} parent=1 // pred_region
      _
    $region5: #{resnet_forward.19} parent=1 // pred_fallthru
      _
    // Predicated region
    $region6: #{resnet_forward.19} parent=1 // pred_check
      _
    $region7: #{resnet_forward.19} parent=1 // pred_check_branch
      %14 = sbr.rel (0) target = $region9
    $region8: #{resnet_forward.19} parent=1 // pred_region
      _
    $region9: #{resnet_forward.19} parent=1 // pred_fallthru
      _
    // Predicated region
    $region10: #{resnet_forward.19} parent=1 // pred_check
      _
    $region11: #{resnet_forward.19} parent=1 // pred_check_branch
      %16 = sbr.rel (0) target = $region13
    $region12: #{resnet_forward.19} parent=1 // pred_region
      _
    $region13: #{resnet_forward.19} parent=1 // pred_fallthru
      _
    // Predicated region
    $region14: #{resnet_forward.19} parent=1 // pred_check
      _
    $region15: #{resnet_forward.19} parent=1 // pred_check_branch
      %18 = sbr.rel (0) target = $region17
    $region16: #{resnet_forward.19} parent=1 // pred_region
      _
    $region17: #{resnet_forward.19} parent=1 // pred_fallthru
      _
    // Predicated region
    $region18: #{resnet_forward.19} parent=1 // pred_check
      _
    $region19: #{resnet_forward.19} parent=1 // pred_check_branch
      %20 = sbr.rel (0) target = $region21
    $region20: #{resnet_forward.19} parent=1 // pred_region
      _
    $region21: #{resnet_forward.19} parent=1 // pred_fallthru
      _
    %v21 = vld [vmem:[%s0] sm:$0xff]
    %v22 = vld [vmem:[%s0 + $0x8] sm:$0xff]
    %v23 = vld [vmem:[%s0 + $0x10] sm:$0xff]
    %v24 = vld [vmem:[%s0 + $0x18] sm:$0xff]
    %v25 = vld [vmem:[%s0 + $0x20] sm:$0xf]
    %v26 = vld [vmem:[%s0 + $0x24] sm:$0xff]
    %v27 = vld [vmem:[%s0 + $0x2c] sm:$0xff]
    %v28 = vld [vmem:[%s0 + $0x34] sm:$0xff]
    %v29 = vld [vmem:[%s0 + $0x3c] sm:$0xff]
    %v30 = vld [vmem:[%s0 + $0x44] sm:$0xf]
    %v31 = vld [vmem:[%s0 + $0x48] sm:$0xff]
    %v32 = vld [vmem:[%s0 + $0x50] sm:$0xff]
    %v33 = vld [vmem:[%s0 + $0x58] sm:$0xff]
    %v34 = vld [vmem:[%s0 + $0x60] sm:$0xff]
    %v35 = vld [vmem:[%s0 + $0x68] sm:$0xf]
    %v36 = vld [vmem:[%s0 + $0x6c] sm:$0xff]
    %v37 = vld [vmem:[%s0 + $0x74] sm:$0xff]
    %v38 = vld [vmem:[%s0 + $0x7c] sm:$0xff]
    %v39 = vld [vmem:[%s0 + $0x84] sm:$0xff]
    %v40 = vld [vmem:[%s0 + $0x8c] sm:$0xf]
    %v41 = vld [vmem:[%s1] sm:$0xf]
    %v42 = vld [vmem:[%s1 + $0x4] sm:$0xf]
    %v43 = vld [vmem:[%s1 + $0x8] sm:$0xf]
    %v44 = vld [vmem:[%s1 + $0xc] sm:$0xf]
    %v45 = vld [vmem:[%s1 + $0x10] sm:$0xf]
    %v46 = vld [vmem:[%s1 + $0x14] sm:$0xf]
    %v47 = vld [vmem:[%s1 + $0x18] sm:$0xf]
    %v48 = vld [vmem:[%s1 + $0x1c] sm:$0xf]
    %v49 = vld [vmem:[%s1 + $0x20] sm:$0xf]
    %v50 = vld [vmem:[%s1 + $0x24] sm:$0xf]
    %v51 = vld [vmem:[%s1 + $0x28] sm:$0xf]
    %v52 = vld [vmem:[%s1 + $0x2c] sm:$0xf]
    %v53 = vld [vmem:[%s1 + $0x30] sm:$0xf]
    %v54 = vld [vmem:[%s1 + $0x34] sm:$0xf]
    %v55 = vld [vmem:[%s1 + $0x38] sm:$0xf]
    %v56 = vld [vmem:[%s1 + $0x3c] sm:$0xf]
    %v57 = vld [vmem:[%s1 + $0x40] sm:$0xf]
    %v58 = vld [vmem:[%s1 + $0x44] sm:$0xf]
    %v59 = vld [vmem:[%s1 + $0x48] sm:$0xf]
    %v60 = vld [vmem:[%s1 + $0x4c] sm:$0xf]
    %v61 = vld [vmem:[%s1 + $0x50] sm:$0xf]
    %v62 = vld [vmem:[%s1 + $0x54] sm:$0xf]
    %v63 = vld [vmem:[%s1 + $0x58] sm:$0xf]
    %v64 = vld [vmem:[%s1 + $0x5c] sm:$0xf]
    %v65 = vld [vmem:[%s1 + $0x60] sm:$0xf]
    %v66 = vld [vmem:[%s1 + $0x64] sm:$0xf]
    %v67 = vld [vmem:[%s1 + $0x68] sm:$0xf]
    %v68 = vld [vmem:[%s1 + $0x6c] sm:$0xf]
    %v69 = vld [vmem:[%s1 + $0x70] sm:$0xf]
    %v70 = vld [vmem:[%s1 + $0x74] sm:$0xf]
    %v71 = vld [vmem:[%s1 + $0x78] sm:$0xf]
    %v72 = vld [vmem:[%s1 + $0x7c] sm:$0xf]
    %v73 = vld [vmem:[%s1 + $0x80] sm:$0xf]
    %v74 = vld [vmem:[%s1 + $0x84] sm:$0xf]
    %v75 = vld [vmem:[%s1 + $0x88] sm:$0xf]
    %v76 = vld [vmem:[%s1 + $0x8c] sm:$0xf]
    %v77 = vld [vmem:[%s1 + $0x90] sm:$0xf]
    %v78 = vld [vmem:[%s1 + $0x94] sm:$0xf]
    %v79 = vld [vmem:[%s1 + $0x98] sm:$0xf]
    %v80 = vld [vmem:[%s1 + $0x9c] sm:$0xf]
    %v81 = vld [vmem:[%s1 + $0xa0] sm:$0xf]
    %v82 = vld [vmem:[%s1 + $0xa4] sm:$0xf]
    %v83 = vld [vmem:[%s1 + $0xa8] sm:$0xf]
    %v84 = vld [vmem:[%s1 + $0xac] sm:$0xf]
    %v85 = vld [vmem:[%s1 + $0xb0] sm:$0xf]
    %v86 = vld [vmem:[%s1 + $0xb4] sm:$0xf]
    %v87 = vld [vmem:[%s1 + $0xb8] sm:$0xf]
    %v88 = vld [vmem:[%s1 + $0xbc] sm:$0xf]
    %v89 = vld [vmem:[%s1 + $0xc0] sm:$0xf]
    %v90 = vld [vmem:[%s1 + $0xc4] sm:$0xf]
    %v91 = vld [vmem:[%s1 + $0xc8] sm:$0xf]
    %v92 = vld [vmem:[%s1 + $0xcc] sm:$0xf]
    %v93 = vld [vmem:[%s1 + $0xd0] sm:$0xf]
    %v94 = vld [vmem:[%s1 + $0xd4] sm:$0xf]
    %v95 = vld [vmem:[%s1 + $0xd8] sm:$0xf]
    %v96 = vld [vmem:[%s1 + $0xdc] sm:$0xf]
    %v97 = vld [vmem:[%s1 + $0xe0] sm:$0xf]
    %v98 = vld [vmem:[%s1 + $0xe4] sm:$0xf]
    %v99 = vld [vmem:[%s1 + $0xe8] sm:$0xf]
    %v100 = vld [vmem:[%s1 + $0xec] sm:$0xf]
    %v101 = vld [vmem:[%s1 + $0xf0] sm:$0xf]
    %v102 = vld [vmem:[%s1 + $0xf4] sm:$0xf]
    %v103 = vld [vmem:[%s1 + $0xf8] sm:$0xf]
    %v104 = vld [vmem:[%s1 + $0xfc] sm:$0xf]
    %v105 = vld [vmem:[%s1 + $0x100] sm:$0xf]
    %v106 = vld [vmem:[%s1 + $0x104] sm:$0xf]
    %v107 = vld [vmem:[%s1 + $0x108] sm:$0xf]
    %v108 = vld [vmem:[%s1 + $0x10c] sm:$0xf]
    %v109 = vld [vmem:[%s1 + $0x110] sm:$0xf]
    %v110 = vld [vmem:[%s1 + $0x114] sm:$0xf]
    %v111 = vld [vmem:[%s1 + $0x118] sm:$0xf]
    %v112 = vld [vmem:[%s1 + $0x11c] sm:$0xf]
    %v113 = vld [vmem:[%s1 + $0x120] sm:$0xf]
    %v114 = vld [vmem:[%s1 + $0x124] sm:$0xf]
    %v115 = vld [vmem:[%s1 + $0x128] sm:$0xf]
    %v116 = vld [vmem:[%s1 + $0x12c] sm:$0xf]
    %v117 = vld [vmem:[%s1 + $0x130] sm:$0xf]
    %v118 = vld [vmem:[%s1 + $0x134] sm:$0xf]
    %v119 = vld [vmem:[%s1 + $0x138] sm:$0xf]
    %v120 = vld [vmem:[%s1 + $0x13c] sm:$0xf]
    %v121 = vld [vmem:[%s1 + $0x140] sm:$0xf]
    %v122 = vld [vmem:[%s1 + $0x144] sm:$0xf]
    %v123 = vld [vmem:[%s1 + $0x148] sm:$0xf]
    %v124 = vld [vmem:[%s1 + $0x14c] sm:$0xf]
    %v125 = vld [vmem:[%s1 + $0x150] sm:$0xf]
    %v126 = vld [vmem:[%s1 + $0x154] sm:$0xf]
    %v127 = vld [vmem:[%s1 + $0x158] sm:$0xf]
    %v128 = vld [vmem:[%s1 + $0x15c] sm:$0xf]
    %v129 = vld [vmem:[%s1 + $0x160] sm:$0xf]
    %v130 = vld [vmem:[%s1 + $0x164] sm:$0xf]
    %v131 = vld [vmem:[%s1 + $0x168] sm:$0xf]
    %v132 = vld [vmem:[%s1 + $0x16c] sm:$0xf]
    %v133 = vld [vmem:[%s1 + $0x170] sm:$0xf]
    %v134 = vld [vmem:[%s1 + $0x174] sm:$0xf]
    %v135 = vld [vmem:[%s1 + $0x178] sm:$0xf]
    %v136 = vld [vmem:[%s1 + $0x17c] sm:$0xf]
    %v137 = vld [vmem:[%s1 + $0x180] sm:$0xf]
    %v138 = vld [vmem:[%s1 + $0x184] sm:$0xf]
    %v139 = vld [vmem:[%s1 + $0x188] sm:$0xf]
    %v140 = vld [vmem:[%s1 + $0x18c] sm:$0xf]
    %v141 = vld [vmem:[%s1 + $0x190] sm:$0xf]
    %v142 = vld [vmem:[%s1 + $0x194] sm:$0xf]
    %v143 = vld [vmem:[%s1 + $0x198] sm:$0xf]
    %v144 = vld [vmem:[%s1 + $0x19c] sm:$0xf]
    %v145 = vld [vmem:[%s1 + $0x1a0] sm:$0xf]
    %v146 = vld [vmem:[%s1 + $0x1a4] sm:$0xf]
    %v147 = vld [vmem:[%s1 + $0x1a8] sm:$0xf]
    %v148 = vld [vmem:[%s1 + $0x1ac] sm:$0xf]
    %v149 = vld [vmem:[%s1 + $0x1b0] sm:$0xf]
    %v150 = vld [vmem:[%s1 + $0x1b4] sm:$0xf]
    %v151 = vld [vmem:[%s1 + $0x1b8] sm:$0xf]
    %v152 = vld [vmem:[%s1 + $0x1bc] sm:$0xf]
    %v153 = vld [vmem:[%s1 + $0x1c0] sm:$0xf]
    %v154 = vld [vmem:[%s1 + $0x1c4] sm:$0xf]
    %v155 = vld [vmem:[%s1 + $0x1c8] sm:$0xf]
    %v156 = vld [vmem:[%s1 + $0x1cc] sm:$0xf]
    %v157 = vld [vmem:[%s1 + $0x1d0] sm:$0xf]
    %v158 = vld [vmem:[%s1 + $0x1d4] sm:$0xf]
    %v159 = vld [vmem:[%s1 + $0x1d8] sm:$0xf]
    %v160 = vld [vmem:[%s1 + $0x1dc] sm:$0xf]
    %v161 = vld [vmem:[%s1 + $0x1e0] sm:$0xf]
    %v162 = vld [vmem:[%s1 + $0x1e4] sm:$0xf]
    %v163 = vld [vmem:[%s1 + $0x1e8] sm:$0xf]
    %v164 = vld [vmem:[%s1 + $0x1ec] sm:$0xf]
    %v165 = vld [vmem:[%s1 + $0x1f0] sm:$0xf]
    %v166 = vld [vmem:[%s1 + $0x1f4] sm:$0xf]
    %v167 = vld [vmem:[%s1 + $0x1f8] sm:$0xf]
    %v168 = vld [vmem:[%s1 + $0x1fc] sm:$0xf]
    %v169 = vld [vmem:[%s1 + $0x200] sm:$0xf]
    %v170 = vld [vmem:[%s1 + $0x204] sm:$0xf]
    %v171 = vld [vmem:[%s1 + $0x208] sm:$0xf]
    %v172 = vld [vmem:[%s1 + $0x20c] sm:$0xf]
    %v173 = vld [vmem:[%s1 + $0x210] sm:$0xf]
    %v174 = vld [vmem:[%s1 + $0x214] sm:$0xf]
    %v175 = vld [vmem:[%s1 + $0x218] sm:$0xf]
    %v176 = vld [vmem:[%s1 + $0x21c] sm:$0xf]
    %v177 = vld [vmem:[%s1 + $0x220] sm:$0xf]
    %v178 = vld [vmem:[%s1 + $0x224] sm:$0xf]
    %v179 = vld [vmem:[%s1 + $0x228] sm:$0xf]
    %v180 = vld [vmem:[%s1 + $0x22c] sm:$0xf]
    %v181 = vld [vmem:[%s1 + $0x230] sm:$0xf]
    %v182 = vld [vmem:[%s1 + $0x234] sm:$0xf]
    %v183 = vld [vmem:[%s1 + $0x238] sm:$0xf]
    %v184 = vld [vmem:[%s1 + $0x23c] sm:$0xf]
    %v205 = vunpack.c.l.b16 %v21
    %v206 = vunpack.c.h.b16 %v21
    %v207 = vunpack.c.l.b16 %v22
    %v208 = vunpack.c.h.b16 %v22
    %v209 = vunpack.c.l.b16 %v23
    %v210 = vunpack.c.h.b16 %v23
    %v211 = vunpack.c.l.b16 %v24
    %v212 = vunpack.c.h.b16 %v24
    %v213 = vunpack.c.l.b16 %v25
    %v214 = vunpack.c.l.b16 %v26
    %v215 = vunpack.c.h.b16 %v26
    %v216 = vunpack.c.l.b16 %v27
    %v217 = vunpack.c.h.b16 %v27
    %v218 = vunpack.c.l.b16 %v28
    %v219 = vunpack.c.h.b16 %v28
    %v220 = vunpack.c.l.b16 %v29
    %v221 = vunpack.c.h.b16 %v29
    %v222 = vunpack.c.l.b16 %v30
    %v223 = vunpack.c.l.b16 %v31
    %v224 = vunpack.c.h.b16 %v31
    %v225 = vunpack.c.l.b16 %v32
    %v226 = vunpack.c.h.b16 %v32
    %v227 = vunpack.c.l.b16 %v33
    %v228 = vunpack.c.h.b16 %v33
    %v229 = vunpack.c.l.b16 %v34
    %v230 = vunpack.c.h.b16 %v34
    %v231 = vunpack.c.l.b16 %v35
    %v232 = vunpack.c.l.b16 %v36
    %v233 = vunpack.c.h.b16 %v36
    %v234 = vunpack.c.l.b16 %v37
    %v235 = vunpack.c.h.b16 %v37
    %v236 = vunpack.c.l.b16 %v38
    %v237 = vunpack.c.h.b16 %v38
    %v238 = vunpack.c.l.b16 %v39
    %v239 = vunpack.c.h.b16 %v39
    %v240 = vunpack.c.l.b16 %v40
    %v241 = vpack.c.b16 %v214, %v205
    %v242 = vpack.c.b16 %v215, %v206
    %v243 = vpack.c.b16 %v216, %v207
    %v244 = vpack.c.b16 %v217, %v208
    %v245 = vpack.c.b16 %v218, %v209
    %v246 = vpack.c.b16 %v219, %v210
    %v247 = vpack.c.b16 %v220, %v211
    %v248 = vpack.c.b16 %v221, %v212
    %v249 = vpack.c.b16 %v222, %v213
    %v250 = vpack.c.b16 %v232, %v223
    %v251 = vpack.c.b16 %v233, %v224
    %v252 = vpack.c.b16 %v234, %v225
    %v253 = vpack.c.b16 %v235, %v226
    %v254 = vpack.c.b16 %v236, %v227
    %v255 = vpack.c.b16 %v237, %v228
    %v256 = vpack.c.b16 %v238, %v229
    %v257 = vpack.c.b16 %v239, %v230
    %v258 = vpack.c.b16 %v240, %v231
    %v421 = vunpack.c.l.b16 %v41
    %v422 = vunpack.c.l.b16 %v42
    %v423 = vunpack.c.l.b16 %v43
    %v424 = vunpack.c.l.b16 %v44
    %v425 = vunpack.c.l.b16 %v45
    %v426 = vunpack.c.l.b16 %v46
    %v427 = vunpack.c.l.b16 %v47
    %v428 = vunpack.c.l.b16 %v48
    %v429 = vunpack.c.l.b16 %v49
    %v430 = vunpack.c.l.b16 %v50
    %v431 = vunpack.c.l.b16 %v51
    %v432 = vunpack.c.l.b16 %v52
    %v433 = vunpack.c.l.b16 %v53
    %v434 = vunpack.c.l.b16 %v54
    %v435 = vunpack.c.l.b16 %v55
    %v436 = vunpack.c.l.b16 %v56
    %v437 = vunpack.c.l.b16 %v57
    %v438 = vunpack.c.l.b16 %v58
    %v439 = vunpack.c.l.b16 %v59
    %v440 = vunpack.c.l.b16 %v60
    %v441 = vunpack.c.l.b16 %v61
    %v442 = vunpack.c.l.b16 %v62
    %v443 = vunpack.c.l.b16 %v63
    %v444 = vunpack.c.l.b16 %v64
    %v445 = vunpack.c.l.b16 %v65
    %v446 = vunpack.c.l.b16 %v66
    %v447 = vunpack.c.l.b16 %v67
    %v448 = vunpack.c.l.b16 %v68
    %v449 = vunpack.c.l.b16 %v69
    %v450 = vunpack.c.l.b16 %v70
    %v451 = vunpack.c.l.b16 %v71
    %v452 = vunpack.c.l.b16 %v72
    %v453 = vunpack.c.l.b16 %v73
    %v454 = vunpack.c.l.b16 %v74
    %v455 = vunpack.c.l.b16 %v75
    %v456 = vunpack.c.l.b16 %v76
    %v457 = vunpack.c.l.b16 %v77
    %v458 = vunpack.c.l.b16 %v78
    %v459 = vunpack.c.l.b16 %v79
    %v460 = vunpack.c.l.b16 %v80
    %v461 = vunpack.c.l.b16 %v81
    %v462 = vunpack.c.l.b16 %v82
    %v463 = vunpack.c.l.b16 %v83
    %v464 = vunpack.c.l.b16 %v84
    %v465 = vunpack.c.l.b16 %v85
    %v466 = vunpack.c.l.b16 %v86
    %v467 = vunpack.c.l.b16 %v87
    %v468 = vunpack.c.l.b16 %v88
    %v469 = vunpack.c.l.b16 %v89
    %v470 = vunpack.c.l.b16 %v90
    %v471 = vunpack.c.l.b16 %v91
    %v472 = vunpack.c.l.b16 %v92
    %v473 = vunpack.c.l.b16 %v93
    %v474 = vunpack.c.l.b16 %v94
    %v475 = vunpack.c.l.b16 %v95
    %v476 = vunpack.c.l.b16 %v96
    %v477 = vunpack.c.l.b16 %v97
    %v478 = vunpack.c.l.b16 %v98
    %v479 = vunpack.c.l.b16 %v99
    %v480 = vunpack.c.l.b16 %v100
    %v481 = vunpack.c.l.b16 %v101
    %v482 = vunpack.c.l.b16 %v102
    %v483 = vunpack.c.l.b16 %v103
    %v484 = vunpack.c.l.b16 %v104
    %v485 = vunpack.c.l.b16 %v105
    %v486 = vunpack.c.l.b16 %v106
    %v487 = vunpack.c.l.b16 %v107
    %v488 = vunpack.c.l.b16 %v108
    %v489 = vunpack.c.l.b16 %v109
    %v490 = vunpack.c.l.b16 %v110
    %v491 = vunpack.c.l.b16 %v111
    %v492 = vunpack.c.l.b16 %v112
    %v493 = vunpack.c.l.b16 %v113
    %v494 = vunpack.c.l.b16 %v114
    %v495 = vunpack.c.l.b16 %v115
    %v496 = vunpack.c.l.b16 %v116
    %v497 = vunpack.c.l.b16 %v117
    %v498 = vunpack.c.l.b16 %v118
    %v499 = vunpack.c.l.b16 %v119
    %v500 = vunpack.c.l.b16 %v120
    %v501 = vunpack.c.l.b16 %v121
    %v502 = vunpack.c.l.b16 %v122
    %v503 = vunpack.c.l.b16 %v123
    %v504 = vunpack.c.l.b16 %v124
    %v505 = vunpack.c.l.b16 %v125
    %v506 = vunpack.c.l.b16 %v126
    %v507 = vunpack.c.l.b16 %v127
    %v508 = vunpack.c.l.b16 %v128
    %v509 = vunpack.c.l.b16 %v129
    %v510 = vunpack.c.l.b16 %v130
    %v511 = vunpack.c.l.b16 %v131
    %v512 = vunpack.c.l.b16 %v132
    %v513 = vunpack.c.l.b16 %v133
    %v514 = vunpack.c.l.b16 %v134
    %v515 = vunpack.c.l.b16 %v135
    %v516 = vunpack.c.l.b16 %v136
    %v517 = vunpack.c.l.b16 %v137
    %v518 = vunpack.c.l.b16 %v138
    %v519 = vunpack.c.l.b16 %v139
    %v520 = vunpack.c.l.b16 %v140
    %v521 = vunpack.c.l.b16 %v141
    %v522 = vunpack.c.l.b16 %v142
    %v523 = vunpack.c.l.b16 %v143
    %v524 = vunpack.c.l.b16 %v144
    %v525 = vunpack.c.l.b16 %v145
    %v526 = vunpack.c.l.b16 %v146
    %v527 = vunpack.c.l.b16 %v147
    %v528 = vunpack.c.l.b16 %v148
    %v529 = vunpack.c.l.b16 %v149
    %v530 = vunpack.c.l.b16 %v150
    %v531 = vunpack.c.l.b16 %v151
    %v532 = vunpack.c.l.b16 %v152
    %v533 = vunpack.c.l.b16 %v153
    %v534 = vunpack.c.l.b16 %v154
    %v535 = vunpack.c.l.b16 %v155
    %v536 = vunpack.c.l.b16 %v156
    %v537 = vunpack.c.l.b16 %v157
    %v538 = vunpack.c.l.b16 %v158
    %v539 = vunpack.c.l.b16 %v159
    %v540 = vunpack.c.l.b16 %v160
    %v541 = vunpack.c.l.b16 %v161
    %v542 = vunpack.c.l.b16 %v162
    %v543 = vunpack.c.l.b16 %v163
    %v544 = vunpack.c.l.b16 %v164
    %v545 = vunpack.c.l.b16 %v165
    %v546 = vunpack.c.l.b16 %v166
    %v547 = vunpack.c.l.b16 %v167
    %v548 = vunpack.c.l.b16 %v168
    %v549 = vunpack.c.l.b16 %v169
    %v550 = vunpack.c.l.b16 %v170
    %v551 = vunpack.c.l.b16 %v171
    %v552 = vunpack.c.l.b16 %v172
    %v553 = vunpack.c.l.b16 %v173
    %v554 = vunpack.c.l.b16 %v174
    %v555 = vunpack.c.l.b16 %v175
    %v556 = vunpack.c.l.b16 %v176
    %v557 = vunpack.c.l.b16 %v177
    %v558 = vunpack.c.l.b16 %v178
    %v559 = vunpack.c.l.b16 %v179
    %v560 = vunpack.c.l.b16 %v180
    %v561 = vunpack.c.l.b16 %v181
    %v562 = vunpack.c.l.b16 %v182
    %v563 = vunpack.c.l.b16 %v183
    %v564 = vunpack.c.l.b16 %v184
    %v565 = vpack.c.b16 %v422, %v421
    %v566 = vpack.c.b16 %v424, %v423
    %v567 = vpack.c.b16 %v426, %v425
    %v568 = vpack.c.b16 %v428, %v427
    %v569 = vpack.c.b16 %v430, %v429
    %v570 = vpack.c.b16 %v432, %v431
    %v571 = vpack.c.b16 %v434, %v433
    %v572 = vpack.c.b16 %v436, %v435
    %v573 = vpack.c.b16 %v438, %v437
    %v574 = vpack.c.b16 %v440, %v439
    %v575 = vpack.c.b16 %v442, %v441
    %v576 = vpack.c.b16 %v444, %v443
    %v577 = vpack.c.b16 %v446, %v445
    %v578 = vpack.c.b16 %v448, %v447
    %v579 = vpack.c.b16 %v450, %v449
    %v580 = vpack.c.b16 %v452, %v451
    %v581 = vpack.c.b16 %v454, %v453
    %v582 = vpack.c.b16 %v456, %v455
    %v583 = vpack.c.b16 %v458, %v457
    %v584 = vpack.c.b16 %v460, %v459
    %v585 = vpack.c.b16 %v462, %v461
    %v586 = vpack.c.b16 %v464, %v463
    %v587 = vpack.c.b16 %v466, %v465
    %v588 = vpack.c.b16 %v468, %v467
    %v589 = vpack.c.b16 %v470, %v469
    %v590 = vpack.c.b16 %v472, %v471
    %v591 = vpack.c.b16 %v474, %v473
    %v592 = vpack.c.b16 %v476, %v475
    %v593 = vpack.c.b16 %v478, %v477
    %v594 = vpack.c.b16 %v480, %v479
    %v595 = vpack.c.b16 %v482, %v481
    %v596 = vpack.c.b16 %v484, %v483
    %v597 = vpack.c.b16 %v486, %v485
    %v598 = vpack.c.b16 %v488, %v487
    %v599 = vpack.c.b16 %v490, %v489
    %v600 = vpack.c.b16 %v492, %v491
    %v601 = vpack.c.b16 %v494, %v493
    %v602 = vpack.c.b16 %v496, %v495
    %v603 = vpack.c.b16 %v498, %v497
    %v604 = vpack.c.b16 %v500, %v499
    %v605 = vpack.c.b16 %v502, %v501
    %v606 = vpack.c.b16 %v504, %v503
    %v607 = vpack.c.b16 %v506, %v505
    %v608 = vpack.c.b16 %v508, %v507
    %v609 = vpack.c.b16 %v510, %v509
    %v610 = vpack.c.b16 %v512, %v511
    %v611 = vpack.c.b16 %v514, %v513
    %v612 = vpack.c.b16 %v516, %v515
    %v613 = vpack.c.b16 %v518, %v517
    %v614 = vpack.c.b16 %v520, %v519
    %v615 = vpack.c.b16 %v522, %v521
    %v616 = vpack.c.b16 %v524, %v523
    %v617 = vpack.c.b16 %v526, %v525
    %v618 = vpack.c.b16 %v528, %v527
    %v619 = vpack.c.b16 %v530, %v529
    %v620 = vpack.c.b16 %v532, %v531
    %v621 = vpack.c.b16 %v534, %v533
    %v622 = vpack.c.b16 %v536, %v535
    %v623 = vpack.c.b16 %v538, %v537
    %v624 = vpack.c.b16 %v540, %v539
    %v625 = vpack.c.b16 %v542, %v541
    %v626 = vpack.c.b16 %v544, %v543
    %v627 = vpack.c.b16 %v546, %v545
    %v628 = vpack.c.b16 %v548, %v547
    %v629 = vpack.c.b16 %v550, %v549
    %v630 = vpack.c.b16 %v552, %v551
    %v631 = vpack.c.b16 %v554, %v553
    %v632 = vpack.c.b16 %v556, %v555
    %v633 = vpack.c.b16 %v558, %v557
    %v634 = vpack.c.b16 %v560, %v559
    %v635 = vpack.c.b16 %v562, %v561
    %v636 = vpack.c.b16 %v564, %v563
    %709 = vmatpush.bf16.msra.mxu0 %v572
    %710 = vmatpush.bf16.msra.mxu0 %v571
    %711 = vmatpush.bf16.msra.mxu0 %v570
    %712 = vmatpush.bf16.msra.mxu0 %v569
    %713 = vmatpush.bf16.msra.mxu0 %v568
    %714 = vmatpush.bf16.msra.mxu0 %v567
    %715 = vmatpush.bf16.msra.mxu0 %v566
    %716 = vmatpush.bf16.msra.mxu0 %v565
    %717 = vmatmul.bf16.gmra.mxu0 %v241
    %v718 = vpop.f32.mrf.mxu0
    %v719 = vadd.f32 0.0, %v718
    %v720 = vpop.f32.mrf.mxu0
    %v721 = vadd.f32 0.0, %v720
    %722 = vmatmul.bf16.gmra.mxu0 %v250
    %v723 = vpop.f32.mrf.mxu0
    %v724 = vadd.f32 0.0, %v723
    %v725 = vpop.f32.mrf.mxu0
    %v726 = vadd.f32 0.0, %v725
    %727 = vdwg.mxu0
    %728 = vmatpush.bf16.msra.mxu0 %v580
    %729 = vmatpush.bf16.msra.mxu0 %v579
    %730 = vmatpush.bf16.msra.mxu0 %v578
    %731 = vmatpush.bf16.msra.mxu0 %v577
    %732 = vmatpush.bf16.msra.mxu0 %v576
    %733 = vmatpush.bf16.msra.mxu0 %v575
    %734 = vmatpush.bf16.msra.mxu0 %v574
    %735 = vmatpush.bf16.msra.mxu0 %v573
    %736 = vmatmul.bf16.gmra.mxu0 %v242
    %v737 = vpop.f32.mrf.mxu0
    %v738 = vadd.f32 %v719, %v737
    %v739 = vpop.f32.mrf.mxu0
    %v740 = vadd.f32 %v721, %v739
    %741 = vmatmul.bf16.gmra.mxu0 %v251
    %v742 = vpop.f32.mrf.mxu0
    %v743 = vadd.f32 %v724, %v742
    %v744 = vpop.f32.mrf.mxu0
    %v745 = vadd.f32 %v726, %v744
    %746 = vdwg.mxu0
    %747 = vmatpush.bf16.msra.mxu0 %v588
    %748 = vmatpush.bf16.msra.mxu0 %v587
    %749 = vmatpush.bf16.msra.mxu0 %v586
    %750 = vmatpush.bf16.msra.mxu0 %v585
    %751 = vmatpush.bf16.msra.mxu0 %v584
    %752 = vmatpush.bf16.msra.mxu0 %v583
    %753 = vmatpush.bf16.msra.mxu0 %v582
    %754 = vmatpush.bf16.msra.mxu0 %v581
    %755 = vmatmul.bf16.gmra.mxu0 %v243
    %v756 = vpop.f32.mrf.mxu0
    %v757 = vadd.f32 %v738, %v756
    %v758 = vpop.f32.mrf.mxu0
    %v759 = vadd.f32 %v740, %v758
    %760 = vmatmul.bf16.gmra.mxu0 %v252
    %v761 = vpop.f32.mrf.mxu0
    %v762 = vadd.f32 %v743, %v761
    %v763 = vpop.f32.mrf.mxu0
    %v764 = vadd.f32 %v745, %v763
    %765 = vdwg.mxu0
    %766 = vmatpush.bf16.msra.mxu0 %v596
    %767 = vmatpush.bf16.msra.mxu0 %v595
    %768 = vmatpush.bf16.msra.mxu0 %v594
    %769 = vmatpush.bf16.msra.mxu0 %v593
    %770 = vmatpush.bf16.msra.mxu0 %v592
    %771 = vmatpush.bf16.msra.mxu0 %v591
    %772 = vmatpush.bf16.msra.mxu0 %v590
    %773 = vmatpush.bf16.msra.mxu0 %v589
    %774 = vmatmul.bf16.gmra.mxu0 %v244
    %v775 = vpop.f32.mrf.mxu0
    %v776 = vadd.f32 %v757, %v775
    %v777 = vpop.f32.mrf.mxu0
    %v778 = vadd.f32 %v759, %v777
    %779 = vmatmul.bf16.gmra.mxu0 %v253
    %v780 = vpop.f32.mrf.mxu0
    %v781 = vadd.f32 %v762, %v780
    %v782 = vpop.f32.mrf.mxu0
    %v783 = vadd.f32 %v764, %v782
    %784 = vdwg.mxu0
    %785 = vmatpush.bf16.msra.mxu0 %v604
    %786 = vmatpush.bf16.msra.mxu0 %v603
    %787 = vmatpush.bf16.msra.mxu0 %v602
    %788 = vmatpush.bf16.msra.mxu0 %v601
    %789 = vmatpush.bf16.msra.mxu0 %v600
    %790 = vmatpush.bf16.msra.mxu0 %v599
    %791 = vmatpush.bf16.msra.mxu0 %v598
    %792 = vmatpush.bf16.msra.mxu0 %v597
    %793 = vmatmul.bf16.gmra.mxu0 %v245
    %v794 = vpop.f32.mrf.mxu0
    %v795 = vadd.f32 %v776, %v794
    %v796 = vpop.f32.mrf.mxu0
    %v797 = vadd.f32 %v778, %v796
    %798 = vmatmul.bf16.gmra.mxu0 %v254
    %v799 = vpop.f32.mrf.mxu0
    %v800 = vadd.f32 %v781, %v799
    %v801 = vpop.f32.mrf.mxu0
    %v802 = vadd.f32 %v783, %v801
    %803 = vdwg.mxu0
    %804 = vmatpush.bf16.msra.mxu0 %v612
    %805 = vmatpush.bf16.msra.mxu0 %v611
    %806 = vmatpush.bf16.msra.mxu0 %v610
    %807 = vmatpush.bf16.msra.mxu0 %v609
    %808 = vmatpush.bf16.msra.mxu0 %v608
    %809 = vmatpush.bf16.msra.mxu0 %v607
    %810 = vmatpush.bf16.msra.mxu0 %v606
    %811 = vmatpush.bf16.msra.mxu0 %v605
    %812 = vmatmul.bf16.gmra.mxu0 %v246
    %v813 = vpop.f32.mrf.mxu0
    %v814 = vadd.f32 %v795, %v813
    %v815 = vpop.f32.mrf.mxu0
    %v816 = vadd.f32 %v797, %v815
    %817 = vmatmul.bf16.gmra.mxu0 %v255
    %v818 = vpop.f32.mrf.mxu0
    %v819 = vadd.f32 %v800, %v818
    %v820 = vpop.f32.mrf.mxu0
    %v821 = vadd.f32 %v802, %v820
    %822 = vdwg.mxu0
    %823 = vmatpush.bf16.msra.mxu0 %v620
    %824 = vmatpush.bf16.msra.mxu0 %v619
    %825 = vmatpush.bf16.msra.mxu0 %v618
    %826 = vmatpush.bf16.msra.mxu0 %v617
    %827 = vmatpush.bf16.msra.mxu0 %v616
    %828 = vmatpush.bf16.msra.mxu0 %v615
    %829 = vmatpush.bf16.msra.mxu0 %v614
    %830 = vmatpush.bf16.msra.mxu0 %v613
    %831 = vmatmul.bf16.gmra.mxu0 %v247
    %v832 = vpop.f32.mrf.mxu0
    %v833 = vadd.f32 %v814, %v832
    %v834 = vpop.f32.mrf.mxu0
    %v835 = vadd.f32 %v816, %v834
    %836 = vmatmul.bf16.gmra.mxu0 %v256
    %v837 = vpop.f32.mrf.mxu0
    %v838 = vadd.f32 %v819, %v837
    %v839 = vpop.f32.mrf.mxu0
    %v840 = vadd.f32 %v821, %v839
    %841 = vdwg.mxu0
    %842 = vmatpush.bf16.msra.mxu0 %v628
    %843 = vmatpush.bf16.msra.mxu0 %v627
    %844 = vmatpush.bf16.msra.mxu0 %v626
    %845 = vmatpush.bf16.msra.mxu0 %v625
    %846 = vmatpush.bf16.msra.mxu0 %v624
    %847 = vmatpush.bf16.msra.mxu0 %v623
    %848 = vmatpush.bf16.msra.mxu0 %v622
    %849 = vmatpush.bf16.msra.mxu0 %v621
    %850 = vmatmul.bf16.gmra.mxu0 %v248
    %v851 = vpop.f32.mrf.mxu0
    %v852 = vadd.f32 %v833, %v851
    %v853 = vpop.f32.mrf.mxu0
    %v854 = vadd.f32 %v835, %v853
    %855 = vmatmul.bf16.gmra.mxu0 %v257
    %v856 = vpop.f32.mrf.mxu0
    %v857 = vadd.f32 %v838, %v856
    %v858 = vpop.f32.mrf.mxu0
    %v859 = vadd.f32 %v840, %v858
    %860 = vdwg.mxu0
    %861 = vmatpush.bf16.msra.mxu0 %v636
    %862 = vmatpush.bf16.msra.mxu0 %v635
    %863 = vmatpush.bf16.msra.mxu0 %v634
    %864 = vmatpush.bf16.msra.mxu0 %v633
    %865 = vmatpush.bf16.msra.mxu0 %v632
    %866 = vmatpush.bf16.msra.mxu0 %v631
    %867 = vmatpush.bf16.msra.mxu0 %v630
    %868 = vmatpush.bf16.msra.mxu0 %v629
    %869 = vmatmul.bf16.gmra.mxu0 %v249
    %v870 = vpop.f32.mrf.mxu0
    %v871 = vadd.f32 %v852, %v870
    %v872 = vpop.f32.mrf.mxu0
    %v873 = vadd.f32 %v854, %v872
    %874 = vmatmul.bf16.gmra.mxu0 %v258
    %v875 = vpop.f32.mrf.mxu0
    %v876 = vadd.f32 %v857, %v875
    %v877 = vpop.f32.mrf.mxu0
    %v878 = vadd.f32 %v859, %v877
    %879 = vdwg.mxu0
    %v880 = vld [vmem:[%s2] sm:$0x1]
    %v882 = vperm.slane %v880, 0
    %v884 = vmul.f32 %v871, %v882
    %v885 = vmul.f32 %v873, %v882
    %v886 = vmul.f32 %v876, %v882
    %v887 = vmul.f32 %v878, %v882
    %v888 = vld [vmem:[%s3] sm:$0x1]
    %v890 = vperm.slane %v888, 0
    %v892 = vadd.f32 %v884, %v890
    %v893 = vadd.f32 %v885, %v890
    %v894 = vadd.f32 %v886, %v890
    %v895 = vadd.f32 %v887, %v890
    %v896 = vld [vmem:[%s4] sm:$0xff]
    %v897 = vld [vmem:[%s4 + $0x8] sm:$0xff]
    %v898 = vld [vmem:[%s4 + $0x10] sm:$0xff]
    %v899 = vld [vmem:[%s4 + $0x18] sm:$0xff]
    %v900 = vadd.f32 %v892, %v896
    %v901 = vadd.f32 %v893, %v897
    %v902 = vadd.f32 %v894, %v898
    %v903 = vadd.f32 %v895, %v899
    %v904 = vmax.f32 %v900, 0.0
    %v905 = vmax.f32 %v901, 0.0
    %v906 = vmax.f32 %v902, 0.0
    %v907 = vmax.f32 %v903, 0.0
    %908 = vst [vmem:[#allocation2] sm:$0xff] %v904
    %909 = vst [vmem:[#allocation2 + $0x8] sm:$0xff] %v905
    %910 = vst [vmem:[#allocation2 + $0x10] sm:$0xff] %v906
    %911 = vst [vmem:[#allocation2 + $0x18] sm:$0xff] %v907
    // Predicated region
    $region22: #{resnet_forward.19} parent=1 // pred_check
      _
    $region23: #{resnet_forward.19} parent=1 // pred_check_branch
      %913 = sbr.rel (0) target = $region25
    $region24: #{resnet_forward.19} parent=1 // pred_region
      %915 = vsyncadd [#allocation3], 0
      %s916 = sshll.u32 [#allocation2], 4
      %s917 = int_to_ptr.vmem [resolvable:$true] %s916
      %s918 = sshll.u32 %s5, 4
      %s919 = int_to_ptr.hbm [resolvable:$true] %s918
      %924 = dma.vmem_to_hbm [thread:$0]  %s917, 512, %s919, [#allocation3], 128, 128, 8
    $region25: #{resnet_forward.19} parent=1 // pred_fallthru
      _
    // Predicated region
    $region26: #{resnet_forward.19} parent=1 // pred_check
      _
    $region27: #{resnet_forward.19} parent=1 // pred_check_branch
      %926 = sbr.rel (0) target = $region29
    $region28: #{resnet_forward.19} parent=1 // pred_region
      %928 = dma.done [#allocation3], 512
    $region29: #{resnet_forward.19} parent=1 // pred_fallthru
      _
    %929 = vsyncpa [#allocation3], 1

</llo_original>
